<compile_context>
chip_gen: v5e
topology: v5e:2x2
jax: 0.10.0
libtpu: 0.0.40
codegen_flags: <defaults>
</compile_context>

<pallas_src>
import functools

import jax
import jax.numpy as jnp
from jax.experimental import pallas as pl
from jax.experimental.pallas import tpu as pltpu

EPS = 1e-5
COUT_PAD = 128  # lane-dense channel padding for all conv outputs


def _vmem_limit_bytes():
    """Generation-aware VMEM budget: ~75% of capacity, capped at 100 MiB."""
    try:
        cap = int(getattr(pltpu.get_tpu_info(), "vmem_capacity_bytes",
                          64 * 1024 * 1024))
    except Exception:
        cap = 64 * 1024 * 1024
    return max(32 * 1024 * 1024, min(cap * 3 // 4, 100 * 1024 * 1024))


_VMEM_LIMIT = _vmem_limit_bytes()


# ---------------------------------------------------------------------------
# Kernel 1: 3x3 "same" conv as ONE wide-K matmul over an in-VMEM im2col slab
#           + bias + ReLU + per-tile centered BatchNorm partial statistics.
# ---------------------------------------------------------------------------
def _conv_relu_stats_kernel(x_ref, w_ref, b_ref, y_ref, stats_ref):
    # x_ref    : (1, H+2, W+2, Cin)   bf16 zero-padded NHWC image (resident)
    # w_ref    : (9*Cin, 128)         bf16 conv taps as an im2col weight slab
    # b_ref    : (1, 128)             f32 conv bias
    # y_ref    : (1, th*W, 128)       bf16 pre-BN activations (post-ReLU)
    # stats_ref: (1, 1, 2, 128)       f32 [tile_sum ; tile_centered_M2]
    _, _, wp, cin = x_ref.shape
    w_img = wp - 2
    tm = y_ref.shape[1]
    th = tm // w_img

    row0 = pl.multiple_of(pl.program_id(1) * th, th)
    halo = x_ref[0, pl.ds(row0, th + 2), :, :]            # (th+2, W+2, Cin) bf16

    # Build the (tm, 9*Cin) im2col slab in VMEM and do a single MXU matmul.
    pieces = []
    for kh in range(3):
        for kw in range(3):
            pieces.append(halo[kh:kh + th, kw:kw + w_img, :].reshape(tm, cin))
    slab = jnp.concatenate(pieces, axis=-1)               # (tm, 9*Cin) bf16

    acc = jnp.dot(slab, w_ref[...], preferred_element_type=jnp.float32)
    y = jnp.maximum(acc + b_ref[...], 0.0)                # bias + ReLU (f32)

    y_ref[0, :, :] = y.astype(y_ref.dtype)                # bf16 store (lane dense)

    # Centered per-tile partial stats (Chan-merged outside, no cancellation).
    s = jnp.sum(y, axis=0, keepdims=True)                 # (1, 128)
    mu = s * (1.0 / tm)
    d = y - mu
    m2 = jnp.sum(d * d, axis=0, keepdims=True)            # (1, 128)
    stats_ref[0, 0, 0:1, :] = s
    stats_ref[0, 0, 1:2, :] = m2


# ---------------------------------------------------------------------------
# Kernel 2: final-stage BatchNorm apply as a lane-dense per-channel FMA.
# ---------------------------------------------------------------------------
def _scale_shift_kernel(y_ref, scale_ref, shift_ref, o_ref):
    o_ref[...] = y_ref[...].astype(jnp.float32) * scale_ref[...] + shift_ref[...]


# ---------------------------------------------------------------------------
# Tiling helpers
# ---------------------------------------------------------------------------
def _pick_tile_h(h, w, target_rows=1024):
    """Largest divisor th of h with th*w layout-friendly (multiple of 8)."""
    best = None
    for th in range(1, h + 1):
        if h % th:
            continue
        if (th * w) % 8 and th != h:
            continue
        if th * w <= max(target_rows, w):
            best = th
    return best if best is not None else h


def _pick_row_tile(total, target=4096):
    best = None
    d = 8
    while d <= min(total, target):
        if total % d == 0:
            best = d
        d += 8
    return best if best is not None else total


# ---------------------------------------------------------------------------
# One conv stage: conv3x3(same) + bias -> ReLU, plus BN partial statistics.
# ---------------------------------------------------------------------------
def conv_relu_stats_stage(x_pad, w_slab, bias, *, tile_h):
    # x_pad : (N, H+2, W+2, Cin) bf16 zero-padded image
    # w_slab: (9*Cin, 128) bf16 ; bias: (128,) f32
    n, hp, wp, cin = x_pad.shape
    h, w = hp - 2, wp - 2
    assert h % tile_h == 0, (h, tile_h)
    ht = h // tile_h
    tm = tile_h * w
    k9, cp = w_slab.shape
    assert k9 == 9 * cin, (k9, cin)

    # NOTE: the whole padded image stays VMEM-resident per batch (constant
    # index_map along the row-tile axis).  For large images on v7x (64 MiB
    # VMEM), switch to a halo-tiled input (manual make_async_copy with a
    # +/-1-row halo) once 2*(H+2)*(W+2)*Cin*2 bytes approaches the budget.
    y_pre, stats = pl.pallas_call(
        _conv_relu_stats_kernel,
        grid=(n, ht),
        in_specs=[
            pl.BlockSpec((1, hp, wp, cin), lambda ni, hi: (ni, 0, 0, 0)),
            pl.BlockSpec((k9, cp), lambda ni, hi: (0, 0)),
            pl.BlockSpec((1, cp), lambda ni, hi: (0, 0)),
        ],
        out_specs=[
            pl.BlockSpec((1, tm, cp), lambda ni, hi: (ni, hi, 0)),
            pl.BlockSpec((1, 1, 2, cp), lambda ni, hi: (ni, hi, 0, 0)),
        ],
        out_shape=[
            jax.ShapeDtypeStruct((n, h * w, cp), jnp.bfloat16),
            jax.ShapeDtypeStruct((n, ht, 2, cp), jnp.float32),
        ],
        compiler_params=pltpu.CompilerParams(
            dimension_semantics=("parallel", "parallel"),
            vmem_limit_bytes=_VMEM_LIMIT),
    )(x_pad, w_slab, bias.reshape(1, cp).astype(jnp.float32))
    return y_pre, stats, tm


def _fold_bn(stats, gamma, beta, tm, m_total):
    """Chan-merge per-tile centered stats -> folded per-channel scale/shift."""
    cp = stats.shape[-1]
    tile_sum = stats[:, :, 0, :].reshape(-1, cp)
    tile_m2 = stats[:, :, 1, :].reshape(-1, cp)
    mean = jnp.sum(tile_sum, axis=0) / m_total
    tile_mean = tile_sum / tm
    m2 = jnp.sum(tile_m2, axis=0) + tm * jnp.sum((tile_mean - mean) ** 2, axis=0)
    var = m2 / m_total
    inv = jax.lax.rsqrt(var + EPS)
    scale = gamma * inv
    shift = beta - mean * scale
    return scale, shift


# ---------------------------------------------------------------------------
# Full FeatureExtractor forward (NCHW in / NCHW out, like the PyTorch module)
# ---------------------------------------------------------------------------
def feature_extractor(x_nchw, params, *, out_channels=64, tile_h=None):
    x = jnp.transpose(x_nchw, (0, 2, 3, 1))               # NCHW -> NHWC
    n, h, w, _ = x.shape
    th = tile_h if tile_h is not None else _pick_tile_h(h, w)
    m_total = n * h * w

    # ---- stage 1: conv1 + bias + ReLU, BN1 stats ---------------------------
    x1_pad = jnp.pad(x.astype(jnp.bfloat16), ((0, 0), (1, 1), (1, 1), (0, 0)))
    y1_pre, stats1, tm1 = conv_relu_stats_stage(
        x1_pad, params["w1"], params["b1"], tile_h=th)
    scale1, shift1 = _fold_bn(stats1, params["g1"], params["beta1"], tm1, m_total)

    # BN1 apply fused into the pad that builds stage 2's halo input (single
    # XLA fused elementwise+pad; zero border is applied AFTER BN, matching
    # PyTorch's zero-padding of bn1's output).
    y1 = y1_pre.reshape(n, h, w, -1).astype(jnp.float32) * scale1 + shift1
    x2_pad = jnp.pad(y1.astype(jnp.bfloat16), ((0, 0), (1, 1), (1, 1), (0, 0)))

    # ---- stage 2: conv2 + bias + ReLU, BN2 stats ---------------------------
    y2_pre, stats2, tm2 = conv_relu_stats_stage(
        x2_pad, params["w2"], params["b2"], tile_h=th)
    scale2, shift2 = _fold_bn(stats2, params["g2"], params["beta2"], tm2, m_total)

    # ---- final BN2 apply: lane-dense scale/shift kernel --------------------
    cp = y2_pre.shape[-1]
    m_rows = n * h * w
    tr = _pick_row_tile(m_rows)
    out = pl.pallas_call(
        _scale_shift_kernel,
        grid=(m_rows // tr,),
        in_specs=[
            pl.BlockSpec((tr, cp), lambda r: (r, 0)),
            pl.BlockSpec((1, cp), lambda r: (0, 0)),
            pl.BlockSpec((1, cp), lambda r: (0, 0)),
        ],
        out_specs=pl.BlockSpec((tr, cp), lambda r: (r, 0)),
        out_shape=jax.ShapeDtypeStruct((m_rows, cp), jnp.float32),
        compiler_params=pltpu.CompilerParams(
            dimension_semantics=("parallel",),
            vmem_limit_bytes=_VMEM_LIMIT),
    )(y2_pre.reshape(m_rows, cp), scale2.reshape(1, cp), shift2.reshape(1, cp))

    out = out.reshape(n, h, w, cp)[..., :out_channels]
    return jnp.transpose(out, (0, 3, 1, 2))                # NHWC -> NCHW


# ---------------------------------------------------------------------------
# Parameter preparation: PyTorch OIHW weights -> bf16 im2col weight slabs,
# with Cout (and stage-2 Cin) zero-padded to 128 lanes.
# ---------------------------------------------------------------------------
def _weight_slab(w_oihw, cin_pad, cout_pad):
    cout, cin, kh, kw = w_oihw.shape
    wt = jnp.transpose(w_oihw, (2, 3, 1, 0))               # (kh, kw, cin, cout)
    wt = jnp.pad(wt, ((0, 0), (0, 0), (0, cin_pad - cin), (0, cout_pad - cout)))
    return wt.reshape(kh * kw * cin_pad, cout_pad).astype(jnp.bfloat16)


def prepare_params(w1_oihw, b1, g1, bt1, w2_oihw, b2, g2, bt2):
    cin1 = w1_oihw.shape[1]                                 # 3

    def padc(v):
        return jnp.pad(v.astype(jnp.float32), (0, COUT_PAD - v.shape[0]))

    return {
        "w1": _weight_slab(w1_oihw, cin_pad=cin1, cout_pad=COUT_PAD),
        "b1": padc(b1), "g1": padc(g1), "beta1": padc(bt1),
        "w2": _weight_slab(w2_oihw, cin_pad=COUT_PAD, cout_pad=COUT_PAD),
        "b2": padc(b2), "g2": padc(g2), "beta2": padc(bt2),
    }


# ---------------------------------------------------------------------------
# Pure-JAX references (NCHW).  match_kernel=True mirrors the kernel's rounding
# points (bf16 conv operands, bf16-stored pre-BN intermediates, f32 everything
# else); match_kernel=False is the exact-f32 PyTorch semantics.
# ---------------------------------------------------------------------------
def reference(x, w1, b1, g1, bt1, w2, b2, g2, bt2, *, match_kernel):
    def r(v):
        return v.astype(jnp.bfloat16).astype(jnp.float32) if match_kernel else v

    def conv(xx, ww, bb):
        y = jax.lax.conv_general_dilated(
            r(xx), r(ww), (1, 1), "SAME",
            dimension_numbers=("NCHW", "OIHW", "NCHW"),
            precision=jax.lax.Precision.HIGHEST)
        return y + bb[None, :, None, None]

    def stage(xx, ww, bb, gg, bt):
        y = jnp.maximum(conv(xx, ww, bb), 0.0)
        mean = jnp.mean(y, axis=(0, 2, 3))
        var = jnp.mean((y - mean[None, :, None, None]) ** 2, axis=(0, 2, 3))
        scale = gg * jax.lax.rsqrt(var + EPS)
        shift = bt - mean * scale
        return r(y) * scale[None, :, None, None] + shift[None, :, None, None]

    y = stage(x, w1, b1, g1, bt1)
    y = stage(y, w2, b2, g2, bt2)
    return y


if __name__ == "__main__":
    key = jax.random.PRNGKey(0)
    keys = jax.random.split(key, 9)

    # Deterministic synthetic parameters (PyTorch shapes).
    w1_oihw = 0.1 * jax.random.normal(keys[0], (32, 3, 3, 3), jnp.float32)
    b1 = 0.05 * jax.random.normal(keys[1], (32,), jnp.float32)
    g1 = 1.0 + 0.1 * jax.random.normal(keys[2], (32,), jnp.float32)
    bt1 = 0.05 * jax.random.normal(keys[3], (32,), jnp.float32)

    w2_oihw = 0.1 * jax.random.normal(keys[4], (64, 32, 3, 3), jnp.float32)
    b2 = 0.05 * jax.random.normal(keys[5], (64,), jnp.float32)
    g2 = 1.0 + 0.1 * jax.random.normal(keys[6], (64,), jnp.float32)
    bt2 = 0.05 * jax.random.normal(keys[7], (64,), jnp.float32)

    params = prepare_params(w1_oihw, b1, g1, bt1, w2_oihw, b2, g2, bt2)

    # Input: batch=2, channels=3 (module requires 3), spatial 16x16, NCHW.
    x = jax.random.normal(keys[8], (2, 3, 16, 16), jnp.float32)

    # tile_h=8 -> grid (N=2, row_tiles=2): exercises the multi-tile path and
    # gives v7x's two TensorCores independent parallel steps.
    fwd = jax.jit(functools.partial(feature_extractor, out_channels=64, tile_h=8))
    out = jax.block_until_ready(fwd(x, params))
    assert out.shape == (2, 64, 16, 16), out.shape

    # Check vs. a reference that mirrors the kernel's bf16 rounding points.
    # Tolerance covers rare 1-ulp bf16 flips of the stored intermediates
    # between the two otherwise-equivalent pipelines.
    ref_match = jax.block_until_ready(
        jax.jit(functools.partial(reference, match_kernel=True))(
            x, w1_oihw, b1, g1, bt1, w2_oihw, b2, g2, bt2))
    err_m = float(jnp.max(jnp.abs(out - ref_match)))
    assert jnp.allclose(out, ref_match, rtol=1e-2, atol=2e-2), err_m

    # Looser sanity check vs. the pure-f32 reference: slack covers bf16
    # rounding of MXU operands and of the bf16 HBM intermediates.
    ref_f32 = jax.block_until_ready(
        jax.jit(functools.partial(reference, match_kernel=False))(
            x, w1_oihw, b1, g1, bt1, w2_oihw, b2, g2, bt2))
    err_f = float(jnp.max(jnp.abs(out - ref_f32)))
    assert jnp.allclose(out, ref_f32, rtol=5e-2, atol=1e-1), err_f

    print("KERNEL_OK")
</pallas_src>

<mosaic_0001>
module attributes {stable_mosaic.version = 11 : i64} {
  func.func @_conv_relu_stats_kernel(%arg0: i32, %arg1: i32, %arg2: memref<1x18x18x3xbf16, #tpu.memory_space<vmem>>, %arg3: memref<27x128xbf16, #tpu.memory_space<vmem>>, %arg4: memref<1x128xf32, #tpu.memory_space<vmem>>, %arg5: memref<1x128x128xbf16, #tpu.memory_space<vmem>>, %arg6: memref<1x1x2x128xf32, #tpu.memory_space<vmem>>) attributes {dimension_semantics = [#tpu.dimension_semantics<parallel>, #tpu.dimension_semantics<parallel>], iteration_bounds = array<i64: 2, 2>, scalar_prefetch = 0 : i64, scratch_operands = 0 : i64, tpu.core_type = #tpu.core_type<tc>, window_params = [{transform_indices = @transform_0, window_bounds = array<i64: 1, 18, 18, 3>}, {pipeline_mode = #tpu.pipeline_mode<synchronous>, transform_indices = @transform_1, window_bounds = array<i64: 27, 128>}, {pipeline_mode = #tpu.pipeline_mode<synchronous>, transform_indices = @transform_2, window_bounds = array<i64: 1, 128>}, {transform_indices = @transform_3, window_bounds = array<i64: 1, 128, 128>}, {transform_indices = @transform_4, window_bounds = array<i64: 1, 1, 2, 128>}]} {
    %c8_i32 = arith.constant 8 : i32
    %0 = arith.muli %arg1, %c8_i32 : i32
    %1 = tpu.assume_multiple %0, 8 : i32
    %c0 = arith.constant 0 : index
    %2 = arith.index_cast %1 : i32 to index
    %c0_0 = arith.constant 0 : index
    %c0_1 = arith.constant 0 : index
    %3 = vector.load %arg2[%c0, %2, %c0_0, %c0_1] : memref<1x18x18x3xbf16, #tpu.memory_space<vmem>>, vector<1x10x18x3xbf16>
    %4 = vector.shape_cast %3 : vector<1x10x18x3xbf16> to vector<10x18x3xbf16>
    %5 = vector.extract_strided_slice %4 {offsets = [0, 0, 0], sizes = [8, 16, 3], strides = [1, 1, 1]} : vector<10x18x3xbf16> to vector<8x16x3xbf16>
    %6 = vector.shape_cast %5 : vector<8x16x3xbf16> to vector<128x3xbf16>
    %7 = vector.extract_strided_slice %4 {offsets = [0, 1, 0], sizes = [8, 16, 3], strides = [1, 1, 1]} : vector<10x18x3xbf16> to vector<8x16x3xbf16>
    %8 = vector.shape_cast %7 : vector<8x16x3xbf16> to vector<128x3xbf16>
    %9 = vector.extract_strided_slice %4 {offsets = [0, 2, 0], sizes = [8, 16, 3], strides = [1, 1, 1]} : vector<10x18x3xbf16> to vector<8x16x3xbf16>
    %10 = vector.shape_cast %9 : vector<8x16x3xbf16> to vector<128x3xbf16>
    %11 = vector.extract_strided_slice %4 {offsets = [1, 0, 0], sizes = [8, 16, 3], strides = [1, 1, 1]} : vector<10x18x3xbf16> to vector<8x16x3xbf16>
    %12 = vector.shape_cast %11 : vector<8x16x3xbf16> to vector<128x3xbf16>
    %13 = vector.extract_strided_slice %4 {offsets = [1, 1, 0], sizes = [8, 16, 3], strides = [1, 1, 1]} : vector<10x18x3xbf16> to vector<8x16x3xbf16>
    %14 = vector.shape_cast %13 : vector<8x16x3xbf16> to vector<128x3xbf16>
    %15 = vector.extract_strided_slice %4 {offsets = [1, 2, 0], sizes = [8, 16, 3], strides = [1, 1, 1]} : vector<10x18x3xbf16> to vector<8x16x3xbf16>
    %16 = vector.shape_cast %15 : vector<8x16x3xbf16> to vector<128x3xbf16>
    %17 = vector.extract_strided_slice %4 {offsets = [2, 0, 0], sizes = [8, 16, 3], strides = [1, 1, 1]} : vector<10x18x3xbf16> to vector<8x16x3xbf16>
    %18 = vector.shape_cast %17 : vector<8x16x3xbf16> to vector<128x3xbf16>
    %19 = vector.extract_strided_slice %4 {offsets = [2, 1, 0], sizes = [8, 16, 3], strides = [1, 1, 1]} : vector<10x18x3xbf16> to vector<8x16x3xbf16>
    %20 = vector.shape_cast %19 : vector<8x16x3xbf16> to vector<128x3xbf16>
    %21 = vector.extract_strided_slice %4 {offsets = [2, 2, 0], sizes = [8, 16, 3], strides = [1, 1, 1]} : vector<10x18x3xbf16> to vector<8x16x3xbf16>
    %22 = vector.shape_cast %21 : vector<8x16x3xbf16> to vector<128x3xbf16>
    %23 = tpu.concatenate %6, %8, %10, %12, %14, %16, %18, %20, %22 in 1 : vector<128x3xbf16>, vector<128x3xbf16>, vector<128x3xbf16>, vector<128x3xbf16>, vector<128x3xbf16>, vector<128x3xbf16>, vector<128x3xbf16>, vector<128x3xbf16>, vector<128x3xbf16> -> vector<128x27xbf16>
    %c0_2 = arith.constant 0 : index
    %c0_3 = arith.constant 0 : index
    %24 = vector.load %arg3[%c0_2, %c0_3] : memref<27x128xbf16, #tpu.memory_space<vmem>>, vector<27x128xbf16>
    %cst = arith.constant dense<0.000000e+00> : vector<128x128xf32>
    %25 = tpu.matmul %23, %24, %cst {dimension_numbers = #tpu.dot_dimension_numbers<[1], [0], [0], [1], [0, 0, 1, 1], [], []>} : vector<128x27xbf16>, vector<27x128xbf16>, vector<128x128xf32> -> vector<128x128xf32>
    %c0_4 = arith.constant 0 : index
    %c0_5 = arith.constant 0 : index
    %26 = vector.load %arg4[%c0_4, %c0_5] : memref<1x128xf32, #tpu.memory_space<vmem>>, vector<1x128xf32>
    %27 = vector.broadcast %26 : vector<1x128xf32> to vector<128x128xf32>
    %28 = arith.addf %25, %27 : vector<128x128xf32>
    %cst_6 = arith.constant 0.000000e+00 : f32
    %29 = vector.broadcast %cst_6 : f32 to vector<128x128xf32>
    %30 = arith.maximumf %28, %29 : vector<128x128xf32>
    %31 = arith.truncf %30 : vector<128x128xf32> to vector<128x128xbf16>
    %c0_7 = arith.constant 0 : index
    %c0_8 = arith.constant 0 : index
    %c0_9 = arith.constant 0 : index
    %32 = vector.load %arg5[%c0_7, %c0_8, %c0_9] : memref<1x128x128xbf16, #tpu.memory_space<vmem>>, vector<1x128x128xbf16>
    %33 = vector.shape_cast %32 : vector<1x128x128xbf16> to vector<128x128xbf16>
    %34 = vector.shape_cast %31 : vector<128x128xbf16> to vector<1x128x128xbf16>
    tpu.vector_store %arg5[%c0_7, %c0_8, %c0_9], %34 {strides = array<i32>} : memref<1x128x128xbf16, #tpu.memory_space<vmem>>, vector<1x128x128xbf16>,
    %cst_10 = arith.constant dense<0.000000e+00> : vector<128xf32>
    %35 = vector.multi_reduction <add>, %30, %cst_10 [0] : vector<128x128xf32> to vector<128xf32>
    %36 = vector.shape_cast %35 : vector<128xf32> to vector<1x128xf32>
    %cst_11 = arith.constant 7.812500e-03 : f32
    %37 = vector.broadcast %cst_11 : f32 to vector<1x128xf32>
    %38 = arith.mulf %36, %37 : vector<1x128xf32>
    %39 = vector.broadcast %38 : vector<1x128xf32> to vector<128x128xf32>
    %40 = arith.subf %30, %39 : vector<128x128xf32>
    %41 = arith.mulf %40, %40 : vector<128x128xf32>
    %cst_12 = arith.constant dense<0.000000e+00> : vector<128xf32>
    %42 = vector.multi_reduction <add>, %41, %cst_12 [0] : vector<128x128xf32> to vector<128xf32>
    %43 = vector.shape_cast %42 : vector<128xf32> to vector<1x128xf32>
    %c0_13 = arith.constant 0 : index
    %c0_14 = arith.constant 0 : index
    %c0_15 = arith.constant 0 : index
    %c0_16 = arith.constant 0 : index
    %44 = vector.load %arg6[%c0_13, %c0_14, %c0_15, %c0_16] : memref<1x1x2x128xf32, #tpu.memory_space<vmem>>, vector<1x1x1x128xf32>
    %45 = vector.shape_cast %44 : vector<1x1x1x128xf32> to vector<1x128xf32>
    %46 = vector.shape_cast %36 : vector<1x128xf32> to vector<1x1x1x128xf32>
    tpu.vector_store %arg6[%c0_13, %c0_14, %c0_15, %c0_16], %46 {strides = array<i32>} : memref<1x1x2x128xf32, #tpu.memory_space<vmem>>, vector<1x1x1x128xf32>,
    %c0_17 = arith.constant 0 : index
    %c0_18 = arith.constant 0 : index
    %c1 = arith.constant 1 : index
    %c0_19 = arith.constant 0 : index
    %47 = vector.load %arg6[%c0_17, %c0_18, %c1, %c0_19] : memref<1x1x2x128xf32, #tpu.memory_space<vmem>>, vector<1x1x1x128xf32>
    %48 = vector.shape_cast %47 : vector<1x1x1x128xf32> to vector<1x128xf32>
    %49 = vector.shape_cast %43 : vector<1x128xf32> to vector<1x1x1x128xf32>
    tpu.vector_store %arg6[%c0_17, %c0_18, %c1, %c0_19], %49 {strides = array<i32>} : memref<1x1x2x128xf32, #tpu.memory_space<vmem>>, vector<1x1x1x128xf32>,
    return
  }
  func.func @transform_0(%arg0: i32, %arg1: i32) -> (i32, i32, i32, i32) {
    %c0_i32 = arith.constant 0 : i32
    %c0_i32_0 = arith.constant 0 : i32
    %c0_i32_1 = arith.constant 0 : i32
    %c0_i32_2 = arith.constant 0 : i32
    return %arg0, %c0_i32, %c0_i32_0, %c0_i32_1 : i32, i32, i32, i32
  }
  func.func @transform_1(%arg0: i32, %arg1: i32) -> (i32, i32) {
    %c0_i32 = arith.constant 0 : i32
    %c0_i32_0 = arith.constant 0 : i32
    %c0_i32_1 = arith.constant 0 : i32
    return %c0_i32, %c0_i32_0 : i32, i32
  }
  func.func @transform_2(%arg0: i32, %arg1: i32) -> (i32, i32) {
    %c0_i32 = arith.constant 0 : i32
    %c0_i32_0 = arith.constant 0 : i32
    %c0_i32_1 = arith.constant 0 : i32
    return %c0_i32, %c0_i32_0 : i32, i32
  }
  func.func @transform_3(%arg0: i32, %arg1: i32) -> (i32, i32, i32) {
    %c0_i32 = arith.constant 0 : i32
    %c0_i32_0 = arith.constant 0 : i32
    return %arg0, %arg1, %c0_i32 : i32, i32, i32
  }
  func.func @transform_4(%arg0: i32, %arg1: i32) -> (i32, i32, i32, i32) {
    %c0_i32 = arith.constant 0 : i32
    %c0_i32_0 = arith.constant 0 : i32
    %c0_i32_1 = arith.constant 0 : i32
    return %arg0, %arg1, %c0_i32, %c0_i32_0 : i32, i32, i32, i32
  }
}

module attributes {stable_mosaic.version = 11 : i64} {
  func.func @_scale_shift_kernel(%arg0: i32, %arg1: memref<512x128xbf16, #tpu.memory_space<vmem>>, %arg2: memref<1x128xf32, #tpu.memory_space<vmem>>, %arg3: memref<1x128xf32, #tpu.memory_space<vmem>>, %arg4: memref<512x128xf32, #tpu.memory_space<vmem>>) attributes {dimension_semantics = [#tpu.dimension_semantics<parallel>], iteration_bounds = array<i64: 1>, scalar_prefetch = 0 : i64, scratch_operands = 0 : i64, tpu.core_type = #tpu.core_type<tc>, window_params = [{transform_indices = @transform_0, window_bounds = array<i64: 512, 128>}, {pipeline_mode = #tpu.pipeline_mode<synchronous>, transform_indices = @transform_1, window_bounds = array<i64: 1, 128>}, {pipeline_mode = #tpu.pipeline_mode<synchronous>, transform_indices = @transform_2, window_bounds = array<i64: 1, 128>}, {transform_indices = @transform_3, window_bounds = array<i64: 512, 128>}]} {
    %c0 = arith.constant 0 : index
    %c0_0 = arith.constant 0 : index
    %0 = vector.load %arg1[%c0, %c0_0] : memref<512x128xbf16, #tpu.memory_space<vmem>>, vector<512x128xbf16>
    %1 = arith.extf %0 : vector<512x128xbf16> to vector<512x128xf32>
    %c0_1 = arith.constant 0 : index
    %c0_2 = arith.constant 0 : index
    %2 = vector.load %arg2[%c0_1, %c0_2] : memref<1x128xf32, #tpu.memory_space<vmem>>, vector<1x128xf32>
    %3 = vector.broadcast %2 : vector<1x128xf32> to vector<512x128xf32>
    %4 = arith.mulf %1, %3 : vector<512x128xf32>
    %c0_3 = arith.constant 0 : index
    %c0_4 = arith.constant 0 : index
    %5 = vector.load %arg3[%c0_3, %c0_4] : memref<1x128xf32, #tpu.memory_space<vmem>>, vector<1x128xf32>
    %6 = vector.broadcast %5 : vector<1x128xf32> to vector<512x128xf32>
    %7 = arith.addf %4, %6 : vector<512x128xf32>
    %c0_5 = arith.constant 0 : index
    %c0_6 = arith.constant 0 : index
    %8 = vector.load %arg4[%c0_5, %c0_6] : memref<512x128xf32, #tpu.memory_space<vmem>>, vector<512x128xf32>
    tpu.vector_store %arg4[%c0_5, %c0_6], %7 {strides = array<i32>} : memref<512x128xf32, #tpu.memory_space<vmem>>, vector<512x128xf32>,
    return
  }
  func.func @transform_0(%arg0: i32) -> (i32, i32) {
    %c0_i32 = arith.constant 0 : i32
    %c0_i32_0 = arith.constant 0 : i32
    return %arg0, %c0_i32 : i32, i32
  }
  func.func @transform_1(%arg0: i32) -> (i32, i32) {
    %c0_i32 = arith.constant 0 : i32
    %c0_i32_0 = arith.constant 0 : i32
    %c0_i32_1 = arith.constant 0 : i32
    return %c0_i32, %c0_i32_0 : i32, i32
  }
  func.func @transform_2(%arg0: i32) -> (i32, i32) {
    %c0_i32 = arith.constant 0 : i32
    %c0_i32_0 = arith.constant 0 : i32
    %c0_i32_1 = arith.constant 0 : i32
    return %c0_i32, %c0_i32_0 : i32, i32
  }
  func.func @transform_3(%arg0: i32) -> (i32, i32) {
    %c0_i32 = arith.constant 0 : i32
    %c0_i32_0 = arith.constant 0 : i32
    return %arg0, %c0_i32 : i32, i32
  }
}

module attributes {stable_mosaic.version = 11 : i64} {
  func.func @_conv_relu_stats_kernel(%arg0: i32, %arg1: i32, %arg2: memref<1x18x18x128xbf16, #tpu.memory_space<vmem>>, %arg3: memref<1152x128xbf16, #tpu.memory_space<vmem>>, %arg4: memref<1x128xf32, #tpu.memory_space<vmem>>, %arg5: memref<1x128x128xbf16, #tpu.memory_space<vmem>>, %arg6: memref<1x1x2x128xf32, #tpu.memory_space<vmem>>) attributes {dimension_semantics = [#tpu.dimension_semantics<parallel>, #tpu.dimension_semantics<parallel>], iteration_bounds = array<i64: 2, 2>, scalar_prefetch = 0 : i64, scratch_operands = 0 : i64, tpu.core_type = #tpu.core_type<tc>, window_params = [{transform_indices = @transform_0, window_bounds = array<i64: 1, 18, 18, 128>}, {pipeline_mode = #tpu.pipeline_mode<synchronous>, transform_indices = @transform_1, window_bounds = array<i64: 1152, 128>}, {pipeline_mode = #tpu.pipeline_mode<synchronous>, transform_indices = @transform_2, window_bounds = array<i64: 1, 128>}, {transform_indices = @transform_3, window_bounds = array<i64: 1, 128, 128>}, {transform_indices = @transform_4, window_bounds = array<i64: 1, 1, 2, 128>}]} {
    %c8_i32 = arith.constant 8 : i32
    %0 = arith.muli %arg1, %c8_i32 : i32
    %1 = tpu.assume_multiple %0, 8 : i32
    %c0 = arith.constant 0 : index
    %2 = arith.index_cast %1 : i32 to index
    %c0_0 = arith.constant 0 : index
    %c0_1 = arith.constant 0 : index
    %3 = vector.load %arg2[%c0, %2, %c0_0, %c0_1] : memref<1x18x18x128xbf16, #tpu.memory_space<vmem>>, vector<1x10x18x128xbf16>
    %4 = vector.shape_cast %3 : vector<1x10x18x128xbf16> to vector<10x18x128xbf16>
    %5 = vector.extract_strided_slice %4 {offsets = [0, 0, 0], sizes = [8, 16, 128], strides = [1, 1, 1]} : vector<10x18x128xbf16> to vector<8x16x128xbf16>
    %6 = vector.shape_cast %5 : vector<8x16x128xbf16> to vector<128x128xbf16>
    %7 = vector.extract_strided_slice %4 {offsets = [0, 1, 0], sizes = [8, 16, 128], strides = [1, 1, 1]} : vector<10x18x128xbf16> to vector<8x16x128xbf16>
    %8 = vector.shape_cast %7 : vector<8x16x128xbf16> to vector<128x128xbf16>
    %9 = vector.extract_strided_slice %4 {offsets = [0, 2, 0], sizes = [8, 16, 128], strides = [1, 1, 1]} : vector<10x18x128xbf16> to vector<8x16x128xbf16>
    %10 = vector.shape_cast %9 : vector<8x16x128xbf16> to vector<128x128xbf16>
    %11 = vector.extract_strided_slice %4 {offsets = [1, 0, 0], sizes = [8, 16, 128], strides = [1, 1, 1]} : vector<10x18x128xbf16> to vector<8x16x128xbf16>
    %12 = vector.shape_cast %11 : vector<8x16x128xbf16> to vector<128x128xbf16>
    %13 = vector.extract_strided_slice %4 {offsets = [1, 1, 0], sizes = [8, 16, 128], strides = [1, 1, 1]} : vector<10x18x128xbf16> to vector<8x16x128xbf16>
    %14 = vector.shape_cast %13 : vector<8x16x128xbf16> to vector<128x128xbf16>
    %15 = vector.extract_strided_slice %4 {offsets = [1, 2, 0], sizes = [8, 16, 128], strides = [1, 1, 1]} : vector<10x18x128xbf16> to vector<8x16x128xbf16>
    %16 = vector.shape_cast %15 : vector<8x16x128xbf16> to vector<128x128xbf16>
    %17 = vector.extract_strided_slice %4 {offsets = [2, 0, 0], sizes = [8, 16, 128], strides = [1, 1, 1]} : vector<10x18x128xbf16> to vector<8x16x128xbf16>
    %18 = vector.shape_cast %17 : vector<8x16x128xbf16> to vector<128x128xbf16>
    %19 = vector.extract_strided_slice %4 {offsets = [2, 1, 0], sizes = [8, 16, 128], strides = [1, 1, 1]} : vector<10x18x128xbf16> to vector<8x16x128xbf16>
    %20 = vector.shape_cast %19 : vector<8x16x128xbf16> to vector<128x128xbf16>
    %21 = vector.extract_strided_slice %4 {offsets = [2, 2, 0], sizes = [8, 16, 128], strides = [1, 1, 1]} : vector<10x18x128xbf16> to vector<8x16x128xbf16>
    %22 = vector.shape_cast %21 : vector<8x16x128xbf16> to vector<128x128xbf16>
    %23 = tpu.concatenate %6, %8, %10, %12, %14, %16, %18, %20, %22 in 1 : vector<128x128xbf16>, vector<128x128xbf16>, vector<128x128xbf16>, vector<128x128xbf16>, vector<128x128xbf16>, vector<128x128xbf16>, vector<128x128xbf16>, vector<128x128xbf16>, vector<128x128xbf16> -> vector<128x1152xbf16>
    %c0_2 = arith.constant 0 : index
    %c0_3 = arith.constant 0 : index
    %24 = vector.load %arg3[%c0_2, %c0_3] : memref<1152x128xbf16, #tpu.memory_space<vmem>>, vector<1152x128xbf16>
    %cst = arith.constant dense<0.000000e+00> : vector<128x128xf32>
    %25 = tpu.matmul %23, %24, %cst {dimension_numbers = #tpu.dot_dimension_numbers<[1], [0], [0], [1], [0, 0, 1, 1], [], []>} : vector<128x1152xbf16>, vector<1152x128xbf16>, vector<128x128xf32> -> vector<128x128xf32>
    %c0_4 = arith.constant 0 : index
    %c0_5 = arith.constant 0 : index
    %26 = vector.load %arg4[%c0_4, %c0_5] : memref<1x128xf32, #tpu.memory_space<vmem>>, vector<1x128xf32>
    %27 = vector.broadcast %26 : vector<1x128xf32> to vector<128x128xf32>
    %28 = arith.addf %25, %27 : vector<128x128xf32>
    %cst_6 = arith.constant 0.000000e+00 : f32
    %29 = vector.broadcast %cst_6 : f32 to vector<128x128xf32>
    %30 = arith.maximumf %28, %29 : vector<128x128xf32>
    %31 = arith.truncf %30 : vector<128x128xf32> to vector<128x128xbf16>
    %c0_7 = arith.constant 0 : index
    %c0_8 = arith.constant 0 : index
    %c0_9 = arith.constant 0 : index
    %32 = vector.load %arg5[%c0_7, %c0_8, %c0_9] : memref<1x128x128xbf16, #tpu.memory_space<vmem>>, vector<1x128x128xbf16>
    %33 = vector.shape_cast %32 : vector<1x128x128xbf16> to vector<128x128xbf16>
    %34 = vector.shape_cast %31 : vector<128x128xbf16> to vector<1x128x128xbf16>
    tpu.vector_store %arg5[%c0_7, %c0_8, %c0_9], %34 {strides = array<i32>} : memref<1x128x128xbf16, #tpu.memory_space<vmem>>, vector<1x128x128xbf16>,
    %cst_10 = arith.constant dense<0.000000e+00> : vector<128xf32>
    %35 = vector.multi_reduction <add>, %30, %cst_10 [0] : vector<128x128xf32> to vector<128xf32>
    %36 = vector.shape_cast %35 : vector<128xf32> to vector<1x128xf32>
    %cst_11 = arith.constant 7.812500e-03 : f32
    %37 = vector.broadcast %cst_11 : f32 to vector<1x128xf32>
    %38 = arith.mulf %36, %37 : vector<1x128xf32>
    %39 = vector.broadcast %38 : vector<1x128xf32> to vector<128x128xf32>
    %40 = arith.subf %30, %39 : vector<128x128xf32>
    %41 = arith.mulf %40, %40 : vector<128x128xf32>
    %cst_12 = arith.constant dense<0.000000e+00> : vector<128xf32>
    %42 = vector.multi_reduction <add>, %41, %cst_12 [0] : vector<128x128xf32> to vector<128xf32>
    %43 = vector.shape_cast %42 : vector<128xf32> to vector<1x128xf32>
    %c0_13 = arith.constant 0 : index
    %c0_14 = arith.constant 0 : index
    %c0_15 = arith.constant 0 : index
    %c0_16 = arith.constant 0 : index
    %44 = vector.load %arg6[%c0_13, %c0_14, %c0_15, %c0_16] : memref<1x1x2x128xf32, #tpu.memory_space<vmem>>, vector<1x1x1x128xf32>
    %45 = vector.shape_cast %44 : vector<1x1x1x128xf32> to vector<1x128xf32>
    %46 = vector.shape_cast %36 : vector<1x128xf32> to vector<1x1x1x128xf32>
    tpu.vector_store %arg6[%c0_13, %c0_14, %c0_15, %c0_16], %46 {strides = array<i32>} : memref<1x1x2x128xf32, #tpu.memory_space<vmem>>, vector<1x1x1x128xf32>,
    %c0_17 = arith.constant 0 : index
    %c0_18 = arith.constant 0 : index
    %c1 = arith.constant 1 : index
    %c0_19 = arith.constant 0 : index
    %47 = vector.load %arg6[%c0_17, %c0_18, %c1, %c0_19] : memref<1x1x2x128xf32, #tpu.memory_space<vmem>>, vector<1x1x1x128xf32>
    %48 = vector.shape_cast %47 : vector<1x1x1x128xf32> to vector<1x128xf32>
    %49 = vector.shape_cast %43 : vector<1x128xf32> to vector<1x1x1x128xf32>
    tpu.vector_store %arg6[%c0_17, %c0_18, %c1, %c0_19], %49 {strides = array<i32>} : memref<1x1x2x128xf32, #tpu.memory_space<vmem>>, vector<1x1x1x128xf32>,
    return
  }
  func.func @transform_0(%arg0: i32, %arg1: i32) -> (i32, i32, i32, i32) {
    %c0_i32 = arith.constant 0 : i32
    %c0_i32_0 = arith.constant 0 : i32
    %c0_i32_1 = arith.constant 0 : i32
    %c0_i32_2 = arith.constant 0 : i32
    return %arg0, %c0_i32, %c0_i32_0, %c0_i32_1 : i32, i32, i32, i32
  }
  func.func @transform_1(%arg0: i32, %arg1: i32) -> (i32, i32) {
    %c0_i32 = arith.constant 0 : i32
    %c0_i32_0 = arith.constant 0 : i32
    %c0_i32_1 = arith.constant 0 : i32
    return %c0_i32, %c0_i32_0 : i32, i32
  }
  func.func @transform_2(%arg0: i32, %arg1: i32) -> (i32, i32) {
    %c0_i32 = arith.constant 0 : i32
    %c0_i32_0 = arith.constant 0 : i32
    %c0_i32_1 = arith.constant 0 : i32
    return %c0_i32, %c0_i32_0 : i32, i32
  }
  func.func @transform_3(%arg0: i32, %arg1: i32) -> (i32, i32, i32) {
    %c0_i32 = arith.constant 0 : i32
    %c0_i32_0 = arith.constant 0 : i32
    return %arg0, %arg1, %c0_i32 : i32, i32, i32
  }
  func.func @transform_4(%arg0: i32, %arg1: i32) -> (i32, i32, i32, i32) {
    %c0_i32 = arith.constant 0 : i32
    %c0_i32_0 = arith.constant 0 : i32
    %c0_i32_1 = arith.constant 0 : i32
    return %arg0, %arg1, %c0_i32, %c0_i32_0 : i32, i32, i32, i32
  }
}

</mosaic_0001>

<llo_original>
// kernel: feature_extractor.5
$region0: #{feature_extractor.5}
  #allocation0 [shape = 'u32[]', space=smem, size = 0x4, offset = 0x4, fixed_abs, tag = 'smem constant byte address 0x4 - core index']
  #allocation1 [shape = 'u32[72,128]{1,0:T(1,128)}', space=vmem, size = 0x9000, scoped, tag = 'internal scratch']
  %s0 = inlined_call_operand.vmem [shape: bf16[512,128], index: 0, kind: input, shape index: {}]
  %s1 = inlined_call_operand.vmem [shape: f32[1,128], index: 1, kind: input, shape index: {}]
  %s2 = inlined_call_operand.vmem [shape: f32[1,128], index: 2, kind: input, shape index: {}]
  %s3 = inlined_call_operand.vmem [shape: f32[512,128], index: 3, kind: output, shape index: {}]
  %s4 = sld [smem:[#allocation0]]
  $region22: #{feature_extractor.5} parent=0
    _
  %s6 = ssub.s32 1, %s4
  %s7 = scalar_select 0, %s6, %s4
  // Predicated region
  $region2: #{feature_extractor.5} parent=0 // pred_check
    _
  $region3: #{feature_extractor.5} parent=0 // pred_check_branch
    %9 = sbr.rel (0) target = $region5
  $region4: #{feature_extractor.5} parent=0 // pred_region
    _
  $region5: #{feature_extractor.5} parent=0 // pred_fallthru
    _
  // Predicated region
  $region6: #{feature_extractor.5} parent=0 // pred_check
    _
  $region7: #{feature_extractor.5} parent=0 // pred_check_branch
    %11 = sbr.rel (0) target = $region9
  $region8: #{feature_extractor.5} parent=0 // pred_region
    _
  $region9: #{feature_extractor.5} parent=0 // pred_fallthru
    _
  // Predicated region
  $region10: #{feature_extractor.5} parent=0 // pred_check
    _
  $region11: #{feature_extractor.5} parent=0 // pred_check_branch
    %13 = sbr.rel (0) target = $region13
  $region12: #{feature_extractor.5} parent=0 // pred_region
    _
  $region13: #{feature_extractor.5} parent=0 // pred_fallthru
    _
  %v14 = vld [vmem:[%s0] sm:$0xf]
  %v15 = vld [vmem:[%s0 + $0x4] sm:$0xf]
  %v16 = vld [vmem:[%s0 + $0x8] sm:$0xf]
  %v17 = vld [vmem:[%s0 + $0xc] sm:$0xf]
  %v18 = vld [vmem:[%s0 + $0x10] sm:$0xf]
  %v19 = vld [vmem:[%s0 + $0x14] sm:$0xf]
  %v20 = vld [vmem:[%s0 + $0x18] sm:$0xf]
  %v21 = vld [vmem:[%s0 + $0x1c] sm:$0xf]
  %v22 = vld [vmem:[%s0 + $0x20] sm:$0xf]
  %v23 = vld [vmem:[%s0 + $0x24] sm:$0xf]
  %v24 = vld [vmem:[%s0 + $0x28] sm:$0xf]
  %v25 = vld [vmem:[%s0 + $0x2c] sm:$0xf]
  %v26 = vld [vmem:[%s0 + $0x30] sm:$0xf]
  %v27 = vld [vmem:[%s0 + $0x34] sm:$0xf]
  %v28 = vld [vmem:[%s0 + $0x38] sm:$0xf]
  %v29 = vld [vmem:[%s0 + $0x3c] sm:$0xf]
  %v30 = vld [vmem:[%s0 + $0x40] sm:$0xf]
  %v31 = vld [vmem:[%s0 + $0x44] sm:$0xf]
  %v32 = vld [vmem:[%s0 + $0x48] sm:$0xf]
  %v33 = vld [vmem:[%s0 + $0x4c] sm:$0xf]
  %v34 = vld [vmem:[%s0 + $0x50] sm:$0xf]
  %v35 = vld [vmem:[%s0 + $0x54] sm:$0xf]
  %v36 = vld [vmem:[%s0 + $0x58] sm:$0xf]
  %v37 = vld [vmem:[%s0 + $0x5c] sm:$0xf]
  %v38 = vld [vmem:[%s0 + $0x60] sm:$0xf]
  %v39 = vld [vmem:[%s0 + $0x64] sm:$0xf]
  %v40 = vld [vmem:[%s0 + $0x68] sm:$0xf]
  %v41 = vld [vmem:[%s0 + $0x6c] sm:$0xf]
  %v42 = vld [vmem:[%s0 + $0x70] sm:$0xf]
  %v43 = vld [vmem:[%s0 + $0x74] sm:$0xf]
  %v44 = vld [vmem:[%s0 + $0x78] sm:$0xf]
  %v45 = vld [vmem:[%s0 + $0x7c] sm:$0xf]
  %v46 = vld [vmem:[%s0 + $0x80] sm:$0xf]
  %v47 = vld [vmem:[%s0 + $0x84] sm:$0xf]
  %v48 = vld [vmem:[%s0 + $0x88] sm:$0xf]
  %v49 = vld [vmem:[%s0 + $0x8c] sm:$0xf]
  %v50 = vld [vmem:[%s0 + $0x90] sm:$0xf]
  %v51 = vld [vmem:[%s0 + $0x94] sm:$0xf]
  %v52 = vld [vmem:[%s0 + $0x98] sm:$0xf]
  %v53 = vld [vmem:[%s0 + $0x9c] sm:$0xf]
  %v54 = vld [vmem:[%s0 + $0xa0] sm:$0xf]
  %v55 = vld [vmem:[%s0 + $0xa4] sm:$0xf]
  %v56 = vld [vmem:[%s0 + $0xa8] sm:$0xf]
  %v57 = vld [vmem:[%s0 + $0xac] sm:$0xf]
  %v58 = vld [vmem:[%s0 + $0xb0] sm:$0xf]
  %v59 = vld [vmem:[%s0 + $0xb4] sm:$0xf]
  %v60 = vld [vmem:[%s0 + $0xb8] sm:$0xf]
  %v61 = vld [vmem:[%s0 + $0xbc] sm:$0xf]
  %v62 = vld [vmem:[%s0 + $0xc0] sm:$0xf]
  %v63 = vld [vmem:[%s0 + $0xc4] sm:$0xf]
  %v64 = vld [vmem:[%s0 + $0xc8] sm:$0xf]
  %v65 = vld [vmem:[%s0 + $0xcc] sm:$0xf]
  %v66 = vld [vmem:[%s0 + $0xd0] sm:$0xf]
  %v67 = vld [vmem:[%s0 + $0xd4] sm:$0xf]
  %v68 = vld [vmem:[%s0 + $0xd8] sm:$0xf]
  %v69 = vld [vmem:[%s0 + $0xdc] sm:$0xf]
  %v70 = vld [vmem:[%s0 + $0xe0] sm:$0xf]
  %v71 = vld [vmem:[%s0 + $0xe4] sm:$0xf]
  %v72 = vld [vmem:[%s0 + $0xe8] sm:$0xf]
  %v73 = vld [vmem:[%s0 + $0xec] sm:$0xf]
  %v74 = vld [vmem:[%s0 + $0xf0] sm:$0xf]
  %v75 = vld [vmem:[%s0 + $0xf4] sm:$0xf]
  %v76 = vld [vmem:[%s0 + $0xf8] sm:$0xf]
  %v77 = vld [vmem:[%s0 + $0xfc] sm:$0xf]
  %v78 = vunpack.c.l.bf16 %v14
  %v79 = vunpack.c.l.bf16 %v15
  %v80 = vunpack.c.l.bf16 %v16
  %v81 = vunpack.c.l.bf16 %v17
  %v82 = vunpack.c.l.bf16 %v18
  %v83 = vunpack.c.l.bf16 %v19
  %v84 = vunpack.c.l.bf16 %v20
  %v85 = vunpack.c.l.bf16 %v21
  %v86 = vunpack.c.l.bf16 %v22
  %v87 = vunpack.c.l.bf16 %v23
  %v88 = vunpack.c.l.bf16 %v24
  %v89 = vunpack.c.l.bf16 %v25
  %v90 = vunpack.c.l.bf16 %v26
  %v91 = vunpack.c.l.bf16 %v27
  %v92 = vunpack.c.l.bf16 %v28
  %v93 = vunpack.c.l.bf16 %v29
  %v94 = vunpack.c.l.bf16 %v30
  %v95 = vunpack.c.l.bf16 %v31
  %v96 = vunpack.c.l.bf16 %v32
  %v97 = vunpack.c.l.bf16 %v33
  %v98 = vunpack.c.l.bf16 %v34
  %v99 = vunpack.c.l.bf16 %v35
  %v100 = vunpack.c.l.bf16 %v36
  %v101 = vunpack.c.l.bf16 %v37
  %v102 = vunpack.c.l.bf16 %v38
  %v103 = vunpack.c.l.bf16 %v39
  %v104 = vunpack.c.l.bf16 %v40
  %v105 = vunpack.c.l.bf16 %v41
  %v106 = vunpack.c.l.bf16 %v42
  %v107 = vunpack.c.l.bf16 %v43
  %v108 = vunpack.c.l.bf16 %v44
  %v109 = vunpack.c.l.bf16 %v45
  %v110 = vunpack.c.l.bf16 %v46
  %v111 = vunpack.c.l.bf16 %v47
  %v112 = vunpack.c.l.bf16 %v48
  %v113 = vunpack.c.l.bf16 %v49
  %v114 = vunpack.c.l.bf16 %v50
  %v115 = vunpack.c.l.bf16 %v51
  %v116 = vunpack.c.l.bf16 %v52
  %v117 = vunpack.c.l.bf16 %v53
  %v118 = vunpack.c.l.bf16 %v54
  %v119 = vunpack.c.l.bf16 %v55
  %v120 = vunpack.c.l.bf16 %v56
  %v121 = vunpack.c.l.bf16 %v57
  %v122 = vunpack.c.l.bf16 %v58
  %v123 = vunpack.c.l.bf16 %v59
  %v124 = vunpack.c.l.bf16 %v60
  %v125 = vunpack.c.l.bf16 %v61
  %v126 = vunpack.c.l.bf16 %v62
  %v127 = vunpack.c.l.bf16 %v63
  %v128 = vunpack.c.l.bf16 %v64
  %v129 = vunpack.c.l.bf16 %v65
  %v130 = vunpack.c.l.bf16 %v66
  %v131 = vunpack.c.l.bf16 %v67
  %v132 = vunpack.c.l.bf16 %v68
  %v133 = vunpack.c.l.bf16 %v69
  %v134 = vunpack.c.l.bf16 %v70
  %v135 = vunpack.c.l.bf16 %v71
  %v136 = vunpack.c.l.bf16 %v72
  %v137 = vunpack.c.l.bf16 %v73
  %v138 = vunpack.c.l.bf16 %v74
  %v139 = vunpack.c.l.bf16 %v75
  %v140 = vunpack.c.l.bf16 %v76
  %v141 = vunpack.c.l.bf16 %v77
  %v142 = vld [vmem:[%s1] sm:$0x1]
  %v144 = vperm.slane %v142, 0
  %v146 = vmul.f32 %v78, %v144
  %v147 = vmul.f32 %v79, %v144
  %v148 = vmul.f32 %v80, %v144
  %v149 = vmul.f32 %v81, %v144
  %v150 = vmul.f32 %v82, %v144
  %v151 = vmul.f32 %v83, %v144
  %v152 = vmul.f32 %v84, %v144
  %v153 = vmul.f32 %v85, %v144
  %v154 = vmul.f32 %v86, %v144
  %v155 = vmul.f32 %v87, %v144
  %v156 = vmul.f32 %v88, %v144
  %v157 = vmul.f32 %v89, %v144
  %v158 = vmul.f32 %v90, %v144
  %v159 = vmul.f32 %v91, %v144
  %v160 = vmul.f32 %v92, %v144
  %v161 = vmul.f32 %v93, %v144
  %v162 = vmul.f32 %v94, %v144
  %v163 = vmul.f32 %v95, %v144
  %v164 = vmul.f32 %v96, %v144
  %v165 = vmul.f32 %v97, %v144
  %v166 = vmul.f32 %v98, %v144
  %v167 = vmul.f32 %v99, %v144
  %v168 = vmul.f32 %v100, %v144
  %v169 = vmul.f32 %v101, %v144
  %v170 = vmul.f32 %v102, %v144
  %v171 = vmul.f32 %v103, %v144
  %v172 = vmul.f32 %v104, %v144
  %v173 = vmul.f32 %v105, %v144
  %v174 = vmul.f32 %v106, %v144
  %v175 = vmul.f32 %v107, %v144
  %v176 = vmul.f32 %v108, %v144
  %v177 = vmul.f32 %v109, %v144
  %v178 = vmul.f32 %v110, %v144
  %v179 = vmul.f32 %v111, %v144
  %v180 = vmul.f32 %v112, %v144
  %v181 = vmul.f32 %v113, %v144
  %v182 = vmul.f32 %v114, %v144
  %v183 = vmul.f32 %v115, %v144
  %v184 = vmul.f32 %v116, %v144
  %v185 = vmul.f32 %v117, %v144
  %v186 = vmul.f32 %v118, %v144
  %v187 = vmul.f32 %v119, %v144
  %v188 = vmul.f32 %v120, %v144
  %v189 = vmul.f32 %v121, %v144
  %v190 = vmul.f32 %v122, %v144
  %v191 = vmul.f32 %v123, %v144
  %v192 = vmul.f32 %v124, %v144
  %v193 = vmul.f32 %v125, %v144
  %v194 = vmul.f32 %v126, %v144
  %v195 = vmul.f32 %v127, %v144
  %v196 = vmul.f32 %v128, %v144
  %v197 = vmul.f32 %v129, %v144
  %v198 = vmul.f32 %v130, %v144
  %v199 = vmul.f32 %v131, %v144
  %v200 = vmul.f32 %v132, %v144
  %v201 = vmul.f32 %v133, %v144
  %v202 = vmul.f32 %v134, %v144
  %v203 = vmul.f32 %v135, %v144
  %v204 = vmul.f32 %v136, %v144
  %v205 = vmul.f32 %v137, %v144
  %v206 = vmul.f32 %v138, %v144
  %v207 = vmul.f32 %v139, %v144
  %v208 = vmul.f32 %v140, %v144
  %v209 = vmul.f32 %v141, %v144
  %v210 = vld [vmem:[%s2] sm:$0x1]
  %v212 = vperm.slane %v210, 0
  %v214 = vadd.f32 %v146, %v212
  %v215 = vadd.f32 %v147, %v212
  %v216 = vadd.f32 %v148, %v212
  %v217 = vadd.f32 %v149, %v212
  %v218 = vadd.f32 %v150, %v212
  %v219 = vadd.f32 %v151, %v212
  %v220 = vadd.f32 %v152, %v212
  %v221 = vadd.f32 %v153, %v212
  %v222 = vadd.f32 %v154, %v212
  %v223 = vadd.f32 %v155, %v212
  %v224 = vadd.f32 %v156, %v212
  %v225 = vadd.f32 %v157, %v212
  %v226 = vadd.f32 %v158, %v212
  %v227 = vadd.f32 %v159, %v212
  %v228 = vadd.f32 %v160, %v212
  %v229 = vadd.f32 %v161, %v212
  %v230 = vadd.f32 %v162, %v212
  %v231 = vadd.f32 %v163, %v212
  %v232 = vadd.f32 %v164, %v212
  %v233 = vadd.f32 %v165, %v212
  %v234 = vadd.f32 %v166, %v212
  %v235 = vadd.f32 %v167, %v212
  %v236 = vadd.f32 %v168, %v212
  %v237 = vadd.f32 %v169, %v212
  %v238 = vadd.f32 %v170, %v212
  %v239 = vadd.f32 %v171, %v212
  %v240 = vadd.f32 %v172, %v212
  %v241 = vadd.f32 %v173, %v212
  %v242 = vadd.f32 %v174, %v212
  %v243 = vadd.f32 %v175, %v212
  %v244 = vadd.f32 %v176, %v212
  %v245 = vadd.f32 %v177, %v212
  %v246 = vadd.f32 %v178, %v212
  %v247 = vadd.f32 %v179, %v212
  %v248 = vadd.f32 %v180, %v212
  %v249 = vadd.f32 %v181, %v212
  %v250 = vadd.f32 %v182, %v212
  %v251 = vadd.f32 %v183, %v212
  %v252 = vadd.f32 %v184, %v212
  %v253 = vadd.f32 %v185, %v212
  %v254 = vadd.f32 %v186, %v212
  %v255 = vadd.f32 %v187, %v212
  %v256 = vadd.f32 %v188, %v212
  %v257 = vadd.f32 %v189, %v212
  %v258 = vadd.f32 %v190, %v212
  %v259 = vadd.f32 %v191, %v212
  %v260 = vadd.f32 %v192, %v212
  %v261 = vadd.f32 %v193, %v212
  %v262 = vadd.f32 %v194, %v212
  %v263 = vadd.f32 %v195, %v212
  %v264 = vadd.f32 %v196, %v212
  %v265 = vadd.f32 %v197, %v212
  %v266 = vadd.f32 %v198, %v212
  %v267 = vadd.f32 %v199, %v212
  %v268 = vadd.f32 %v200, %v212
  %v269 = vadd.f32 %v201, %v212
  %v270 = vadd.f32 %v202, %v212
  %v271 = vadd.f32 %v203, %v212
  %v272 = vadd.f32 %v204, %v212
  %v273 = vadd.f32 %v205, %v212
  %v274 = vadd.f32 %v206, %v212
  %v275 = vadd.f32 %v207, %v212
  %v276 = vadd.f32 %v208, %v212
  %v277 = vadd.f32 %v209, %v212
  %278 = vst [vmem:[%s3] sm:$0xff] %v214
  %279 = vst [vmem:[%s3 + $0x8] sm:$0xff] %v215
  %280 = vst [vmem:[%s3 + $0x10] sm:$0xff] %v216
  %281 = vst [vmem:[%s3 + $0x18] sm:$0xff] %v217
  %282 = vst [vmem:[%s3 + $0x20] sm:$0xff] %v218
  %283 = vst [vmem:[%s3 + $0x28] sm:$0xff] %v219
  %284 = vst [vmem:[%s3 + $0x30] sm:$0xff] %v220
  %285 = vst [vmem:[%s3 + $0x38] sm:$0xff] %v221
  %286 = vst [vmem:[%s3 + $0x40] sm:$0xff] %v222
  %287 = vst [vmem:[%s3 + $0x48] sm:$0xff] %v223
  %288 = vst [vmem:[%s3 + $0x50] sm:$0xff] %v224
  %289 = vst [vmem:[%s3 + $0x58] sm:$0xff] %v225
  %290 = vst [vmem:[%s3 + $0x60] sm:$0xff] %v226
  %291 = vst [vmem:[%s3 + $0x68] sm:$0xff] %v227
  %292 = vst [vmem:[%s3 + $0x70] sm:$0xff] %v228
  %293 = vst [vmem:[%s3 + $0x78] sm:$0xff] %v229
  %294 = vst [vmem:[%s3 + $0x80] sm:$0xff] %v230
  %295 = vst [vmem:[%s3 + $0x88] sm:$0xff] %v231
  %296 = vst [vmem:[%s3 + $0x90] sm:$0xff] %v232
  %297 = vst [vmem:[%s3 + $0x98] sm:$0xff] %v233
  %298 = vst [vmem:[%s3 + $0xa0] sm:$0xff] %v234
  %299 = vst [vmem:[%s3 + $0xa8] sm:$0xff] %v235
  %300 = vst [vmem:[%s3 + $0xb0] sm:$0xff] %v236
  %301 = vst [vmem:[%s3 + $0xb8] sm:$0xff] %v237
  %302 = vst [vmem:[%s3 + $0xc0] sm:$0xff] %v238
  %303 = vst [vmem:[%s3 + $0xc8] sm:$0xff] %v239
  %304 = vst [vmem:[%s3 + $0xd0] sm:$0xff] %v240
  %305 = vst [vmem:[%s3 + $0xd8] sm:$0xff] %v241
  %306 = vst [vmem:[%s3 + $0xe0] sm:$0xff] %v242
  %307 = vst [vmem:[%s3 + $0xe8] sm:$0xff] %v243
  %308 = vst [vmem:[%s3 + $0xf0] sm:$0xff] %v244
  %309 = vst [vmem:[%s3 + $0xf8] sm:$0xff] %v245
  %310 = vst [vmem:[%s3 + $0x100] sm:$0xff] %v246
  %311 = vst [vmem:[%s3 + $0x108] sm:$0xff] %v247
  %312 = vst [vmem:[%s3 + $0x110] sm:$0xff] %v248
  %313 = vst [vmem:[%s3 + $0x118] sm:$0xff] %v249
  %314 = vst [vmem:[%s3 + $0x120] sm:$0xff] %v250
  %315 = vst [vmem:[%s3 + $0x128] sm:$0xff] %v251
  %316 = vst [vmem:[%s3 + $0x130] sm:$0xff] %v252
  %317 = vst [vmem:[%s3 + $0x138] sm:$0xff] %v253
  %318 = vst [vmem:[%s3 + $0x140] sm:$0xff] %v254
  %319 = vst [vmem:[%s3 + $0x148] sm:$0xff] %v255
  %320 = vst [vmem:[%s3 + $0x150] sm:$0xff] %v256
  %321 = vst [vmem:[%s3 + $0x158] sm:$0xff] %v257
  %322 = vst [vmem:[%s3 + $0x160] sm:$0xff] %v258
  %323 = vst [vmem:[%s3 + $0x168] sm:$0xff] %v259
  %324 = vst [vmem:[%s3 + $0x170] sm:$0xff] %v260
  %325 = vst [vmem:[%s3 + $0x178] sm:$0xff] %v261
  %326 = vst [vmem:[%s3 + $0x180] sm:$0xff] %v262
  %327 = vst [vmem:[%s3 + $0x188] sm:$0xff] %v263
  %328 = vst [vmem:[%s3 + $0x190] sm:$0xff] %v264
  %329 = vst [vmem:[%s3 + $0x198] sm:$0xff] %v265
  %330 = vst [vmem:[%s3 + $0x1a0] sm:$0xff] %v266
  %331 = vst [vmem:[%s3 + $0x1a8] sm:$0xff] %v267
  %332 = vst [vmem:[%s3 + $0x1b0] sm:$0xff] %v268
  %333 = vst [vmem:[%s3 + $0x1b8] sm:$0xff] %v269
  %334 = vst [vmem:[%s3 + $0x1c0] sm:$0xff] %v270
  %335 = vst [vmem:[%s3 + $0x1c8] sm:$0xff] %v271
  %336 = vst [vmem:[%s3 + $0x1d0] sm:$0xff] %v272
  %337 = vst [vmem:[%s3 + $0x1d8] sm:$0xff] %v273
  %338 = vst [vmem:[%s3 + $0x1e0] sm:$0xff] %v274
  %339 = vst [vmem:[%s3 + $0x1e8] sm:$0xff] %v275
  %340 = vst [vmem:[%s3 + $0x1f0] sm:$0xff] %v276
  %341 = vst [vmem:[%s3 + $0x1f8] sm:$0xff] %v277
  // Predicated region
  $region14: #{feature_extractor.5} parent=0 // pred_check
    _
  $region15: #{feature_extractor.5} parent=0 // pred_check_branch
    %343 = sbr.rel (0) target = $region17
  $region16: #{feature_extractor.5} parent=0 // pred_region
    _
  $region17: #{feature_extractor.5} parent=0 // pred_fallthru
    _
  // Predicated region
  $region18: #{feature_extractor.5} parent=0 // pred_check
    _
  $region19: #{feature_extractor.5} parent=0 // pred_check_branch
    %345 = sbr.rel (0) target = $region21
  $region20: #{feature_extractor.5} parent=0 // pred_region
    _
  $region21: #{feature_extractor.5} parent=0 // pred_fallthru
    _

// kernel: feature_extractor.3
$region0: #{feature_extractor.3}
  #allocation0 [shape = 'u32[]', space=smem, size = 0x4, offset = 0x4, fixed_abs, tag = 'smem constant byte address 0x4 - core index']
  #allocation1 [shape = 'u32[72,128]{1,0:T(1,128)}', space=vmem, size = 0x9000, scoped, tag = 'internal scratch']
  %s0 = inlined_call_operand.vmem [shape: bf16[2,18,18,3], index: 0, kind: input, shape index: {}]
  %s1 = inlined_call_operand.vmem [shape: bf16[27,128], index: 1, kind: input, shape index: {}]
  %s2 = inlined_call_operand.vmem [shape: f32[1,128], index: 2, kind: input, shape index: {}]
  %s3 = inlined_call_operand.vmem [shape: bf16[2,256,128], index: 3, kind: output, shape index: {0}]
  %s4 = inlined_call_operand.vmem [shape: f32[2,2,2,128], index: 4, kind: output, shape index: {1}]
  %5 = xla_tuple %s3, %s4
  %s6 = sld [smem:[#allocation0]]
  $region53: #{feature_extractor.3} parent=0
    _
  %s8 = ssub.s32 1, %s6
  %s9 = scalar_select 0, %s8, %s6
  loop: start=0, step=1, limit=6
  $region2: #{feature_extractor.3} parent=0 // loop_pre_header
    _
  $region3: #{feature_extractor.3} parent=0 // loop_header
    %s11 = sphi 0, %s15
    %p12 = scmp.ge.s32.totalorder %s11, 6
    %s18 = sphi 0, %s30
    %s19 = sphi 0, %s26
    %s20 = sphi 0, %s18
    %s21 = sphi 0, %s19
    %s22 = sphi 0, %s20
    %s23 = sphi 0, %s21
    %s33 = sphi 0, %s35
    %s36 = sphi 0, %s33
    %s37 = sphi 0, %s36
    %s53 = sphi 0, %s37
    %s57 = sphi 0, %s57
    %s59 = sphi 0, %s57
    %s60 = sphi 0, %s59
    %s74 = sphi 0, %s60
    %s78 = sphi 0, %s78
    %s80 = sphi 0, %s78
    %s81 = sphi 0, %s80
    %s95 = sphi 0, %s81
    %s103 = sphi 0, %s105
    %s106 = sphi 0, %s103
    %s107 = sphi 0, %s106
    %s123 = sphi 0, %s107
    %s131 = sphi 0, %s133
    %s134 = sphi 0, %s131
    %s135 = sphi 0, %s134
    %s151 = sphi 0, %s135
  $region4: #{feature_extractor.3} parent=0 // loop_header_branch
    %14 = sbr.rel (%p12) target = $region8
  $region5: #{feature_extractor.3} parent=0 // loop_body
    %s16 = ssub.s32 %s11, 1
    %s17 = ssub.s32 %s11, 2
    %s24 = sadd.s32 1, %s19
    %p25 = scmp.ge.s32.totalorder %s24, 2
    %s26 = scalar_select %p25, 0, %s24
    %s27 = sadd.s32 1, %s18
    %s28 = scalar_select %p25, %s27, %s18
    %p29 = scmp.ge.s32.totalorder %s28, 2
    %s30 = scalar_select %p29, 0, %s28
    %s31 = ssub.s32 %s18, %s30
    %p32 = scmp.eq.s32.totalorder %s31, 0
    %s34 = sadd.s32 %s33, 1
    %s35 = scalar_select %p32, %s33, %s34
    %p38 = pneg %p32
    %p39 = scmp.eq.s32.totalorder %s11, 3
    %p40 = por %p38, %p39
    %p41 = scmp.ne.s32.totalorder %s33, %s36
    %p42 = scmp.eq.s32.totalorder %s11, 0
    %p43 = por %p41, %p42
    %p44 = scmp.ne.s32.totalorder %s33, %s36
    %p45 = scmp.eq.s32.totalorder %s16, 3
    %p46 = por %p44, %p45
    %p47 = scmp.ne.s32.totalorder %s36, %s37
    %p48 = scmp.eq.s32.totalorder %s16, 0
    %p49 = por %p47, %p48
    %p50 = scmp.ne.s32.totalorder %s36, %s37
    %p51 = scmp.eq.s32.totalorder %s17, 3
    %p52 = por %p50, %p51
    %p54 = scmp.ne.s32.totalorder %s37, %s53
    %p55 = scmp.eq.s32.totalorder %s17, 0
    %p56 = por %p54, %p55
    %s58 = sadd.s32 %s57, 1
    %p61 = scmp.eq.s32.totalorder %s11, 3
    %p62 = scmp.ne.s32.totalorder %s57, %s59
    %p63 = scmp.eq.s32.totalorder %s11, 0
    %p64 = por %p62, %p63
    %p65 = scmp.ne.s32.totalorder %s57, %s59
    %p66 = scmp.eq.s32.totalorder %s16, 3
    %p67 = por %p65, %p66
    %p68 = scmp.ne.s32.totalorder %s59, %s60
    %p69 = scmp.eq.s32.totalorder %s16, 0
    %p70 = por %p68, %p69
    %p71 = scmp.ne.s32.totalorder %s59, %s60
    %p72 = scmp.eq.s32.totalorder %s17, 3
    %p73 = por %p71, %p72
    %p75 = scmp.ne.s32.totalorder %s60, %s74
    %p76 = scmp.eq.s32.totalorder %s17, 0
    %p77 = por %p75, %p76
    %s79 = sadd.s32 %s78, 1
    %p82 = scmp.eq.s32.totalorder %s11, 3
    %p83 = scmp.ne.s32.totalorder %s78, %s80
    %p84 = scmp.eq.s32.totalorder %s11, 0
    %p85 = por %p83, %p84
    %p86 = scmp.ne.s32.totalorder %s78, %s80
    %p87 = scmp.eq.s32.totalorder %s16, 3
    %p88 = por %p86, %p87
    %p89 = scmp.ne.s32.totalorder %s80, %s81
    %p90 = scmp.eq.s32.totalorder %s16, 0
    %p91 = por %p89, %p90
    %p92 = scmp.ne.s32.totalorder %s80, %s81
    %p93 = scmp.eq.s32.totalorder %s17, 3
    %p94 = por %p92, %p93
    %p96 = scmp.ne.s32.totalorder %s81, %s95
    %p97 = scmp.eq.s32.totalorder %s17, 0
    %p98 = por %p96, %p97
    %s99 = ssub.s32 %s18, %s30
    %s100 = ssub.s32 %s19, %s26
    %s101 = sor.u32 %s99, %s100
    %p102 = scmp.eq.s32.totalorder %s101, 0
    %s104 = sadd.s32 %s103, 1
    %s105 = scalar_select %p102, %s103, %s104
    %p108 = pneg %p102
    %p109 = scmp.eq.s32.totalorder %s11, 3
    %p110 = por %p108, %p109
    %p111 = scmp.ne.s32.totalorder %s103, %s106
    %p112 = scmp.eq.s32.totalorder %s11, 0
    %p113 = por %p111, %p112
    %p114 = scmp.ne.s32.totalorder %s103, %s106
    %p115 = scmp.eq.s32.totalorder %s16, 3
    %p116 = por %p114, %p115
    %p117 = scmp.ne.s32.totalorder %s106, %s107
    %p118 = scmp.eq.s32.totalorder %s16, 0
    %p119 = por %p117, %p118
    %p120 = scmp.ne.s32.totalorder %s106, %s107
    %p121 = scmp.eq.s32.totalorder %s17, 3
    %p122 = por %p120, %p121
    %p124 = scmp.ne.s32.totalorder %s107, %s123
    %p125 = scmp.eq.s32.totalorder %s17, 0
    %p126 = por %p124, %p125
    %s127 = ssub.s32 %s18, %s30
    %s128 = ssub.s32 %s19, %s26
    %s129 = sor.u32 %s127, %s128
    %p130 = scmp.eq.s32.totalorder %s129, 0
    %s132 = sadd.s32 %s131, 1
    %s133 = scalar_select %p130, %s131, %s132
    %p136 = pneg %p130
    %p137 = scmp.eq.s32.totalorder %s11, 3
    %p138 = por %p136, %p137
    %p139 = scmp.ne.s32.totalorder %s131, %s134
    %p140 = scmp.eq.s32.totalorder %s11, 0
    %p141 = por %p139, %p140
    %p142 = scmp.ne.s32.totalorder %s131, %s134
    %p143 = scmp.eq.s32.totalorder %s16, 3
    %p144 = por %p142, %p143
    %p145 = scmp.ne.s32.totalorder %s134, %s135
    %p146 = scmp.eq.s32.totalorder %s16, 0
    %p147 = por %p145, %p146
    %p148 = scmp.ne.s32.totalorder %s134, %s135
    %p149 = scmp.eq.s32.totalorder %s17, 3
    %p150 = por %p148, %p149
    %p152 = scmp.ne.s32.totalorder %s135, %s151
    %p153 = scmp.eq.s32.totalorder %s17, 0
    %p154 = por %p152, %p153
    %p155 = scmp.le.s32.totalorder 1, %s11
    %p156 = scmp.lt.s32.totalorder %s11, 5
    %p157 = pnand %p155, %p156
    %p158 = pneg %p157
    // Predicated region
    $region9: #{feature_extractor.3} parent=5 // pred_check
      _
    $region10: #{feature_extractor.3} parent=5 // pred_check_branch
      %160 = sbr.rel (%p157) target = $region12
    $region11: #{feature_extractor.3} parent=5 // pred_region
      %s161 = ssub.s32 %s11, 1
      // Predicated region
      $region13: #{feature_extractor.3} parent=11 // pred_check
        %p162 = pneg %p70
      $region14: #{feature_extractor.3} parent=11 // pred_check_branch
        %164 = sbr.rel (%p162) target = $region16
      $region15: #{feature_extractor.3} parent=11 // pred_region
        _
      $region16: #{feature_extractor.3} parent=11 // pred_fallthru
        _
      // Predicated region
      $region17: #{feature_extractor.3} parent=11 // pred_check
        %p165 = pneg %p91
      $region18: #{feature_extractor.3} parent=11 // pred_check_branch
        %167 = sbr.rel (%p165) target = $region20
      $region19: #{feature_extractor.3} parent=11 // pred_region
        _
      $region20: #{feature_extractor.3} parent=11 // pred_fallthru
        _
    $region12: #{feature_extractor.3} parent=5 // pred_fallthru
      _
    %p168 = scmp.lt.s32.totalorder %s11, 4
    // Predicated region
    $region21: #{feature_extractor.3} parent=5 // pred_check
      %p169 = pneg %p168
    $region22: #{feature_extractor.3} parent=5 // pred_check_branch
      %171 = sbr.rel (%p169) target = $region24
    $region23: #{feature_extractor.3} parent=5 // pred_region
      // Predicated region
      $region25: #{feature_extractor.3} parent=23 // pred_check
        %p172 = pneg %p43
      $region26: #{feature_extractor.3} parent=23 // pred_check_branch
        %174 = sbr.rel (%p172) target = $region28
      $region27: #{feature_extractor.3} parent=23 // pred_region
        %p175 = scmp.lt.s32.totalorder %s18, 1
        %s176 = scalar_select %p175, %s18, 1
        %s177 = smul.addr %s176, 54
        %s178 = smul.addr %s177, 4
        %s179 = scalar_lea.vmem %s0, %s178
      $region28: #{feature_extractor.3} parent=23 // pred_fallthru
        _
    $region24: #{feature_extractor.3} parent=5 // pred_fallthru
      _
    %p180 = scmp.le.s32.totalorder 1, %s11
    %p181 = scmp.lt.s32.totalorder %s11, 5
    %p182 = pnand %p180, %p181
    %p183 = pneg %p182
    // Predicated region
    $region29: #{feature_extractor.3} parent=5 // pred_check
      _
    $region30: #{feature_extractor.3} parent=5 // pred_check_branch
      %185 = sbr.rel (%p182) target = $region32
    $region31: #{feature_extractor.3} parent=5 // pred_region
      %s186 = ssub.s32 %s11, 1
      %p187 = scmp.lt.s32.totalorder %s20, 1
      %s188 = scalar_select %p187, %s20, 1
      %s189 = smul.addr %s188, 54
      %s190 = smul.addr %s189, 4
      %s191 = scalar_lea.vmem %s0, %s190
      %p192 = pneg %p49
      %p193 = pneg %p46
      %p194 = pneg %p70
      %p195 = pneg %p67
      %p196 = pneg %p91
      %p197 = pneg %p88
      %p198 = pneg %p119
      %p199 = pneg %p116
      %s200 = smul.u32 16, %s21
      %p201 = scmp.lt.s32.totalorder %s20, 1
      %s202 = scalar_select %p201, %s20, 1
      %p203 = scmp.lt.s32.totalorder %s200, 31
      %s204 = scalar_select %p203, %s200, 31
      %s205 = smul.addr %s202, 32
      %s206 = sadd.s32 %s204, %s205
      %s207 = smul.addr %s206, 4
      %s208 = scalar_lea.vmem %s3, %s207
      %p209 = pneg %p147
      %p210 = pneg %p144
      %p211 = scmp.lt.s32.totalorder %s20, 1
      %s212 = scalar_select %p211, %s20, 1
      %p213 = scmp.lt.s32.totalorder %s21, 1
      %s214 = scalar_select %p213, %s21, 1
      %s215 = smul.addr %s212, 2
      %s216 = sadd.s32 %s214, %s215
      %s217 = smul.addr %s216, 2
      %s218 = scalar_lea.vmem %s4, %s217
      %p219 = scmp.lt.s32.totalorder %s20, 1
      %s220 = scalar_select %p219, %s20, 1
      %s221 = smul.addr %s220, 54
      %s222 = smul.addr %s221, 4
      %s223 = scalar_lea.vmem %s0, %s222
      %s224 = smul.u32 16, %s21
      %p225 = scmp.lt.s32.totalorder %s20, 1
      %s226 = scalar_select %p225, %s20, 1
      %p227 = scmp.lt.s32.totalorder %s224, 31
      %s228 = scalar_select %p227, %s224, 31
      %s229 = smul.addr %s226, 32
      %s230 = sadd.s32 %s228, %s229
      %s231 = smul.addr %s230, 4
      %s232 = scalar_lea.vmem %s3, %s231
      %s233 = smul.u32 16, %s21
      %p234 = scmp.lt.s32.totalorder %s20, 1
      %s235 = scalar_select %p234, %s20, 1
      %p236 = scmp.lt.s32.totalorder %s21, 1
      %s237 = scalar_select %p236, %s21, 1
      %s238 = smul.addr %s235, 2
      %s239 = sadd.s32 %s237, %s238
      %s240 = smul.addr %s239, 2
      %s241 = scalar_lea.vmem %s4, %s240
      %s243 = smul.u32 %s21, 8
      %s244 = smul.u32 %s243, 3
      %s245 = smul.addr %s244, 4
      %s246 = scalar_lea.vmem %s223, %s245
      %v247 = vld [vmem:[%s246] sm:$0xf]
      %v248 = vld [vmem:[%s246 + $0x4] sm:$0xf]
      %v249 = vld [vmem:[%s246 + $0x8] sm:$0x1]
      %v250 = vld [vmem:[%s246 + $0xc] sm:$0xf]
      %v251 = vld [vmem:[%s246 + $0x10] sm:$0xf]
      %v252 = vld [vmem:[%s246 + $0x14] sm:$0x1]
      %v253 = vld [vmem:[%s246 + $0x18] sm:$0xf]
      %v254 = vld [vmem:[%s246 + $0x1c] sm:$0xf]
      %v255 = vld [vmem:[%s246 + $0x20] sm:$0x1]
      %v256 = vld [vmem:[%s246 + $0x24] sm:$0xf]
      %v257 = vld [vmem:[%s246 + $0x28] sm:$0xf]
      %v258 = vld [vmem:[%s246 + $0x2c] sm:$0x1]
      %v259 = vld [vmem:[%s246 + $0x30] sm:$0xf]
      %v260 = vld [vmem:[%s246 + $0x34] sm:$0xf]
      %v261 = vld [vmem:[%s246 + $0x38] sm:$0x1]
      %v262 = vld [vmem:[%s246 + $0x3c] sm:$0xf]
      %v263 = vld [vmem:[%s246 + $0x40] sm:$0xf]
      %v264 = vld [vmem:[%s246 + $0x44] sm:$0x1]
      %v265 = vld [vmem:[%s246 + $0x48] sm:$0xf]
      %v266 = vld [vmem:[%s246 + $0x4c] sm:$0xf]
      %v267 = vld [vmem:[%s246 + $0x50] sm:$0x1]
      %v268 = vld [vmem:[%s246 + $0x54] sm:$0xf]
      %v269 = vld [vmem:[%s246 + $0x58] sm:$0xf]
      %v270 = vld [vmem:[%s246 + $0x5c] sm:$0x1]
      %v271 = vld [vmem:[%s246 + $0x60] sm:$0xf]
      %v272 = vld [vmem:[%s246 + $0x64] sm:$0xf]
      %v273 = vld [vmem:[%s246 + $0x68] sm:$0x1]
      %v274 = vld [vmem:[%s246 + $0x6c] sm:$0xf]
      %v275 = vld [vmem:[%s246 + $0x70] sm:$0xf]
      %v276 = vld [vmem:[%s246 + $0x74] sm:$0x1]
      %vm277 = vsmask.f32 3328
      %vm278 = vsmask.f32 7440
      %vm279 = vmor %vm277, %vm278
      %v281 = vshrl.u32 %v247, 16
      %v283 = vrot.slane %v281, 4
      %v284 = vshll.u32 %v247, 16
      %v286 = vrot.slane %v284, 5
      %v287 = vor.u32 %v283, %v286
      %v288 = vrot.slane %v287, 4
      %v290 = vshll.u32 %v248, 16
      %v292 = vrot.slane %v290, 5
      %v293 = vsel %vm279, %v288, %v292
      %v294 = vshrl.u32 %v248, 16
      %v296 = vrot.slane %v294, 4
      %v297 = vor.u32 %v296, %v292
      %v298 = vrot.slane %v297, 4
      %v300 = vshll.u32 %v249, 16
      %v302 = vrot.slane %v300, 5
      %v303 = vsel %vm279, %v298, %v302
      %v305 = vshrl.u32 %v250, 16
      %v307 = vrot.slane %v305, 4
      %v308 = vshll.u32 %v250, 16
      %v310 = vrot.slane %v308, 5
      %v311 = vor.u32 %v307, %v310
      %v312 = vrot.slane %v311, 4
      %v314 = vshll.u32 %v251, 16
      %v316 = vrot.slane %v314, 5
      %v317 = vsel %vm279, %v312, %v316
      %v318 = vshrl.u32 %v251, 16
      %v320 = vrot.slane %v318, 4
      %v321 = vor.u32 %v320, %v316
      %v322 = vrot.slane %v321, 4
      %v324 = vshll.u32 %v252, 16
      %v326 = vrot.slane %v324, 5
      %v327 = vsel %vm279, %v322, %v326
      %v329 = vshrl.u32 %v253, 16
      %v331 = vrot.slane %v329, 4
      %v332 = vshll.u32 %v253, 16
      %v334 = vrot.slane %v332, 5
      %v335 = vor.u32 %v331, %v334
      %v336 = vrot.slane %v335, 4
      %v338 = vshll.u32 %v254, 16
      %v340 = vrot.slane %v338, 5
      %v341 = vsel %vm279, %v336, %v340
      %v342 = vshrl.u32 %v254, 16
      %v344 = vrot.slane %v342, 4
      %v345 = vor.u32 %v344, %v340
      %v346 = vrot.slane %v345, 4
      %v348 = vshll.u32 %v255, 16
      %v350 = vrot.slane %v348, 5
      %v351 = vsel %vm279, %v346, %v350
      %v353 = vshrl.u32 %v256, 16
      %v355 = vrot.slane %v353, 4
      %v356 = vshll.u32 %v256, 16
      %v358 = vrot.slane %v356, 5
      %v359 = vor.u32 %v355, %v358
      %v360 = vrot.slane %v359, 4
      %v362 = vshll.u32 %v257, 16
      %v364 = vrot.slane %v362, 5
      %v365 = vsel %vm279, %v360, %v364
      %v366 = vshrl.u32 %v257, 16
      %v368 = vrot.slane %v366, 4
      %v369 = vor.u32 %v368, %v364
      %v370 = vrot.slane %v369, 4
      %v372 = vshll.u32 %v258, 16
      %v374 = vrot.slane %v372, 5
      %v375 = vsel %vm279, %v370, %v374
      %v377 = vshrl.u32 %v259, 16
      %v379 = vrot.slane %v377, 4
      %v380 = vshll.u32 %v259, 16
      %v382 = vrot.slane %v380, 5
      %v383 = vor.u32 %v379, %v382
      %v384 = vrot.slane %v383, 4
      %v386 = vshll.u32 %v260, 16
      %v388 = vrot.slane %v386, 5
      %v389 = vsel %vm279, %v384, %v388
      %v390 = vshrl.u32 %v260, 16
      %v392 = vrot.slane %v390, 4
      %v393 = vor.u32 %v392, %v388
      %v394 = vrot.slane %v393, 4
      %v396 = vshll.u32 %v261, 16
      %v398 = vrot.slane %v396, 5
      %v399 = vsel %vm279, %v394, %v398
      %v401 = vshrl.u32 %v262, 16
      %v403 = vrot.slane %v401, 4
      %v404 = vshll.u32 %v262, 16
      %v406 = vrot.slane %v404, 5
      %v407 = vor.u32 %v403, %v406
      %v408 = vrot.slane %v407, 4
      %v410 = vshll.u32 %v263, 16
      %v412 = vrot.slane %v410, 5
      %v413 = vsel %vm279, %v408, %v412
      %v414 = vshrl.u32 %v263, 16
      %v416 = vrot.slane %v414, 4
      %v417 = vor.u32 %v416, %v412
      %v418 = vrot.slane %v417, 4
      %v420 = vshll.u32 %v264, 16
      %v422 = vrot.slane %v420, 5
      %v423 = vsel %vm279, %v418, %v422
      %v425 = vshrl.u32 %v265, 16
      %v427 = vrot.slane %v425, 4
      %v428 = vshll.u32 %v265, 16
      %v430 = vrot.slane %v428, 5
      %v431 = vor.u32 %v427, %v430
      %v432 = vrot.slane %v431, 4
      %v434 = vshll.u32 %v266, 16
      %v436 = vrot.slane %v434, 5
      %v437 = vsel %vm279, %v432, %v436
      %v438 = vshrl.u32 %v266, 16
      %v440 = vrot.slane %v438, 4
      %v441 = vor.u32 %v440, %v436
      %v442 = vrot.slane %v441, 4
      %v444 = vshll.u32 %v267, 16
      %v446 = vrot.slane %v444, 5
      %v447 = vsel %vm279, %v442, %v446
      %v449 = vshrl.u32 %v268, 16
      %v451 = vrot.slane %v449, 4
      %v452 = vshll.u32 %v268, 16
      %v454 = vrot.slane %v452, 5
      %v455 = vor.u32 %v451, %v454
      %v456 = vrot.slane %v455, 4
      %v458 = vshll.u32 %v269, 16
      %v460 = vrot.slane %v458, 5
      %v461 = vsel %vm279, %v456, %v460
      %v462 = vshrl.u32 %v269, 16
      %v464 = vrot.slane %v462, 4
      %v465 = vor.u32 %v464, %v460
      %v466 = vrot.slane %v465, 4
      %v468 = vshll.u32 %v270, 16
      %v470 = vrot.slane %v468, 5
      %v471 = vsel %vm279, %v466, %v470
      %vm496 = vcmask 1042432
      %vm497 = vcmask 1046532
      %vm498 = vmor %vm496, %vm497
      %v499 = vrot.slane %v247, 5
      %v500 = vrot.slane %v499, 4
      %v501 = vrot.slane %v248, 5
      %v502 = vsel %vm498, %v500, %v501
      %v503 = vrot.slane %v501, 4
      %v504 = vrot.slane %v249, 5
      %v505 = vsel %vm498, %v503, %v504
      %v506 = vrot.slane %v250, 5
      %v507 = vrot.slane %v506, 4
      %v508 = vrot.slane %v251, 5
      %v509 = vsel %vm498, %v507, %v508
      %v510 = vrot.slane %v508, 4
      %v511 = vrot.slane %v252, 5
      %v512 = vsel %vm498, %v510, %v511
      %v513 = vrot.slane %v253, 5
      %v514 = vrot.slane %v513, 4
      %v515 = vrot.slane %v254, 5
      %v516 = vsel %vm498, %v514, %v515
      %v517 = vrot.slane %v515, 4
      %v518 = vrot.slane %v255, 5
      %v519 = vsel %vm498, %v517, %v518
      %v520 = vrot.slane %v256, 5
      %v521 = vrot.slane %v520, 4
      %v522 = vrot.slane %v257, 5
      %v523 = vsel %vm498, %v521, %v522
      %v524 = vrot.slane %v522, 4
      %v525 = vrot.slane %v258, 5
      %v526 = vsel %vm498, %v524, %v525
      %v527 = vrot.slane %v259, 5
      %v528 = vrot.slane %v527, 4
      %v529 = vrot.slane %v260, 5
      %v530 = vsel %vm498, %v528, %v529
      %v531 = vrot.slane %v529, 4
      %v532 = vrot.slane %v261, 5
      %v533 = vsel %vm498, %v531, %v532
      %v534 = vrot.slane %v262, 5
      %v535 = vrot.slane %v534, 4
      %v536 = vrot.slane %v263, 5
      %v537 = vsel %vm498, %v535, %v536
      %v538 = vrot.slane %v536, 4
      %v539 = vrot.slane %v264, 5
      %v540 = vsel %vm498, %v538, %v539
      %v541 = vrot.slane %v265, 5
      %v542 = vrot.slane %v541, 4
      %v543 = vrot.slane %v266, 5
      %v544 = vsel %vm498, %v542, %v543
      %v545 = vrot.slane %v543, 4
      %v546 = vrot.slane %v267, 5
      %v547 = vsel %vm498, %v545, %v546
      %v548 = vrot.slane %v268, 5
      %v549 = vrot.slane %v548, 4
      %v550 = vrot.slane %v269, 5
      %v551 = vsel %vm498, %v549, %v550
      %v552 = vrot.slane %v550, 4
      %v553 = vrot.slane %v270, 5
      %v554 = vsel %vm498, %v552, %v553
      %v556 = vshrl.u32 %v271, 16
      %v558 = vrot.slane %v556, 4
      %v559 = vshll.u32 %v271, 16
      %v561 = vrot.slane %v559, 5
      %v562 = vor.u32 %v558, %v561
      %v563 = vrot.slane %v562, 4
      %v565 = vshll.u32 %v272, 16
      %v567 = vrot.slane %v565, 5
      %v568 = vsel %vm279, %v563, %v567
      %v569 = vshrl.u32 %v272, 16
      %v571 = vrot.slane %v569, 4
      %v572 = vor.u32 %v571, %v567
      %v573 = vrot.slane %v572, 4
      %v575 = vshll.u32 %v273, 16
      %v577 = vrot.slane %v575, 5
      %v578 = vsel %vm279, %v573, %v577
      %v582 = vrot.slane %v271, 5
      %v583 = vrot.slane %v582, 4
      %v584 = vrot.slane %v272, 5
      %v585 = vsel %vm498, %v583, %v584
      %v586 = vrot.slane %v584, 4
      %v587 = vrot.slane %v273, 5
      %v588 = vsel %vm498, %v586, %v587
      %v590 = vshrl.u32 %v274, 16
      %v592 = vrot.slane %v590, 4
      %v593 = vshll.u32 %v274, 16
      %v595 = vrot.slane %v593, 5
      %v596 = vor.u32 %v592, %v595
      %v597 = vrot.slane %v596, 4
      %v599 = vshll.u32 %v275, 16
      %v601 = vrot.slane %v599, 5
      %v602 = vsel %vm279, %v597, %v601
      %v603 = vshrl.u32 %v275, 16
      %v605 = vrot.slane %v603, 4
      %v606 = vor.u32 %v605, %v601
      %v607 = vrot.slane %v606, 4
      %v609 = vshll.u32 %v276, 16
      %v611 = vrot.slane %v609, 5
      %v612 = vsel %vm279, %v607, %v611
      %v616 = vrot.slane %v274, 5
      %v617 = vrot.slane %v616, 4
      %v618 = vrot.slane %v275, 5
      %v619 = vsel %vm498, %v617, %v618
      %v620 = vrot.slane %v618, 4
      %v621 = vrot.slane %v276, 5
      %v622 = vsel %vm498, %v620, %v621
      %v623 = vunpack.c.l.b16 %v247
      %v624 = vunpack.c.l.b16 %v248
      %v625 = vunpack.c.l.b16 %v250
      %v626 = vunpack.c.l.b16 %v251
      %v627 = vunpack.c.l.b16 %v253
      %v628 = vunpack.c.l.b16 %v254
      %v629 = vunpack.c.l.b16 %v256
      %v630 = vunpack.c.l.b16 %v257
      %v631 = vunpack.c.l.b16 %v259
      %v632 = vunpack.c.l.b16 %v260
      %v633 = vunpack.c.l.b16 %v262
      %v634 = vunpack.c.l.b16 %v263
      %v635 = vunpack.c.l.b16 %v265
      %v636 = vunpack.c.l.b16 %v266
      %v637 = vunpack.c.l.b16 %v268
      %v638 = vunpack.c.l.b16 %v269
      %v639 = vpack.c.b16 %v624, %v623
      %v640 = vpack.c.b16 %v626, %v625
      %v641 = vpack.c.b16 %v628, %v627
      %v642 = vpack.c.b16 %v630, %v629
      %v643 = vpack.c.b16 %v632, %v631
      %v644 = vpack.c.b16 %v634, %v633
      %v645 = vpack.c.b16 %v636, %v635
      %v646 = vpack.c.b16 %v638, %v637
      %v647 = vunpack.c.l.b16 %v293
      %v648 = vunpack.c.l.b16 %v303
      %v649 = vunpack.c.l.b16 %v317
      %v650 = vunpack.c.l.b16 %v327
      %v651 = vunpack.c.l.b16 %v341
      %v652 = vunpack.c.l.b16 %v351
      %v653 = vunpack.c.l.b16 %v365
      %v654 = vunpack.c.l.b16 %v375
      %v655 = vunpack.c.l.b16 %v389
      %v656 = vunpack.c.l.b16 %v399
      %v657 = vunpack.c.l.b16 %v413
      %v658 = vunpack.c.l.b16 %v423
      %v659 = vunpack.c.l.b16 %v437
      %v660 = vunpack.c.l.b16 %v447
      %v661 = vunpack.c.l.b16 %v461
      %v662 = vunpack.c.l.b16 %v471
      %v663 = vpack.c.b16 %v648, %v647
      %v664 = vpack.c.b16 %v650, %v649
      %v665 = vpack.c.b16 %v652, %v651
      %v666 = vpack.c.b16 %v654, %v653
      %v667 = vpack.c.b16 %v656, %v655
      %v668 = vpack.c.b16 %v658, %v657
      %v669 = vpack.c.b16 %v660, %v659
      %v670 = vpack.c.b16 %v662, %v661
      %671 = vrot.lane.b32.xlu0 %v663, 3
      %v672 = vpop.permute.xlu0 %671
      %673 = vrot.lane.b32.xlu0 %v664, 3
      %v674 = vpop.permute.xlu0 %673
      %675 = vrot.lane.b32.xlu0 %v665, 3
      %v676 = vpop.permute.xlu0 %675
      %677 = vrot.lane.b32.xlu0 %v666, 3
      %v678 = vpop.permute.xlu0 %677
      %679 = vrot.lane.b32.xlu0 %v667, 3
      %v680 = vpop.permute.xlu0 %679
      %681 = vrot.lane.b32.xlu0 %v668, 3
      %v682 = vpop.permute.xlu0 %681
      %683 = vrot.lane.b32.xlu0 %v669, 3
      %v684 = vpop.permute.xlu0 %683
      %685 = vrot.lane.b32.xlu0 %v670, 3
      %v686 = vpop.permute.xlu0 %685
      %v687 = vunpack.c.l.b16 %v502
      %v688 = vunpack.c.l.b16 %v505
      %v689 = vunpack.c.l.b16 %v509
      %v690 = vunpack.c.l.b16 %v512
      %v691 = vunpack.c.l.b16 %v516
      %v692 = vunpack.c.l.b16 %v519
      %v693 = vunpack.c.l.b16 %v523
      %v694 = vunpack.c.l.b16 %v526
      %v695 = vunpack.c.l.b16 %v530
      %v696 = vunpack.c.l.b16 %v533
      %v697 = vunpack.c.l.b16 %v537
      %v698 = vunpack.c.l.b16 %v540
      %v699 = vunpack.c.l.b16 %v544
      %v700 = vunpack.c.l.b16 %v547
      %v701 = vunpack.c.l.b16 %v551
      %v702 = vunpack.c.l.b16 %v554
      %v703 = vpack.c.b16 %v688, %v687
      %v704 = vpack.c.b16 %v690, %v689
      %v705 = vpack.c.b16 %v692, %v691
      %v706 = vpack.c.b16 %v694, %v693
      %v707 = vpack.c.b16 %v696, %v695
      %v708 = vpack.c.b16 %v698, %v697
      %v709 = vpack.c.b16 %v700, %v699
      %v710 = vpack.c.b16 %v702, %v701
      %711 = vrot.lane.b32.xlu0 %v703, 6
      %v712 = vpop.permute.xlu0 %711
      %713 = vrot.lane.b32.xlu0 %v704, 6
      %v714 = vpop.permute.xlu0 %713
      %715 = vrot.lane.b32.xlu0 %v705, 6
      %v716 = vpop.permute.xlu0 %715
      %717 = vrot.lane.b32.xlu0 %v706, 6
      %v718 = vpop.permute.xlu0 %717
      %719 = vrot.lane.b32.xlu0 %v707, 6
      %v720 = vpop.permute.xlu0 %719
      %721 = vrot.lane.b32.xlu0 %v708, 6
      %v722 = vpop.permute.xlu0 %721
      %723 = vrot.lane.b32.xlu0 %v709, 6
      %v724 = vpop.permute.xlu0 %723
      %725 = vrot.lane.b32.xlu0 %v710, 6
      %v726 = vpop.permute.xlu0 %725
      %v727 = vunpack.c.l.b16 %v271
      %v728 = vunpack.c.l.b16 %v272
      %v729 = vpack.c.b16 %v728, %v727
      %730 = vrot.lane.b32.xlu0 %v640, 9
      %v731 = vpop.permute.xlu0 %730
      %732 = vrot.lane.b32.xlu0 %v641, 9
      %v733 = vpop.permute.xlu0 %732
      %734 = vrot.lane.b32.xlu0 %v642, 9
      %v735 = vpop.permute.xlu0 %734
      %736 = vrot.lane.b32.xlu0 %v643, 9
      %v737 = vpop.permute.xlu0 %736
      %738 = vrot.lane.b32.xlu0 %v644, 9
      %v739 = vpop.permute.xlu0 %738
      %740 = vrot.lane.b32.xlu0 %v645, 9
      %v741 = vpop.permute.xlu0 %740
      %742 = vrot.lane.b32.xlu0 %v646, 9
      %v743 = vpop.permute.xlu0 %742
      %744 = vrot.lane.b32.xlu0 %v729, 9
      %v745 = vpop.permute.xlu0 %744
      %v746 = vunpack.c.l.b16 %v568
      %v747 = vunpack.c.l.b16 %v578
      %v748 = vpack.c.b16 %v747, %v746
      %749 = vrot.lane.b32.xlu0 %v664, 12
      %v750 = vpop.permute.xlu0 %749
      %751 = vrot.lane.b32.xlu0 %v665, 12
      %v752 = vpop.permute.xlu0 %751
      %753 = vrot.lane.b32.xlu0 %v666, 12
      %v754 = vpop.permute.xlu0 %753
      %755 = vrot.lane.b32.xlu0 %v667, 12
      %v756 = vpop.permute.xlu0 %755
      %757 = vrot.lane.b32.xlu0 %v668, 12
      %v758 = vpop.permute.xlu0 %757
      %759 = vrot.lane.b32.xlu0 %v669, 12
      %v760 = vpop.permute.xlu0 %759
      %761 = vrot.lane.b32.xlu0 %v670, 12
      %v762 = vpop.permute.xlu0 %761
      %763 = vrot.lane.b32.xlu0 %v748, 12
      %v764 = vpop.permute.xlu0 %763
      %v765 = vunpack.c.l.b16 %v585
      %v766 = vunpack.c.l.b16 %v588
      %v767 = vpack.c.b16 %v766, %v765
      %768 = vrot.lane.b32.xlu0 %v704, 15
      %v769 = vpop.permute.xlu0 %768
      %770 = vrot.lane.b32.xlu0 %v705, 15
      %v771 = vpop.permute.xlu0 %770
      %772 = vrot.lane.b32.xlu0 %v706, 15
      %v773 = vpop.permute.xlu0 %772
      %774 = vrot.lane.b32.xlu0 %v707, 15
      %v775 = vpop.permute.xlu0 %774
      %776 = vrot.lane.b32.xlu0 %v708, 15
      %v777 = vpop.permute.xlu0 %776
      %778 = vrot.lane.b32.xlu0 %v709, 15
      %v779 = vpop.permute.xlu0 %778
      %780 = vrot.lane.b32.xlu0 %v710, 15
      %v781 = vpop.permute.xlu0 %780
      %782 = vrot.lane.b32.xlu0 %v767, 15
      %v783 = vpop.permute.xlu0 %782
      %v784 = vunpack.c.l.b16 %v274
      %v785 = vunpack.c.l.b16 %v275
      %v786 = vpack.c.b16 %v785, %v784
      %787 = vrot.lane.b32.xlu0 %v641, 18
      %v788 = vpop.permute.xlu0 %787
      %789 = vrot.lane.b32.xlu0 %v642, 18
      %v790 = vpop.permute.xlu0 %789
      %791 = vrot.lane.b32.xlu0 %v643, 18
      %v792 = vpop.permute.xlu0 %791
      %793 = vrot.lane.b32.xlu0 %v644, 18
      %v794 = vpop.permute.xlu0 %793
      %795 = vrot.lane.b32.xlu0 %v645, 18
      %v796 = vpop.permute.xlu0 %795
      %797 = vrot.lane.b32.xlu0 %v646, 18
      %v798 = vpop.permute.xlu0 %797
      %799 = vrot.lane.b32.xlu0 %v729, 18
      %v800 = vpop.permute.xlu0 %799
      %801 = vrot.lane.b32.xlu0 %v786, 18
      %v802 = vpop.permute.xlu0 %801
      %v803 = vunpack.c.l.b16 %v602
      %v804 = vunpack.c.l.b16 %v612
      %v805 = vpack.c.b16 %v804, %v803
      %806 = vrot.lane.b32.xlu0 %v665, 21
      %v807 = vpop.permute.xlu0 %806
      %808 = vrot.lane.b32.xlu0 %v666, 21
      %v809 = vpop.permute.xlu0 %808
      %810 = vrot.lane.b32.xlu0 %v667, 21
      %v811 = vpop.permute.xlu0 %810
      %812 = vrot.lane.b32.xlu0 %v668, 21
      %v813 = vpop.permute.xlu0 %812
      %814 = vrot.lane.b32.xlu0 %v669, 21
      %v815 = vpop.permute.xlu0 %814
      %816 = vrot.lane.b32.xlu0 %v670, 21
      %v817 = vpop.permute.xlu0 %816
      %818 = vrot.lane.b32.xlu0 %v748, 21
      %v819 = vpop.permute.xlu0 %818
      %820 = vrot.lane.b32.xlu0 %v805, 21
      %v821 = vpop.permute.xlu0 %820
      %v822 = vunpack.c.l.b16 %v619
      %v823 = vunpack.c.l.b16 %v622
      %v824 = vpack.c.b16 %v823, %v822
      %825 = vrot.lane.b32.xlu0 %v705, 24
      %v826 = vpop.permute.xlu0 %825
      %827 = vrot.lane.b32.xlu0 %v706, 24
      %v828 = vpop.permute.xlu0 %827
      %829 = vrot.lane.b32.xlu0 %v707, 24
      %v830 = vpop.permute.xlu0 %829
      %831 = vrot.lane.b32.xlu0 %v708, 24
      %v832 = vpop.permute.xlu0 %831
      %833 = vrot.lane.b32.xlu0 %v709, 24
      %v834 = vpop.permute.xlu0 %833
      %835 = vrot.lane.b32.xlu0 %v710, 24
      %v836 = vpop.permute.xlu0 %835
      %837 = vrot.lane.b32.xlu0 %v767, 24
      %v838 = vpop.permute.xlu0 %837
      %839 = vrot.lane.b32.xlu0 %v824, 24
      %v840 = vpop.permute.xlu0 %839
      %vm841 = vcmask 23552
      %v844 = vsel %vm841, %v639, %v672
      %v847 = vsel %vm841, %v640, %v674
      %v850 = vsel %vm841, %v641, %v676
      %v853 = vsel %vm841, %v642, %v678
      %v856 = vsel %vm841, %v643, %v680
      %v859 = vsel %vm841, %v644, %v682
      %v862 = vsel %vm841, %v645, %v684
      %v865 = vsel %vm841, %v646, %v686
      %vm866 = vcmask 48128
      %v868 = vsel %vm866, %v844, %v712
      %v870 = vsel %vm866, %v847, %v714
      %v872 = vsel %vm866, %v850, %v716
      %v874 = vsel %vm866, %v853, %v718
      %v876 = vsel %vm866, %v856, %v720
      %v878 = vsel %vm866, %v859, %v722
      %v880 = vsel %vm866, %v862, %v724
      %v882 = vsel %vm866, %v865, %v726
      %vm883 = vcmask 72704
      %v885 = vsel %vm883, %v868, %v731
      %v887 = vsel %vm883, %v870, %v733
      %v889 = vsel %vm883, %v872, %v735
      %v891 = vsel %vm883, %v874, %v737
      %v893 = vsel %vm883, %v876, %v739
      %v895 = vsel %vm883, %v878, %v741
      %v897 = vsel %vm883, %v880, %v743
      %v899 = vsel %vm883, %v882, %v745
      %vm900 = vcmask 97280
      %v902 = vsel %vm900, %v885, %v750
      %v904 = vsel %vm900, %v887, %v752
      %v906 = vsel %vm900, %v889, %v754
      %v908 = vsel %vm900, %v891, %v756
      %v910 = vsel %vm900, %v893, %v758
      %v912 = vsel %vm900, %v895, %v760
      %v914 = vsel %vm900, %v897, %v762
      %v916 = vsel %vm900, %v899, %v764
      %vm917 = vcmask 121856
      %v919 = vsel %vm917, %v902, %v769
      %v921 = vsel %vm917, %v904, %v771
      %v923 = vsel %vm917, %v906, %v773
      %v925 = vsel %vm917, %v908, %v775
      %v927 = vsel %vm917, %v910, %v777
      %v929 = vsel %vm917, %v912, %v779
      %v931 = vsel %vm917, %v914, %v781
      %v933 = vsel %vm917, %v916, %v783
      %vm934 = vcmask 146432
      %v936 = vsel %vm934, %v919, %v788
      %v938 = vsel %vm934, %v921, %v790
      %v940 = vsel %vm934, %v923, %v792
      %v942 = vsel %vm934, %v925, %v794
      %v944 = vsel %vm934, %v927, %v796
      %v946 = vsel %vm934, %v929, %v798
      %v948 = vsel %vm934, %v931, %v800
      %v950 = vsel %vm934, %v933, %v802
      %vm951 = vcmask 171008
      %v953 = vsel %vm951, %v936, %v807
      %v955 = vsel %vm951, %v938, %v809
      %v957 = vsel %vm951, %v940, %v811
      %v959 = vsel %vm951, %v942, %v813
      %v961 = vsel %vm951, %v944, %v815
      %v963 = vsel %vm951, %v946, %v817
      %v965 = vsel %vm951, %v948, %v819
      %v967 = vsel %vm951, %v950, %v821
      %vm968 = vcmask 195584
      %v970 = vsel %vm968, %v953, %v826
      %v972 = vsel %vm968, %v955, %v828
      %v974 = vsel %vm968, %v957, %v830
      %v976 = vsel %vm968, %v959, %v832
      %v978 = vsel %vm968, %v961, %v834
      %v980 = vsel %vm968, %v963, %v836
      %v982 = vsel %vm968, %v965, %v838
      %v984 = vsel %vm968, %v967, %v840
      %v985 = vld [vmem:[%s1] sm:$0xf]
      %v986 = vld [vmem:[%s1 + $0x4] sm:$0xf]
      %v987 = vld [vmem:[%s1 + $0x8] sm:$0xf]
      %v988 = vld [vmem:[%s1 + $0xc] sm:$0x3]
      %v989 = vld [vmem:[%s2] sm:$0x1]
      %v991 = vperm.slane %v989, 0
      %v997 = vunpack.c.l.b16 %v985
      %v998 = vunpack.c.l.b16 %v986
      %v999 = vunpack.c.l.b16 %v987
      %v1000 = vunpack.c.l.b16 %v988
      %v1001 = vpack.c.b16 %v998, %v997
      %v1002 = vpack.c.b16 %v1000, %v999
      %vm1004 = vcmask 220160
      %v1005 = vsel %vm1004, %v970, 0
      %v1007 = vsel %vm1004, %v972, 0
      %v1009 = vsel %vm1004, %v974, 0
      %v1011 = vsel %vm1004, %v976, 0
      %v1013 = vsel %vm1004, %v978, 0
      %v1015 = vsel %vm1004, %v980, 0
      %v1017 = vsel %vm1004, %v982, 0
      %v1019 = vsel %vm1004, %v984, 0
      %vm1021 = vcmask 1044480
      %vm1022 = vcmask 1045504
      %v1023 = vsel %vm1021, 4294967295, 65535
      %v1024 = vsel %vm1022, %v1023, 0
      %v1026 = vand.u32 %v1002, %v1024
      %1028 = vmatpush.bf16.msra.mxu0 0
      %1029 = vmatpush.bf16.msra.mxu0 0
      %1030 = vmatpush.bf16.msra.mxu0 0
      %1031 = vmatpush.bf16.msra.mxu0 0
      %1032 = vmatpush.bf16.msra.mxu0 0
      %1033 = vmatpush.bf16.msra.mxu0 0
      %1034 = vmatpush.bf16.msra.mxu0 %v1026
      %1035 = vmatpush.bf16.msra.mxu0 %v1001
      %1036 = vmatmul.bf16.gmra.mxu0 %v1005
      %v1037 = vpop.f32.mrf.mxu0
      %v1038 = vadd.f32 %v991, %v1037
      %v1039 = vpop.f32.mrf.mxu0
      %v1040 = vadd.f32 %v991, %v1039
      %1041 = vmatmul.bf16.gmra.mxu0 %v1007
      %v1042 = vpop.f32.mrf.mxu0
      %v1043 = vadd.f32 %v991, %v1042
      %v1044 = vpop.f32.mrf.mxu0
      %v1045 = vadd.f32 %v991, %v1044
      %1046 = vmatmul.bf16.gmra.mxu0 %v1009
      %v1047 = vpop.f32.mrf.mxu0
      %v1048 = vadd.f32 %v991, %v1047
      %v1049 = vpop.f32.mrf.mxu0
      %v1050 = vadd.f32 %v991, %v1049
      %1051 = vmatmul.bf16.gmra.mxu0 %v1011
      %v1052 = vpop.f32.mrf.mxu0
      %v1053 = vadd.f32 %v991, %v1052
      %v1054 = vpop.f32.mrf.mxu0
      %v1055 = vadd.f32 %v991, %v1054
      %1056 = vmatmul.bf16.gmra.mxu0 %v1013
      %v1057 = vpop.f32.mrf.mxu0
      %v1058 = vadd.f32 %v991, %v1057
      %v1059 = vpop.f32.mrf.mxu0
      %v1060 = vadd.f32 %v991, %v1059
      %1061 = vmatmul.bf16.gmra.mxu0 %v1015
      %v1062 = vpop.f32.mrf.mxu0
      %v1063 = vadd.f32 %v991, %v1062
      %v1064 = vpop.f32.mrf.mxu0
      %v1065 = vadd.f32 %v991, %v1064
      %1066 = vmatmul.bf16.gmra.mxu0 %v1017
      %v1067 = vpop.f32.mrf.mxu0
      %v1068 = vadd.f32 %v991, %v1067
      %v1069 = vpop.f32.mrf.mxu0
      %v1070 = vadd.f32 %v991, %v1069
      %1071 = vmatmul.bf16.gmra.mxu0 %v1019
      %v1072 = vpop.f32.mrf.mxu0
      %v1073 = vadd.f32 %v991, %v1072
      %v1074 = vpop.f32.mrf.mxu0
      %v1075 = vadd.f32 %v991, %v1074
      %1076 = vdwg.mxu0
      %v1077 = vmax.f32 %v1038, 0.0
      %v1078 = vmax.f32 %v1040, 0.0
      %v1079 = vmax.f32 %v1043, 0.0
      %v1080 = vmax.f32 %v1045, 0.0
      %v1081 = vmax.f32 %v1048, 0.0
      %v1082 = vmax.f32 %v1050, 0.0
      %v1083 = vmax.f32 %v1053, 0.0
      %v1084 = vmax.f32 %v1055, 0.0
      %v1085 = vmax.f32 %v1058, 0.0
      %v1086 = vmax.f32 %v1060, 0.0
      %v1087 = vmax.f32 %v1063, 0.0
      %v1088 = vmax.f32 %v1065, 0.0
      %v1089 = vmax.f32 %v1068, 0.0
      %v1090 = vmax.f32 %v1070, 0.0
      %v1091 = vmax.f32 %v1073, 0.0
      %v1092 = vmax.f32 %v1075, 0.0
      %v1093 = vpack.c.bf16 %v1077, %v1077
      %v1094 = vpack.c.bf16 %v1078, %v1078
      %v1095 = vpack.c.bf16 %v1079, %v1079
      %v1096 = vpack.c.bf16 %v1080, %v1080
      %v1097 = vpack.c.bf16 %v1081, %v1081
      %v1098 = vpack.c.bf16 %v1082, %v1082
      %v1099 = vpack.c.bf16 %v1083, %v1083
      %v1100 = vpack.c.bf16 %v1084, %v1084
      %v1101 = vpack.c.bf16 %v1085, %v1085
      %v1102 = vpack.c.bf16 %v1086, %v1086
      %v1103 = vpack.c.bf16 %v1087, %v1087
      %v1104 = vpack.c.bf16 %v1088, %v1088
      %v1105 = vpack.c.bf16 %v1089, %v1089
      %v1106 = vpack.c.bf16 %v1090, %v1090
      %v1107 = vpack.c.bf16 %v1091, %v1091
      %v1108 = vpack.c.bf16 %v1092, %v1092
      %1109 = vst [vmem:[%s232] sm:$0xf] %v1093
      %1110 = vst [vmem:[%s232 + $0x4] sm:$0xf] %v1094
      %1111 = vst [vmem:[%s232 + $0x8] sm:$0xf] %v1095
      %1112 = vst [vmem:[%s232 + $0xc] sm:$0xf] %v1096
      %1113 = vst [vmem:[%s232 + $0x10] sm:$0xf] %v1097
      %1114 = vst [vmem:[%s232 + $0x14] sm:$0xf] %v1098
      %1115 = vst [vmem:[%s232 + $0x18] sm:$0xf] %v1099
      %1116 = vst [vmem:[%s232 + $0x1c] sm:$0xf] %v1100
      %1117 = vst [vmem:[%s232 + $0x20] sm:$0xf] %v1101
      %1118 = vst [vmem:[%s232 + $0x24] sm:$0xf] %v1102
      %1119 = vst [vmem:[%s232 + $0x28] sm:$0xf] %v1103
      %1120 = vst [vmem:[%s232 + $0x2c] sm:$0xf] %v1104
      %1121 = vst [vmem:[%s232 + $0x30] sm:$0xf] %v1105
      %1122 = vst [vmem:[%s232 + $0x34] sm:$0xf] %v1106
      %1123 = vst [vmem:[%s232 + $0x38] sm:$0xf] %v1107
      %1124 = vst [vmem:[%s232 + $0x3c] sm:$0xf] %v1108
      %v1125 = vadd.f32 %v1077, %v1078
      %v1126 = vadd.f32 %v1125, %v1079
      %v1127 = vadd.f32 %v1126, %v1080
      %v1128 = vadd.f32 %v1127, %v1081
      %v1129 = vadd.f32 %v1128, %v1082
      %v1130 = vadd.f32 %v1129, %v1083
      %v1131 = vadd.f32 %v1130, %v1084
      %v1132 = vadd.f32 %v1131, %v1085
      %v1133 = vadd.f32 %v1132, %v1086
      %v1134 = vadd.f32 %v1133, %v1087
      %v1135 = vadd.f32 %v1134, %v1088
      %v1136 = vadd.f32 %v1135, %v1089
      %v1137 = vadd.f32 %v1136, %v1090
      %v1138 = vadd.f32 %v1137, %v1091
      %v1139 = vadd.f32 %v1138, %v1092
      %v1140 = vrot.slane %v1139, 4
      %v1141 = vadd.f32 %v1139, %v1140
      %v1142 = vrot.slane %v1141, 2
      %v1143 = vadd.f32 %v1141, %v1142
      %v1144 = vrot.slane %v1143, 1
      %v1145 = vadd.f32 %v1143, %v1144
      %v1146 = vmul.f32 %v1145, 0.0078125
      %v1147 = vsub.f32 %v1077, %v1146
      %v1148 = vsub.f32 %v1078, %v1146
      %v1149 = vsub.f32 %v1079, %v1146
      %v1150 = vsub.f32 %v1080, %v1146
      %v1151 = vsub.f32 %v1081, %v1146
      %v1152 = vsub.f32 %v1082, %v1146
      %v1153 = vsub.f32 %v1083, %v1146
      %v1154 = vsub.f32 %v1084, %v1146
      %v1155 = vsub.f32 %v1085, %v1146
      %v1156 = vsub.f32 %v1086, %v1146
      %v1157 = vsub.f32 %v1087, %v1146
      %v1158 = vsub.f32 %v1088, %v1146
      %v1159 = vsub.f32 %v1089, %v1146
      %v1160 = vsub.f32 %v1090, %v1146
      %v1161 = vsub.f32 %v1091, %v1146
      %v1162 = vsub.f32 %v1092, %v1146
      %v1163 = vmul.f32 %v1147, %v1147
      %v1164 = vmul.f32 %v1148, %v1148
      %v1165 = vmul.f32 %v1149, %v1149
      %v1166 = vmul.f32 %v1150, %v1150
      %v1167 = vmul.f32 %v1151, %v1151
      %v1168 = vmul.f32 %v1152, %v1152
      %v1169 = vmul.f32 %v1153, %v1153
      %v1170 = vmul.f32 %v1154, %v1154
      %v1171 = vmul.f32 %v1155, %v1155
      %v1172 = vmul.f32 %v1156, %v1156
      %v1173 = vmul.f32 %v1157, %v1157
      %v1174 = vmul.f32 %v1158, %v1158
      %v1175 = vmul.f32 %v1159, %v1159
      %v1176 = vmul.f32 %v1160, %v1160
      %v1177 = vmul.f32 %v1161, %v1161
      %v1178 = vmul.f32 %v1162, %v1162
      %v1179 = vadd.f32 %v1163, %v1164
      %v1180 = vadd.f32 %v1179, %v1165
      %v1181 = vadd.f32 %v1180, %v1166
      %v1182 = vadd.f32 %v1181, %v1167
      %v1183 = vadd.f32 %v1182, %v1168
      %v1184 = vadd.f32 %v1183, %v1169
      %v1185 = vadd.f32 %v1184, %v1170
      %v1186 = vadd.f32 %v1185, %v1171
      %v1187 = vadd.f32 %v1186, %v1172
      %v1188 = vadd.f32 %v1187, %v1173
      %v1189 = vadd.f32 %v1188, %v1174
      %v1190 = vadd.f32 %v1189, %v1175
      %v1191 = vadd.f32 %v1190, %v1176
      %v1192 = vadd.f32 %v1191, %v1177
      %v1193 = vadd.f32 %v1192, %v1178
      %v1194 = vrot.slane %v1193, 4
      %v1195 = vadd.f32 %v1193, %v1194
      %v1196 = vrot.slane %v1195, 2
      %v1197 = vadd.f32 %v1195, %v1196
      %v1198 = vrot.slane %v1197, 1
      %v1199 = vadd.f32 %v1197, %v1198
      %1200 = vst [vmem:[%s241] sm:$0x1] %v1145
      %1201 = vst [vmem:[%s241 + $0x1] sm:$0x1] %v1199
      %s1202 = smul.u32 16, %s21
      %p1203 = scmp.lt.s32.totalorder %s20, 1
      %s1204 = scalar_select %p1203, %s20, 1
      %p1205 = scmp.lt.s32.totalorder %s1202, 31
      %s1206 = scalar_select %p1205, %s1202, 31
      %s1207 = smul.addr %s1204, 32
      %s1208 = sadd.s32 %s1206, %s1207
      %s1209 = smul.addr %s1208, 4
      %s1210 = scalar_lea.vmem %s3, %s1209
      %p1211 = scmp.lt.s32.totalorder %s20, 1
      %s1212 = scalar_select %p1211, %s20, 1
      %p1213 = scmp.lt.s32.totalorder %s21, 1
      %s1214 = scalar_select %p1213, %s21, 1
      %s1215 = smul.addr %s1212, 2
      %s1216 = sadd.s32 %s1214, %s1215
      %s1217 = smul.addr %s1216, 2
      %s1218 = scalar_lea.vmem %s4, %s1217
      // Predicated region
      $region33: #{feature_extractor.3} parent=31 // pred_check
        %p1219 = pneg %p116
      $region34: #{feature_extractor.3} parent=31 // pred_check_branch
        %1221 = sbr.rel (%p1219) target = $region36
      $region35: #{feature_extractor.3} parent=31 // pred_region
        %s1222 = smul.u32 16, %s21
      $region36: #{feature_extractor.3} parent=31 // pred_fallthru
        _
      // Predicated region
      $region37: #{feature_extractor.3} parent=31 // pred_check
        %p1223 = pneg %p144
      $region38: #{feature_extractor.3} parent=31 // pred_check_branch
        %1225 = sbr.rel (%p1223) target = $region40
      $region39: #{feature_extractor.3} parent=31 // pred_region
        _
      $region40: #{feature_extractor.3} parent=31 // pred_fallthru
        _
    $region32: #{feature_extractor.3} parent=5 // pred_fallthru
      _
    %p1226 = scmp.le.s32.totalorder 2, %s11
    // Predicated region
    $region41: #{feature_extractor.3} parent=5 // pred_check
      %p1227 = pneg %p1226
    $region42: #{feature_extractor.3} parent=5 // pred_check_branch
      %1229 = sbr.rel (%p1227) target = $region44
    $region43: #{feature_extractor.3} parent=5 // pred_region
      %s1230 = ssub.s32 %s11, 2
      // Predicated region
      $region45: #{feature_extractor.3} parent=43 // pred_check
        %p1231 = pneg %p122
      $region46: #{feature_extractor.3} parent=43 // pred_check_branch
        %1233 = sbr.rel (%p1231) target = $region48
      $region47: #{feature_extractor.3} parent=43 // pred_region
        %s1234 = smul.u32 16, %s23
        %p1235 = scmp.lt.s32.totalorder %s22, 1
        %s1236 = scalar_select %p1235, %s22, 1
        %p1237 = scmp.lt.s32.totalorder %s1234, 31
        %s1238 = scalar_select %p1237, %s1234, 31
        %s1239 = smul.addr %s1236, 32
        %s1240 = sadd.s32 %s1238, %s1239
        %s1241 = smul.addr %s1240, 4
        %s1242 = scalar_lea.vmem %s3, %s1241
      $region48: #{feature_extractor.3} parent=43 // pred_fallthru
        _
      // Predicated region
      $region49: #{feature_extractor.3} parent=43 // pred_check
        %p1243 = pneg %p150
      $region50: #{feature_extractor.3} parent=43 // pred_check_branch
        %1245 = sbr.rel (%p1243) target = $region52
      $region51: #{feature_extractor.3} parent=43 // pred_region
        %p1246 = scmp.lt.s32.totalorder %s22, 1
        %s1247 = scalar_select %p1246, %s22, 1
        %p1248 = scmp.lt.s32.totalorder %s23, 1
        %s1249 = scalar_select %p1248, %s23, 1
        %s1250 = smul.addr %s1247, 2
        %s1251 = sadd.s32 %s1249, %s1250
        %s1252 = smul.addr %s1251, 2
        %s1253 = scalar_lea.vmem %s4, %s1252
      $region52: #{feature_extractor.3} parent=43 // pred_fallthru
        _
    $region44: #{feature_extractor.3} parent=5 // pred_fallthru
      _
  $region6: #{feature_extractor.3} parent=0 // loop_footer
    %s15 = sadd.s32 1, %s11
  $region7: #{feature_extractor.3} parent=0 // loop_footer_branch
    %10 = sbr.rel target = $region3
  $region8: #{feature_extractor.3} parent=0 // loop_exit
    _

// kernel: feature_extractor.4
$region0: #{feature_extractor.4}
  #allocation0 [shape = 'u32[]', space=smem, size = 0x4, offset = 0x4, fixed_abs, tag = 'smem constant byte address 0x4 - core index']
  #allocation1 [shape = 'u32[72,128]{1,0:T(1,128)}', space=vmem, size = 0x9000, scoped, tag = 'internal scratch']
  %s0 = inlined_call_operand.vmem [shape: bf16[2,18,18,128], index: 0, kind: input, shape index: {}]
  %s1 = inlined_call_operand.vmem [shape: bf16[1152,128], index: 1, kind: input, shape index: {}]
  %s2 = inlined_call_operand.vmem [shape: f32[1,128], index: 2, kind: input, shape index: {}]
  %s3 = inlined_call_operand.vmem [shape: bf16[2,256,128], index: 3, kind: output, shape index: {0}]
  %s4 = inlined_call_operand.vmem [shape: f32[2,2,2,128], index: 4, kind: output, shape index: {1}]
  %5 = xla_tuple %s3, %s4
  %s6 = sld [smem:[#allocation0]]
  $region53: #{feature_extractor.4} parent=0
    _
  %s8 = ssub.s32 1, %s6
  %s9 = scalar_select 0, %s8, %s6
  loop: start=0, step=1, limit=6
  $region2: #{feature_extractor.4} parent=0 // loop_pre_header
    _
  $region3: #{feature_extractor.4} parent=0 // loop_header
    %s11 = sphi 0, %s15
    %p12 = scmp.ge.s32.totalorder %s11, 6
    %s18 = sphi 0, %s30
    %s19 = sphi 0, %s26
    %s20 = sphi 0, %s18
    %s21 = sphi 0, %s19
    %s22 = sphi 0, %s20
    %s23 = sphi 0, %s21
    %s33 = sphi 0, %s35
    %s36 = sphi 0, %s33
    %s37 = sphi 0, %s36
    %s53 = sphi 0, %s37
    %s57 = sphi 0, %s57
    %s59 = sphi 0, %s57
    %s60 = sphi 0, %s59
    %s74 = sphi 0, %s60
    %s78 = sphi 0, %s78
    %s80 = sphi 0, %s78
    %s81 = sphi 0, %s80
    %s95 = sphi 0, %s81
    %s103 = sphi 0, %s105
    %s106 = sphi 0, %s103
    %s107 = sphi 0, %s106
    %s123 = sphi 0, %s107
    %s131 = sphi 0, %s133
    %s134 = sphi 0, %s131
    %s135 = sphi 0, %s134
    %s151 = sphi 0, %s135
  $region4: #{feature_extractor.4} parent=0 // loop_header_branch
    %14 = sbr.rel (%p12) target = $region8
  $region5: #{feature_extractor.4} parent=0 // loop_body
    %s16 = ssub.s32 %s11, 1
    %s17 = ssub.s32 %s11, 2
    %s24 = sadd.s32 1, %s19
    %p25 = scmp.ge.s32.totalorder %s24, 2
    %s26 = scalar_select %p25, 0, %s24
    %s27 = sadd.s32 1, %s18
    %s28 = scalar_select %p25, %s27, %s18
    %p29 = scmp.ge.s32.totalorder %s28, 2
    %s30 = scalar_select %p29, 0, %s28
    %s31 = ssub.s32 %s18, %s30
    %p32 = scmp.eq.s32.totalorder %s31, 0
    %s34 = sadd.s32 %s33, 1
    %s35 = scalar_select %p32, %s33, %s34
    %p38 = pneg %p32
    %p39 = scmp.eq.s32.totalorder %s11, 3
    %p40 = por %p38, %p39
    %p41 = scmp.ne.s32.totalorder %s33, %s36
    %p42 = scmp.eq.s32.totalorder %s11, 0
    %p43 = por %p41, %p42
    %p44 = scmp.ne.s32.totalorder %s33, %s36
    %p45 = scmp.eq.s32.totalorder %s16, 3
    %p46 = por %p44, %p45
    %p47 = scmp.ne.s32.totalorder %s36, %s37
    %p48 = scmp.eq.s32.totalorder %s16, 0
    %p49 = por %p47, %p48
    %p50 = scmp.ne.s32.totalorder %s36, %s37
    %p51 = scmp.eq.s32.totalorder %s17, 3
    %p52 = por %p50, %p51
    %p54 = scmp.ne.s32.totalorder %s37, %s53
    %p55 = scmp.eq.s32.totalorder %s17, 0
    %p56 = por %p54, %p55
    %s58 = sadd.s32 %s57, 1
    %p61 = scmp.eq.s32.totalorder %s11, 3
    %p62 = scmp.ne.s32.totalorder %s57, %s59
    %p63 = scmp.eq.s32.totalorder %s11, 0
    %p64 = por %p62, %p63
    %p65 = scmp.ne.s32.totalorder %s57, %s59
    %p66 = scmp.eq.s32.totalorder %s16, 3
    %p67 = por %p65, %p66
    %p68 = scmp.ne.s32.totalorder %s59, %s60
    %p69 = scmp.eq.s32.totalorder %s16, 0
    %p70 = por %p68, %p69
    %p71 = scmp.ne.s32.totalorder %s59, %s60
    %p72 = scmp.eq.s32.totalorder %s17, 3
    %p73 = por %p71, %p72
    %p75 = scmp.ne.s32.totalorder %s60, %s74
    %p76 = scmp.eq.s32.totalorder %s17, 0
    %p77 = por %p75, %p76
    %s79 = sadd.s32 %s78, 1
    %p82 = scmp.eq.s32.totalorder %s11, 3
    %p83 = scmp.ne.s32.totalorder %s78, %s80
    %p84 = scmp.eq.s32.totalorder %s11, 0
    %p85 = por %p83, %p84
    %p86 = scmp.ne.s32.totalorder %s78, %s80
    %p87 = scmp.eq.s32.totalorder %s16, 3
    %p88 = por %p86, %p87
    %p89 = scmp.ne.s32.totalorder %s80, %s81
    %p90 = scmp.eq.s32.totalorder %s16, 0
    %p91 = por %p89, %p90
    %p92 = scmp.ne.s32.totalorder %s80, %s81
    %p93 = scmp.eq.s32.totalorder %s17, 3
    %p94 = por %p92, %p93
    %p96 = scmp.ne.s32.totalorder %s81, %s95
    %p97 = scmp.eq.s32.totalorder %s17, 0
    %p98 = por %p96, %p97
    %s99 = ssub.s32 %s18, %s30
    %s100 = ssub.s32 %s19, %s26
    %s101 = sor.u32 %s99, %s100
    %p102 = scmp.eq.s32.totalorder %s101, 0
    %s104 = sadd.s32 %s103, 1
    %s105 = scalar_select %p102, %s103, %s104
    %p108 = pneg %p102
    %p109 = scmp.eq.s32.totalorder %s11, 3
    %p110 = por %p108, %p109
    %p111 = scmp.ne.s32.totalorder %s103, %s106
    %p112 = scmp.eq.s32.totalorder %s11, 0
    %p113 = por %p111, %p112
    %p114 = scmp.ne.s32.totalorder %s103, %s106
    %p115 = scmp.eq.s32.totalorder %s16, 3
    %p116 = por %p114, %p115
    %p117 = scmp.ne.s32.totalorder %s106, %s107
    %p118 = scmp.eq.s32.totalorder %s16, 0
    %p119 = por %p117, %p118
    %p120 = scmp.ne.s32.totalorder %s106, %s107
    %p121 = scmp.eq.s32.totalorder %s17, 3
    %p122 = por %p120, %p121
    %p124 = scmp.ne.s32.totalorder %s107, %s123
    %p125 = scmp.eq.s32.totalorder %s17, 0
    %p126 = por %p124, %p125
    %s127 = ssub.s32 %s18, %s30
    %s128 = ssub.s32 %s19, %s26
    %s129 = sor.u32 %s127, %s128
    %p130 = scmp.eq.s32.totalorder %s129, 0
    %s132 = sadd.s32 %s131, 1
    %s133 = scalar_select %p130, %s131, %s132
    %p136 = pneg %p130
    %p137 = scmp.eq.s32.totalorder %s11, 3
    %p138 = por %p136, %p137
    %p139 = scmp.ne.s32.totalorder %s131, %s134
    %p140 = scmp.eq.s32.totalorder %s11, 0
    %p141 = por %p139, %p140
    %p142 = scmp.ne.s32.totalorder %s131, %s134
    %p143 = scmp.eq.s32.totalorder %s16, 3
    %p144 = por %p142, %p143
    %p145 = scmp.ne.s32.totalorder %s134, %s135
    %p146 = scmp.eq.s32.totalorder %s16, 0
    %p147 = por %p145, %p146
    %p148 = scmp.ne.s32.totalorder %s134, %s135
    %p149 = scmp.eq.s32.totalorder %s17, 3
    %p150 = por %p148, %p149
    %p152 = scmp.ne.s32.totalorder %s135, %s151
    %p153 = scmp.eq.s32.totalorder %s17, 0
    %p154 = por %p152, %p153
    %p155 = scmp.le.s32.totalorder 1, %s11
    %p156 = scmp.lt.s32.totalorder %s11, 5
    %p157 = pnand %p155, %p156
    %p158 = pneg %p157
    // Predicated region
    $region9: #{feature_extractor.4} parent=5 // pred_check
      _
    $region10: #{feature_extractor.4} parent=5 // pred_check_branch
      %160 = sbr.rel (%p157) target = $region12
    $region11: #{feature_extractor.4} parent=5 // pred_region
      %s161 = ssub.s32 %s11, 1
      // Predicated region
      $region13: #{feature_extractor.4} parent=11 // pred_check
        %p162 = pneg %p70
      $region14: #{feature_extractor.4} parent=11 // pred_check_branch
        %164 = sbr.rel (%p162) target = $region16
      $region15: #{feature_extractor.4} parent=11 // pred_region
        _
      $region16: #{feature_extractor.4} parent=11 // pred_fallthru
        _
      // Predicated region
      $region17: #{feature_extractor.4} parent=11 // pred_check
        %p165 = pneg %p91
      $region18: #{feature_extractor.4} parent=11 // pred_check_branch
        %167 = sbr.rel (%p165) target = $region20
      $region19: #{feature_extractor.4} parent=11 // pred_region
        _
      $region20: #{feature_extractor.4} parent=11 // pred_fallthru
        _
    $region12: #{feature_extractor.4} parent=5 // pred_fallthru
      _
    %p168 = scmp.lt.s32.totalorder %s11, 4
    // Predicated region
    $region21: #{feature_extractor.4} parent=5 // pred_check
      %p169 = pneg %p168
    $region22: #{feature_extractor.4} parent=5 // pred_check_branch
      %171 = sbr.rel (%p169) target = $region24
    $region23: #{feature_extractor.4} parent=5 // pred_region
      // Predicated region
      $region25: #{feature_extractor.4} parent=23 // pred_check
        %p172 = pneg %p43
      $region26: #{feature_extractor.4} parent=23 // pred_check_branch
        %174 = sbr.rel (%p172) target = $region28
      $region27: #{feature_extractor.4} parent=23 // pred_region
        %p175 = scmp.lt.s32.totalorder %s18, 1
        %s176 = scalar_select %p175, %s18, 1
        %s177 = smul.addr %s176, 54
        %s178 = smul.addr %s177, 4
        %s179 = scalar_lea.vmem %s0, %s178
      $region28: #{feature_extractor.4} parent=23 // pred_fallthru
        _
    $region24: #{feature_extractor.4} parent=5 // pred_fallthru
      _
    %p180 = scmp.le.s32.totalorder 1, %s11
    %p181 = scmp.lt.s32.totalorder %s11, 5
    %p182 = pnand %p180, %p181
    %p183 = pneg %p182
    // Predicated region
    $region29: #{feature_extractor.4} parent=5 // pred_check
      _
    $region30: #{feature_extractor.4} parent=5 // pred_check_branch
      %185 = sbr.rel (%p182) target = $region32
    $region31: #{feature_extractor.4} parent=5 // pred_region
      %s186 = ssub.s32 %s11, 1
      %p187 = scmp.lt.s32.totalorder %s20, 1
      %s188 = scalar_select %p187, %s20, 1
      %s189 = smul.addr %s188, 54
      %s190 = smul.addr %s189, 4
      %s191 = scalar_lea.vmem %s0, %s190
      %p192 = pneg %p49
      %p193 = pneg %p46
      %p194 = pneg %p70
      %p195 = pneg %p67
      %p196 = pneg %p91
      %p197 = pneg %p88
      %p198 = pneg %p119
      %p199 = pneg %p116
      %s200 = smul.u32 16, %s21
      %p201 = scmp.lt.s32.totalorder %s20, 1
      %s202 = scalar_select %p201, %s20, 1
      %p203 = scmp.lt.s32.totalorder %s200, 31
      %s204 = scalar_select %p203, %s200, 31
      %s205 = smul.addr %s202, 32
      %s206 = sadd.s32 %s204, %s205
      %s207 = smul.addr %s206, 4
      %s208 = scalar_lea.vmem %s3, %s207
      %p209 = pneg %p147
      %p210 = pneg %p144
      %p211 = scmp.lt.s32.totalorder %s20, 1
      %s212 = scalar_select %p211, %s20, 1
      %p213 = scmp.lt.s32.totalorder %s21, 1
      %s214 = scalar_select %p213, %s21, 1
      %s215 = smul.addr %s212, 2
      %s216 = sadd.s32 %s214, %s215
      %s217 = smul.addr %s216, 2
      %s218 = scalar_lea.vmem %s4, %s217
      %p219 = scmp.lt.s32.totalorder %s20, 1
      %s220 = scalar_select %p219, %s20, 1
      %s221 = smul.addr %s220, 54
      %s222 = smul.addr %s221, 4
      %s223 = scalar_lea.vmem %s0, %s222
      %s224 = smul.u32 16, %s21
      %p225 = scmp.lt.s32.totalorder %s20, 1
      %s226 = scalar_select %p225, %s20, 1
      %p227 = scmp.lt.s32.totalorder %s224, 31
      %s228 = scalar_select %p227, %s224, 31
      %s229 = smul.addr %s226, 32
      %s230 = sadd.s32 %s228, %s229
      %s231 = smul.addr %s230, 4
      %s232 = scalar_lea.vmem %s3, %s231
      %s233 = smul.u32 16, %s21
      %p234 = scmp.lt.s32.totalorder %s20, 1
      %s235 = scalar_select %p234, %s20, 1
      %p236 = scmp.lt.s32.totalorder %s21, 1
      %s237 = scalar_select %p236, %s21, 1
      %s238 = smul.addr %s235, 2
      %s239 = sadd.s32 %s237, %s238
      %s240 = smul.addr %s239, 2
      %s241 = scalar_lea.vmem %s4, %s240
      %s242 = smul.u32 %s21, 8
      %s243 = smul.u32 %s242, 3
      %s244 = smul.addr %s243, 4
      %s245 = scalar_lea.vmem %s223, %s244
      %v246 = vld [vmem:[%s245] sm:$0xf]
      %v247 = vld [vmem:[%s245 + $0x4] sm:$0xf]
      %v248 = vld [vmem:[%s245 + $0x8] sm:$0x1]
      %v249 = vld [vmem:[%s245 + $0xc] sm:$0xf]
      %v250 = vld [vmem:[%s245 + $0x10] sm:$0xf]
      %v251 = vld [vmem:[%s245 + $0x14] sm:$0x1]
      %v252 = vld [vmem:[%s245 + $0x18] sm:$0xf]
      %v253 = vld [vmem:[%s245 + $0x1c] sm:$0xf]
      %v254 = vld [vmem:[%s245 + $0x20] sm:$0x1]
      %v255 = vld [vmem:[%s245 + $0x24] sm:$0xf]
      %v256 = vld [vmem:[%s245 + $0x28] sm:$0xf]
      %v257 = vld [vmem:[%s245 + $0x2c] sm:$0x1]
      %v258 = vld [vmem:[%s245 + $0x30] sm:$0xf]
      %v259 = vld [vmem:[%s245 + $0x34] sm:$0xf]
      %v260 = vld [vmem:[%s245 + $0x38] sm:$0x1]
      %v261 = vld [vmem:[%s245 + $0x3c] sm:$0xf]
      %v262 = vld [vmem:[%s245 + $0x40] sm:$0xf]
      %v263 = vld [vmem:[%s245 + $0x44] sm:$0x1]
      %v264 = vld [vmem:[%s245 + $0x48] sm:$0xf]
      %v265 = vld [vmem:[%s245 + $0x4c] sm:$0xf]
      %v266 = vld [vmem:[%s245 + $0x50] sm:$0x1]
      %v267 = vld [vmem:[%s245 + $0x54] sm:$0xf]
      %v268 = vld [vmem:[%s245 + $0x58] sm:$0xf]
      %v269 = vld [vmem:[%s245 + $0x5c] sm:$0x1]
      %v270 = vld [vmem:[%s245 + $0x60] sm:$0xf]
      %v271 = vld [vmem:[%s245 + $0x64] sm:$0xf]
      %v272 = vld [vmem:[%s245 + $0x68] sm:$0x1]
      %v273 = vld [vmem:[%s245 + $0x6c] sm:$0xf]
      %v274 = vld [vmem:[%s245 + $0x70] sm:$0xf]
      %v275 = vld [vmem:[%s245 + $0x74] sm:$0x1]
      %vm276 = vsmask.f32 3328
      %vm277 = vsmask.f32 7440
      %vm278 = vmor %vm276, %vm277
      %v280 = vshrl.u32 %v246, 16
      %v282 = vrot.slane %v280, 4
      %v283 = vshll.u32 %v246, 16
      %v285 = vrot.slane %v283, 5
      %v286 = vor.u32 %v282, %v285
      %v287 = vrot.slane %v286, 4
      %v289 = vshll.u32 %v247, 16
      %v291 = vrot.slane %v289, 5
      %v292 = vsel %vm278, %v287, %v291
      %v293 = vshrl.u32 %v247, 16
      %v295 = vrot.slane %v293, 4
      %v296 = vor.u32 %v295, %v291
      %v297 = vrot.slane %v296, 4
      %v299 = vshll.u32 %v248, 16
      %v301 = vrot.slane %v299, 5
      %v302 = vsel %vm278, %v297, %v301
      %v304 = vshrl.u32 %v249, 16
      %v306 = vrot.slane %v304, 4
      %v307 = vshll.u32 %v249, 16
      %v309 = vrot.slane %v307, 5
      %v310 = vor.u32 %v306, %v309
      %v311 = vrot.slane %v310, 4
      %v313 = vshll.u32 %v250, 16
      %v315 = vrot.slane %v313, 5
      %v316 = vsel %vm278, %v311, %v315
      %v317 = vshrl.u32 %v250, 16
      %v319 = vrot.slane %v317, 4
      %v320 = vor.u32 %v319, %v315
      %v321 = vrot.slane %v320, 4
      %v323 = vshll.u32 %v251, 16
      %v325 = vrot.slane %v323, 5
      %v326 = vsel %vm278, %v321, %v325
      %v328 = vshrl.u32 %v252, 16
      %v330 = vrot.slane %v328, 4
      %v331 = vshll.u32 %v252, 16
      %v333 = vrot.slane %v331, 5
      %v334 = vor.u32 %v330, %v333
      %v335 = vrot.slane %v334, 4
      %v337 = vshll.u32 %v253, 16
      %v339 = vrot.slane %v337, 5
      %v340 = vsel %vm278, %v335, %v339
      %v341 = vshrl.u32 %v253, 16
      %v343 = vrot.slane %v341, 4
      %v344 = vor.u32 %v343, %v339
      %v345 = vrot.slane %v344, 4
      %v347 = vshll.u32 %v254, 16
      %v349 = vrot.slane %v347, 5
      %v350 = vsel %vm278, %v345, %v349
      %v352 = vshrl.u32 %v255, 16
      %v354 = vrot.slane %v352, 4
      %v355 = vshll.u32 %v255, 16
      %v357 = vrot.slane %v355, 5
      %v358 = vor.u32 %v354, %v357
      %v359 = vrot.slane %v358, 4
      %v361 = vshll.u32 %v256, 16
      %v363 = vrot.slane %v361, 5
      %v364 = vsel %vm278, %v359, %v363
      %v365 = vshrl.u32 %v256, 16
      %v367 = vrot.slane %v365, 4
      %v368 = vor.u32 %v367, %v363
      %v369 = vrot.slane %v368, 4
      %v371 = vshll.u32 %v257, 16
      %v373 = vrot.slane %v371, 5
      %v374 = vsel %vm278, %v369, %v373
      %v376 = vshrl.u32 %v258, 16
      %v378 = vrot.slane %v376, 4
      %v379 = vshll.u32 %v258, 16
      %v381 = vrot.slane %v379, 5
      %v382 = vor.u32 %v378, %v381
      %v383 = vrot.slane %v382, 4
      %v385 = vshll.u32 %v259, 16
      %v387 = vrot.slane %v385, 5
      %v388 = vsel %vm278, %v383, %v387
      %v389 = vshrl.u32 %v259, 16
      %v391 = vrot.slane %v389, 4
      %v392 = vor.u32 %v391, %v387
      %v393 = vrot.slane %v392, 4
      %v395 = vshll.u32 %v260, 16
      %v397 = vrot.slane %v395, 5
      %v398 = vsel %vm278, %v393, %v397
      %v400 = vshrl.u32 %v261, 16
      %v402 = vrot.slane %v400, 4
      %v403 = vshll.u32 %v261, 16
      %v405 = vrot.slane %v403, 5
      %v406 = vor.u32 %v402, %v405
      %v407 = vrot.slane %v406, 4
      %v409 = vshll.u32 %v262, 16
      %v411 = vrot.slane %v409, 5
      %v412 = vsel %vm278, %v407, %v411
      %v413 = vshrl.u32 %v262, 16
      %v415 = vrot.slane %v413, 4
      %v416 = vor.u32 %v415, %v411
      %v417 = vrot.slane %v416, 4
      %v419 = vshll.u32 %v263, 16
      %v421 = vrot.slane %v419, 5
      %v422 = vsel %vm278, %v417, %v421
      %v424 = vshrl.u32 %v264, 16
      %v426 = vrot.slane %v424, 4
      %v427 = vshll.u32 %v264, 16
      %v429 = vrot.slane %v427, 5
      %v430 = vor.u32 %v426, %v429
      %v431 = vrot.slane %v430, 4
      %v433 = vshll.u32 %v265, 16
      %v435 = vrot.slane %v433, 5
      %v436 = vsel %vm278, %v431, %v435
      %v437 = vshrl.u32 %v265, 16
      %v439 = vrot.slane %v437, 4
      %v440 = vor.u32 %v439, %v435
      %v441 = vrot.slane %v440, 4
      %v443 = vshll.u32 %v266, 16
      %v445 = vrot.slane %v443, 5
      %v446 = vsel %vm278, %v441, %v445
      %v448 = vshrl.u32 %v267, 16
      %v450 = vrot.slane %v448, 4
      %v451 = vshll.u32 %v267, 16
      %v453 = vrot.slane %v451, 5
      %v454 = vor.u32 %v450, %v453
      %v455 = vrot.slane %v454, 4
      %v457 = vshll.u32 %v268, 16
      %v459 = vrot.slane %v457, 5
      %v460 = vsel %vm278, %v455, %v459
      %v461 = vshrl.u32 %v268, 16
      %v463 = vrot.slane %v461, 4
      %v464 = vor.u32 %v463, %v459
      %v465 = vrot.slane %v464, 4
      %v467 = vshll.u32 %v269, 16
      %v469 = vrot.slane %v467, 5
      %v470 = vsel %vm278, %v465, %v469
      %vm495 = vcmask 1042432
      %vm496 = vcmask 1046532
      %vm497 = vmor %vm495, %vm496
      %v498 = vrot.slane %v246, 5
      %v499 = vrot.slane %v498, 4
      %v500 = vrot.slane %v247, 5
      %v501 = vsel %vm497, %v499, %v500
      %v502 = vrot.slane %v500, 4
      %v503 = vrot.slane %v248, 5
      %v504 = vsel %vm497, %v502, %v503
      %v505 = vrot.slane %v249, 5
      %v506 = vrot.slane %v505, 4
      %v507 = vrot.slane %v250, 5
      %v508 = vsel %vm497, %v506, %v507
      %v509 = vrot.slane %v507, 4
      %v510 = vrot.slane %v251, 5
      %v511 = vsel %vm497, %v509, %v510
      %v512 = vrot.slane %v252, 5
      %v513 = vrot.slane %v512, 4
      %v514 = vrot.slane %v253, 5
      %v515 = vsel %vm497, %v513, %v514
      %v516 = vrot.slane %v514, 4
      %v517 = vrot.slane %v254, 5
      %v518 = vsel %vm497, %v516, %v517
      %v519 = vrot.slane %v255, 5
      %v520 = vrot.slane %v519, 4
      %v521 = vrot.slane %v256, 5
      %v522 = vsel %vm497, %v520, %v521
      %v523 = vrot.slane %v521, 4
      %v524 = vrot.slane %v257, 5
      %v525 = vsel %vm497, %v523, %v524
      %v526 = vrot.slane %v258, 5
      %v527 = vrot.slane %v526, 4
      %v528 = vrot.slane %v259, 5
      %v529 = vsel %vm497, %v527, %v528
      %v530 = vrot.slane %v528, 4
      %v531 = vrot.slane %v260, 5
      %v532 = vsel %vm497, %v530, %v531
      %v533 = vrot.slane %v261, 5
      %v534 = vrot.slane %v533, 4
      %v535 = vrot.slane %v262, 5
      %v536 = vsel %vm497, %v534, %v535
      %v537 = vrot.slane %v535, 4
      %v538 = vrot.slane %v263, 5
      %v539 = vsel %vm497, %v537, %v538
      %v540 = vrot.slane %v264, 5
      %v541 = vrot.slane %v540, 4
      %v542 = vrot.slane %v265, 5
      %v543 = vsel %vm497, %v541, %v542
      %v544 = vrot.slane %v542, 4
      %v545 = vrot.slane %v266, 5
      %v546 = vsel %vm497, %v544, %v545
      %v547 = vrot.slane %v267, 5
      %v548 = vrot.slane %v547, 4
      %v549 = vrot.slane %v268, 5
      %v550 = vsel %vm497, %v548, %v549
      %v551 = vrot.slane %v549, 4
      %v552 = vrot.slane %v269, 5
      %v553 = vsel %vm497, %v551, %v552
      %v555 = vshrl.u32 %v270, 16
      %v557 = vrot.slane %v555, 4
      %v558 = vshll.u32 %v270, 16
      %v560 = vrot.slane %v558, 5
      %v561 = vor.u32 %v557, %v560
      %v562 = vrot.slane %v561, 4
      %v564 = vshll.u32 %v271, 16
      %v566 = vrot.slane %v564, 5
      %v567 = vsel %vm278, %v562, %v566
      %v568 = vshrl.u32 %v271, 16
      %v570 = vrot.slane %v568, 4
      %v571 = vor.u32 %v570, %v566
      %v572 = vrot.slane %v571, 4
      %v574 = vshll.u32 %v272, 16
      %v576 = vrot.slane %v574, 5
      %v577 = vsel %vm278, %v572, %v576
      %v581 = vrot.slane %v270, 5
      %v582 = vrot.slane %v581, 4
      %v583 = vrot.slane %v271, 5
      %v584 = vsel %vm497, %v582, %v583
      %v585 = vrot.slane %v583, 4
      %v586 = vrot.slane %v272, 5
      %v587 = vsel %vm497, %v585, %v586
      %v589 = vshrl.u32 %v273, 16
      %v591 = vrot.slane %v589, 4
      %v592 = vshll.u32 %v273, 16
      %v594 = vrot.slane %v592, 5
      %v595 = vor.u32 %v591, %v594
      %v596 = vrot.slane %v595, 4
      %v598 = vshll.u32 %v274, 16
      %v600 = vrot.slane %v598, 5
      %v601 = vsel %vm278, %v596, %v600
      %v602 = vshrl.u32 %v274, 16
      %v604 = vrot.slane %v602, 4
      %v605 = vor.u32 %v604, %v600
      %v606 = vrot.slane %v605, 4
      %v608 = vshll.u32 %v275, 16
      %v610 = vrot.slane %v608, 5
      %v611 = vsel %vm278, %v606, %v610
      %v615 = vrot.slane %v273, 5
      %v616 = vrot.slane %v615, 4
      %v617 = vrot.slane %v274, 5
      %v618 = vsel %vm497, %v616, %v617
      %v619 = vrot.slane %v617, 4
      %v620 = vrot.slane %v275, 5
      %v621 = vsel %vm497, %v619, %v620
      %v622 = vunpack.c.l.b16 %v246
      %v623 = vunpack.c.l.b16 %v247
      %v624 = vunpack.c.l.b16 %v249
      %v625 = vunpack.c.l.b16 %v250
      %v626 = vunpack.c.l.b16 %v252
      %v627 = vunpack.c.l.b16 %v253
      %v628 = vunpack.c.l.b16 %v255
      %v629 = vunpack.c.l.b16 %v256
      %v630 = vunpack.c.l.b16 %v258
      %v631 = vunpack.c.l.b16 %v259
      %v632 = vunpack.c.l.b16 %v261
      %v633 = vunpack.c.l.b16 %v262
      %v634 = vunpack.c.l.b16 %v264
      %v635 = vunpack.c.l.b16 %v265
      %v636 = vunpack.c.l.b16 %v267
      %v637 = vunpack.c.l.b16 %v268
      %v638 = vpack.c.b16 %v623, %v622
      %v639 = vpack.c.b16 %v625, %v624
      %v640 = vpack.c.b16 %v627, %v626
      %v641 = vpack.c.b16 %v629, %v628
      %v642 = vpack.c.b16 %v631, %v630
      %v643 = vpack.c.b16 %v633, %v632
      %v644 = vpack.c.b16 %v635, %v634
      %v645 = vpack.c.b16 %v637, %v636
      %v654 = vunpack.c.l.b16 %v292
      %v655 = vunpack.c.l.b16 %v302
      %v656 = vunpack.c.l.b16 %v316
      %v657 = vunpack.c.l.b16 %v326
      %v658 = vunpack.c.l.b16 %v340
      %v659 = vunpack.c.l.b16 %v350
      %v660 = vunpack.c.l.b16 %v364
      %v661 = vunpack.c.l.b16 %v374
      %v662 = vunpack.c.l.b16 %v388
      %v663 = vunpack.c.l.b16 %v398
      %v664 = vunpack.c.l.b16 %v412
      %v665 = vunpack.c.l.b16 %v422
      %v666 = vunpack.c.l.b16 %v436
      %v667 = vunpack.c.l.b16 %v446
      %v668 = vunpack.c.l.b16 %v460
      %v669 = vunpack.c.l.b16 %v470
      %v670 = vpack.c.b16 %v655, %v654
      %v671 = vpack.c.b16 %v657, %v656
      %v672 = vpack.c.b16 %v659, %v658
      %v673 = vpack.c.b16 %v661, %v660
      %v674 = vpack.c.b16 %v663, %v662
      %v675 = vpack.c.b16 %v665, %v664
      %v676 = vpack.c.b16 %v667, %v666
      %v677 = vpack.c.b16 %v669, %v668
      %v686 = vunpack.c.l.b16 %v501
      %v687 = vunpack.c.l.b16 %v504
      %v688 = vunpack.c.l.b16 %v508
      %v689 = vunpack.c.l.b16 %v511
      %v690 = vunpack.c.l.b16 %v515
      %v691 = vunpack.c.l.b16 %v518
      %v692 = vunpack.c.l.b16 %v522
      %v693 = vunpack.c.l.b16 %v525
      %v694 = vunpack.c.l.b16 %v529
      %v695 = vunpack.c.l.b16 %v532
      %v696 = vunpack.c.l.b16 %v536
      %v697 = vunpack.c.l.b16 %v539
      %v698 = vunpack.c.l.b16 %v543
      %v699 = vunpack.c.l.b16 %v546
      %v700 = vunpack.c.l.b16 %v550
      %v701 = vunpack.c.l.b16 %v553
      %v702 = vpack.c.b16 %v687, %v686
      %v703 = vpack.c.b16 %v689, %v688
      %v704 = vpack.c.b16 %v691, %v690
      %v705 = vpack.c.b16 %v693, %v692
      %v706 = vpack.c.b16 %v695, %v694
      %v707 = vpack.c.b16 %v697, %v696
      %v708 = vpack.c.b16 %v699, %v698
      %v709 = vpack.c.b16 %v701, %v700
      %v718 = vunpack.c.l.b16 %v270
      %v719 = vunpack.c.l.b16 %v271
      %v720 = vpack.c.b16 %v719, %v718
      %v722 = vunpack.c.l.b16 %v567
      %v723 = vunpack.c.l.b16 %v577
      %v724 = vpack.c.b16 %v723, %v722
      %v726 = vunpack.c.l.b16 %v584
      %v727 = vunpack.c.l.b16 %v587
      %v728 = vpack.c.b16 %v727, %v726
      %v730 = vunpack.c.l.b16 %v273
      %v731 = vunpack.c.l.b16 %v274
      %v732 = vpack.c.b16 %v731, %v730
      %v734 = vunpack.c.l.b16 %v601
      %v735 = vunpack.c.l.b16 %v611
      %v736 = vpack.c.b16 %v735, %v734
      %v738 = vunpack.c.l.b16 %v618
      %v739 = vunpack.c.l.b16 %v621
      %v740 = vpack.c.b16 %v739, %v738
      %v742 = vld [vmem:[%s1] sm:$0xf]
      %v743 = vld [vmem:[%s1 + $0x4] sm:$0xf]
      %v744 = vld [vmem:[%s1 + $0x8] sm:$0xf]
      %v745 = vld [vmem:[%s1 + $0xc] sm:$0xf]
      %v746 = vld [vmem:[%s1 + $0x10] sm:$0xf]
      %v747 = vld [vmem:[%s1 + $0x14] sm:$0xf]
      %v748 = vld [vmem:[%s1 + $0x18] sm:$0xf]
      %v749 = vld [vmem:[%s1 + $0x1c] sm:$0xf]
      %v750 = vld [vmem:[%s1 + $0x20] sm:$0xf]
      %v751 = vld [vmem:[%s1 + $0x24] sm:$0xf]
      %v752 = vld [vmem:[%s1 + $0x28] sm:$0xf]
      %v753 = vld [vmem:[%s1 + $0x2c] sm:$0xf]
      %v754 = vld [vmem:[%s1 + $0x30] sm:$0xf]
      %v755 = vld [vmem:[%s1 + $0x34] sm:$0xf]
      %v756 = vld [vmem:[%s1 + $0x38] sm:$0xf]
      %v757 = vld [vmem:[%s1 + $0x3c] sm:$0xf]
      %v758 = vld [vmem:[%s1 + $0x40] sm:$0xf]
      %v759 = vld [vmem:[%s1 + $0x44] sm:$0xf]
      %v760 = vld [vmem:[%s1 + $0x48] sm:$0xf]
      %v761 = vld [vmem:[%s1 + $0x4c] sm:$0xf]
      %v762 = vld [vmem:[%s1 + $0x50] sm:$0xf]
      %v763 = vld [vmem:[%s1 + $0x54] sm:$0xf]
      %v764 = vld [vmem:[%s1 + $0x58] sm:$0xf]
      %v765 = vld [vmem:[%s1 + $0x5c] sm:$0xf]
      %v766 = vld [vmem:[%s1 + $0x60] sm:$0xf]
      %v767 = vld [vmem:[%s1 + $0x64] sm:$0xf]
      %v768 = vld [vmem:[%s1 + $0x68] sm:$0xf]
      %v769 = vld [vmem:[%s1 + $0x6c] sm:$0xf]
      %v770 = vld [vmem:[%s1 + $0x70] sm:$0xf]
      %v771 = vld [vmem:[%s1 + $0x74] sm:$0xf]
      %v772 = vld [vmem:[%s1 + $0x78] sm:$0xf]
      %v773 = vld [vmem:[%s1 + $0x7c] sm:$0xf]
      %v774 = vld [vmem:[%s1 + $0x80] sm:$0xf]
      %v775 = vld [vmem:[%s1 + $0x84] sm:$0xf]
      %v776 = vld [vmem:[%s1 + $0x88] sm:$0xf]
      %v777 = vld [vmem:[%s1 + $0x8c] sm:$0xf]
      %v778 = vld [vmem:[%s1 + $0x90] sm:$0xf]
      %v779 = vld [vmem:[%s1 + $0x94] sm:$0xf]
      %v780 = vld [vmem:[%s1 + $0x98] sm:$0xf]
      %v781 = vld [vmem:[%s1 + $0x9c] sm:$0xf]
      %v782 = vld [vmem:[%s1 + $0xa0] sm:$0xf]
      %v783 = vld [vmem:[%s1 + $0xa4] sm:$0xf]
      %v784 = vld [vmem:[%s1 + $0xa8] sm:$0xf]
      %v785 = vld [vmem:[%s1 + $0xac] sm:$0xf]
      %v786 = vld [vmem:[%s1 + $0xb0] sm:$0xf]
      %v787 = vld [vmem:[%s1 + $0xb4] sm:$0xf]
      %v788 = vld [vmem:[%s1 + $0xb8] sm:$0xf]
      %v789 = vld [vmem:[%s1 + $0xbc] sm:$0xf]
      %v790 = vld [vmem:[%s1 + $0xc0] sm:$0xf]
      %v791 = vld [vmem:[%s1 + $0xc4] sm:$0xf]
      %v792 = vld [vmem:[%s1 + $0xc8] sm:$0xf]
      %v793 = vld [vmem:[%s1 + $0xcc] sm:$0xf]
      %v794 = vld [vmem:[%s1 + $0xd0] sm:$0xf]
      %v795 = vld [vmem:[%s1 + $0xd4] sm:$0xf]
      %v796 = vld [vmem:[%s1 + $0xd8] sm:$0xf]
      %v797 = vld [vmem:[%s1 + $0xdc] sm:$0xf]
      %v798 = vld [vmem:[%s1 + $0xe0] sm:$0xf]
      %v799 = vld [vmem:[%s1 + $0xe4] sm:$0xf]
      %v800 = vld [vmem:[%s1 + $0xe8] sm:$0xf]
      %v801 = vld [vmem:[%s1 + $0xec] sm:$0xf]
      %v802 = vld [vmem:[%s1 + $0xf0] sm:$0xf]
      %v803 = vld [vmem:[%s1 + $0xf4] sm:$0xf]
      %v804 = vld [vmem:[%s1 + $0xf8] sm:$0xf]
      %v805 = vld [vmem:[%s1 + $0xfc] sm:$0xf]
      %v806 = vld [vmem:[%s1 + $0x100] sm:$0xf]
      %v807 = vld [vmem:[%s1 + $0x104] sm:$0xf]
      %v808 = vld [vmem:[%s1 + $0x108] sm:$0xf]
      %v809 = vld [vmem:[%s1 + $0x10c] sm:$0xf]
      %v810 = vld [vmem:[%s1 + $0x110] sm:$0xf]
      %v811 = vld [vmem:[%s1 + $0x114] sm:$0xf]
      %v812 = vld [vmem:[%s1 + $0x118] sm:$0xf]
      %v813 = vld [vmem:[%s1 + $0x11c] sm:$0xf]
      %v814 = vld [vmem:[%s1 + $0x120] sm:$0xf]
      %v815 = vld [vmem:[%s1 + $0x124] sm:$0xf]
      %v816 = vld [vmem:[%s1 + $0x128] sm:$0xf]
      %v817 = vld [vmem:[%s1 + $0x12c] sm:$0xf]
      %v818 = vld [vmem:[%s1 + $0x130] sm:$0xf]
      %v819 = vld [vmem:[%s1 + $0x134] sm:$0xf]
      %v820 = vld [vmem:[%s1 + $0x138] sm:$0xf]
      %v821 = vld [vmem:[%s1 + $0x13c] sm:$0xf]
      %v822 = vld [vmem:[%s1 + $0x140] sm:$0xf]
      %v823 = vld [vmem:[%s1 + $0x144] sm:$0xf]
      %v824 = vld [vmem:[%s1 + $0x148] sm:$0xf]
      %v825 = vld [vmem:[%s1 + $0x14c] sm:$0xf]
      %v826 = vld [vmem:[%s1 + $0x150] sm:$0xf]
      %v827 = vld [vmem:[%s1 + $0x154] sm:$0xf]
      %v828 = vld [vmem:[%s1 + $0x158] sm:$0xf]
      %v829 = vld [vmem:[%s1 + $0x15c] sm:$0xf]
      %v830 = vld [vmem:[%s1 + $0x160] sm:$0xf]
      %v831 = vld [vmem:[%s1 + $0x164] sm:$0xf]
      %v832 = vld [vmem:[%s1 + $0x168] sm:$0xf]
      %v833 = vld [vmem:[%s1 + $0x16c] sm:$0xf]
      %v834 = vld [vmem:[%s1 + $0x170] sm:$0xf]
      %v835 = vld [vmem:[%s1 + $0x174] sm:$0xf]
      %v836 = vld [vmem:[%s1 + $0x178] sm:$0xf]
      %v837 = vld [vmem:[%s1 + $0x17c] sm:$0xf]
      %v838 = vld [vmem:[%s1 + $0x180] sm:$0xf]
      %v839 = vld [vmem:[%s1 + $0x184] sm:$0xf]
      %v840 = vld [vmem:[%s1 + $0x188] sm:$0xf]
      %v841 = vld [vmem:[%s1 + $0x18c] sm:$0xf]
      %v842 = vld [vmem:[%s1 + $0x190] sm:$0xf]
      %v843 = vld [vmem:[%s1 + $0x194] sm:$0xf]
      %v844 = vld [vmem:[%s1 + $0x198] sm:$0xf]
      %v845 = vld [vmem:[%s1 + $0x19c] sm:$0xf]
      %v846 = vld [vmem:[%s1 + $0x1a0] sm:$0xf]
      %v847 = vld [vmem:[%s1 + $0x1a4] sm:$0xf]
      %v848 = vld [vmem:[%s1 + $0x1a8] sm:$0xf]
      %v849 = vld [vmem:[%s1 + $0x1ac] sm:$0xf]
      %v850 = vld [vmem:[%s1 + $0x1b0] sm:$0xf]
      %v851 = vld [vmem:[%s1 + $0x1b4] sm:$0xf]
      %v852 = vld [vmem:[%s1 + $0x1b8] sm:$0xf]
      %v853 = vld [vmem:[%s1 + $0x1bc] sm:$0xf]
      %v854 = vld [vmem:[%s1 + $0x1c0] sm:$0xf]
      %v855 = vld [vmem:[%s1 + $0x1c4] sm:$0xf]
      %v856 = vld [vmem:[%s1 + $0x1c8] sm:$0xf]
      %v857 = vld [vmem:[%s1 + $0x1cc] sm:$0xf]
      %v858 = vld [vmem:[%s1 + $0x1d0] sm:$0xf]
      %v859 = vld [vmem:[%s1 + $0x1d4] sm:$0xf]
      %v860 = vld [vmem:[%s1 + $0x1d8] sm:$0xf]
      %v861 = vld [vmem:[%s1 + $0x1dc] sm:$0xf]
      %v862 = vld [vmem:[%s1 + $0x1e0] sm:$0xf]
      %v863 = vld [vmem:[%s1 + $0x1e4] sm:$0xf]
      %v864 = vld [vmem:[%s1 + $0x1e8] sm:$0xf]
      %v865 = vld [vmem:[%s1 + $0x1ec] sm:$0xf]
      %v866 = vld [vmem:[%s1 + $0x1f0] sm:$0xf]
      %v867 = vld [vmem:[%s1 + $0x1f4] sm:$0xf]
      %v868 = vld [vmem:[%s1 + $0x1f8] sm:$0xf]
      %v869 = vld [vmem:[%s1 + $0x1fc] sm:$0xf]
      %v870 = vld [vmem:[%s1 + $0x200] sm:$0xf]
      %v871 = vld [vmem:[%s1 + $0x204] sm:$0xf]
      %v872 = vld [vmem:[%s1 + $0x208] sm:$0xf]
      %v873 = vld [vmem:[%s1 + $0x20c] sm:$0xf]
      %v874 = vld [vmem:[%s1 + $0x210] sm:$0xf]
      %v875 = vld [vmem:[%s1 + $0x214] sm:$0xf]
      %v876 = vld [vmem:[%s1 + $0x218] sm:$0xf]
      %v877 = vld [vmem:[%s1 + $0x21c] sm:$0xf]
      %v878 = vld [vmem:[%s1 + $0x220] sm:$0xf]
      %v879 = vld [vmem:[%s1 + $0x224] sm:$0xf]
      %v880 = vld [vmem:[%s1 + $0x228] sm:$0xf]
      %v881 = vld [vmem:[%s1 + $0x22c] sm:$0xf]
      %v882 = vld [vmem:[%s1 + $0x230] sm:$0xf]
      %v883 = vld [vmem:[%s1 + $0x234] sm:$0xf]
      %v884 = vld [vmem:[%s1 + $0x238] sm:$0xf]
      %v885 = vld [vmem:[%s1 + $0x23c] sm:$0xf]
      %v886 = vld [vmem:[%s2] sm:$0x1]
      %v888 = vperm.slane %v886, 0
      %v1034 = vunpack.c.l.b16 %v742
      %v1035 = vunpack.c.l.b16 %v743
      %v1036 = vunpack.c.l.b16 %v744
      %v1037 = vunpack.c.l.b16 %v745
      %v1038 = vunpack.c.l.b16 %v746
      %v1039 = vunpack.c.l.b16 %v747
      %v1040 = vunpack.c.l.b16 %v748
      %v1041 = vunpack.c.l.b16 %v749
      %v1042 = vunpack.c.l.b16 %v750
      %v1043 = vunpack.c.l.b16 %v751
      %v1044 = vunpack.c.l.b16 %v752
      %v1045 = vunpack.c.l.b16 %v753
      %v1046 = vunpack.c.l.b16 %v754
      %v1047 = vunpack.c.l.b16 %v755
      %v1048 = vunpack.c.l.b16 %v756
      %v1049 = vunpack.c.l.b16 %v757
      %v1050 = vunpack.c.l.b16 %v758
      %v1051 = vunpack.c.l.b16 %v759
      %v1052 = vunpack.c.l.b16 %v760
      %v1053 = vunpack.c.l.b16 %v761
      %v1054 = vunpack.c.l.b16 %v762
      %v1055 = vunpack.c.l.b16 %v763
      %v1056 = vunpack.c.l.b16 %v764
      %v1057 = vunpack.c.l.b16 %v765
      %v1058 = vunpack.c.l.b16 %v766
      %v1059 = vunpack.c.l.b16 %v767
      %v1060 = vunpack.c.l.b16 %v768
      %v1061 = vunpack.c.l.b16 %v769
      %v1062 = vunpack.c.l.b16 %v770
      %v1063 = vunpack.c.l.b16 %v771
      %v1064 = vunpack.c.l.b16 %v772
      %v1065 = vunpack.c.l.b16 %v773
      %v1066 = vunpack.c.l.b16 %v774
      %v1067 = vunpack.c.l.b16 %v775
      %v1068 = vunpack.c.l.b16 %v776
      %v1069 = vunpack.c.l.b16 %v777
      %v1070 = vunpack.c.l.b16 %v778
      %v1071 = vunpack.c.l.b16 %v779
      %v1072 = vunpack.c.l.b16 %v780
      %v1073 = vunpack.c.l.b16 %v781
      %v1074 = vunpack.c.l.b16 %v782
      %v1075 = vunpack.c.l.b16 %v783
      %v1076 = vunpack.c.l.b16 %v784
      %v1077 = vunpack.c.l.b16 %v785
      %v1078 = vunpack.c.l.b16 %v786
      %v1079 = vunpack.c.l.b16 %v787
      %v1080 = vunpack.c.l.b16 %v788
      %v1081 = vunpack.c.l.b16 %v789
      %v1082 = vunpack.c.l.b16 %v790
      %v1083 = vunpack.c.l.b16 %v791
      %v1084 = vunpack.c.l.b16 %v792
      %v1085 = vunpack.c.l.b16 %v793
      %v1086 = vunpack.c.l.b16 %v794
      %v1087 = vunpack.c.l.b16 %v795
      %v1088 = vunpack.c.l.b16 %v796
      %v1089 = vunpack.c.l.b16 %v797
      %v1090 = vunpack.c.l.b16 %v798
      %v1091 = vunpack.c.l.b16 %v799
      %v1092 = vunpack.c.l.b16 %v800
      %v1093 = vunpack.c.l.b16 %v801
      %v1094 = vunpack.c.l.b16 %v802
      %v1095 = vunpack.c.l.b16 %v803
      %v1096 = vunpack.c.l.b16 %v804
      %v1097 = vunpack.c.l.b16 %v805
      %v1098 = vunpack.c.l.b16 %v806
      %v1099 = vunpack.c.l.b16 %v807
      %v1100 = vunpack.c.l.b16 %v808
      %v1101 = vunpack.c.l.b16 %v809
      %v1102 = vunpack.c.l.b16 %v810
      %v1103 = vunpack.c.l.b16 %v811
      %v1104 = vunpack.c.l.b16 %v812
      %v1105 = vunpack.c.l.b16 %v813
      %v1106 = vunpack.c.l.b16 %v814
      %v1107 = vunpack.c.l.b16 %v815
      %v1108 = vunpack.c.l.b16 %v816
      %v1109 = vunpack.c.l.b16 %v817
      %v1110 = vunpack.c.l.b16 %v818
      %v1111 = vunpack.c.l.b16 %v819
      %v1112 = vunpack.c.l.b16 %v820
      %v1113 = vunpack.c.l.b16 %v821
      %v1114 = vunpack.c.l.b16 %v822
      %v1115 = vunpack.c.l.b16 %v823
      %v1116 = vunpack.c.l.b16 %v824
      %v1117 = vunpack.c.l.b16 %v825
      %v1118 = vunpack.c.l.b16 %v826
      %v1119 = vunpack.c.l.b16 %v827
      %v1120 = vunpack.c.l.b16 %v828
      %v1121 = vunpack.c.l.b16 %v829
      %v1122 = vunpack.c.l.b16 %v830
      %v1123 = vunpack.c.l.b16 %v831
      %v1124 = vunpack.c.l.b16 %v832
      %v1125 = vunpack.c.l.b16 %v833
      %v1126 = vunpack.c.l.b16 %v834
      %v1127 = vunpack.c.l.b16 %v835
      %v1128 = vunpack.c.l.b16 %v836
      %v1129 = vunpack.c.l.b16 %v837
      %v1130 = vunpack.c.l.b16 %v838
      %v1131 = vunpack.c.l.b16 %v839
      %v1132 = vunpack.c.l.b16 %v840
      %v1133 = vunpack.c.l.b16 %v841
      %v1134 = vunpack.c.l.b16 %v842
      %v1135 = vunpack.c.l.b16 %v843
      %v1136 = vunpack.c.l.b16 %v844
      %v1137 = vunpack.c.l.b16 %v845
      %v1138 = vunpack.c.l.b16 %v846
      %v1139 = vunpack.c.l.b16 %v847
      %v1140 = vunpack.c.l.b16 %v848
      %v1141 = vunpack.c.l.b16 %v849
      %v1142 = vunpack.c.l.b16 %v850
      %v1143 = vunpack.c.l.b16 %v851
      %v1144 = vunpack.c.l.b16 %v852
      %v1145 = vunpack.c.l.b16 %v853
      %v1146 = vunpack.c.l.b16 %v854
      %v1147 = vunpack.c.l.b16 %v855
      %v1148 = vunpack.c.l.b16 %v856
      %v1149 = vunpack.c.l.b16 %v857
      %v1150 = vunpack.c.l.b16 %v858
      %v1151 = vunpack.c.l.b16 %v859
      %v1152 = vunpack.c.l.b16 %v860
      %v1153 = vunpack.c.l.b16 %v861
      %v1154 = vunpack.c.l.b16 %v862
      %v1155 = vunpack.c.l.b16 %v863
      %v1156 = vunpack.c.l.b16 %v864
      %v1157 = vunpack.c.l.b16 %v865
      %v1158 = vunpack.c.l.b16 %v866
      %v1159 = vunpack.c.l.b16 %v867
      %v1160 = vunpack.c.l.b16 %v868
      %v1161 = vunpack.c.l.b16 %v869
      %v1162 = vunpack.c.l.b16 %v870
      %v1163 = vunpack.c.l.b16 %v871
      %v1164 = vunpack.c.l.b16 %v872
      %v1165 = vunpack.c.l.b16 %v873
      %v1166 = vunpack.c.l.b16 %v874
      %v1167 = vunpack.c.l.b16 %v875
      %v1168 = vunpack.c.l.b16 %v876
      %v1169 = vunpack.c.l.b16 %v877
      %v1170 = vunpack.c.l.b16 %v878
      %v1171 = vunpack.c.l.b16 %v879
      %v1172 = vunpack.c.l.b16 %v880
      %v1173 = vunpack.c.l.b16 %v881
      %v1174 = vunpack.c.l.b16 %v882
      %v1175 = vunpack.c.l.b16 %v883
      %v1176 = vunpack.c.l.b16 %v884
      %v1177 = vunpack.c.l.b16 %v885
      %v1178 = vpack.c.b16 %v1035, %v1034
      %v1179 = vpack.c.b16 %v1037, %v1036
      %v1180 = vpack.c.b16 %v1039, %v1038
      %v1181 = vpack.c.b16 %v1041, %v1040
      %v1182 = vpack.c.b16 %v1043, %v1042
      %v1183 = vpack.c.b16 %v1045, %v1044
      %v1184 = vpack.c.b16 %v1047, %v1046
      %v1185 = vpack.c.b16 %v1049, %v1048
      %v1186 = vpack.c.b16 %v1051, %v1050
      %v1187 = vpack.c.b16 %v1053, %v1052
      %v1188 = vpack.c.b16 %v1055, %v1054
      %v1189 = vpack.c.b16 %v1057, %v1056
      %v1190 = vpack.c.b16 %v1059, %v1058
      %v1191 = vpack.c.b16 %v1061, %v1060
      %v1192 = vpack.c.b16 %v1063, %v1062
      %v1193 = vpack.c.b16 %v1065, %v1064
      %v1194 = vpack.c.b16 %v1067, %v1066
      %v1195 = vpack.c.b16 %v1069, %v1068
      %v1196 = vpack.c.b16 %v1071, %v1070
      %v1197 = vpack.c.b16 %v1073, %v1072
      %v1198 = vpack.c.b16 %v1075, %v1074
      %v1199 = vpack.c.b16 %v1077, %v1076
      %v1200 = vpack.c.b16 %v1079, %v1078
      %v1201 = vpack.c.b16 %v1081, %v1080
      %v1202 = vpack.c.b16 %v1083, %v1082
      %v1203 = vpack.c.b16 %v1085, %v1084
      %v1204 = vpack.c.b16 %v1087, %v1086
      %v1205 = vpack.c.b16 %v1089, %v1088
      %v1206 = vpack.c.b16 %v1091, %v1090
      %v1207 = vpack.c.b16 %v1093, %v1092
      %v1208 = vpack.c.b16 %v1095, %v1094
      %v1209 = vpack.c.b16 %v1097, %v1096
      %v1210 = vpack.c.b16 %v1099, %v1098
      %v1211 = vpack.c.b16 %v1101, %v1100
      %v1212 = vpack.c.b16 %v1103, %v1102
      %v1213 = vpack.c.b16 %v1105, %v1104
      %v1214 = vpack.c.b16 %v1107, %v1106
      %v1215 = vpack.c.b16 %v1109, %v1108
      %v1216 = vpack.c.b16 %v1111, %v1110
      %v1217 = vpack.c.b16 %v1113, %v1112
      %v1218 = vpack.c.b16 %v1115, %v1114
      %v1219 = vpack.c.b16 %v1117, %v1116
      %v1220 = vpack.c.b16 %v1119, %v1118
      %v1221 = vpack.c.b16 %v1121, %v1120
      %v1222 = vpack.c.b16 %v1123, %v1122
      %v1223 = vpack.c.b16 %v1125, %v1124
      %v1224 = vpack.c.b16 %v1127, %v1126
      %v1225 = vpack.c.b16 %v1129, %v1128
      %v1226 = vpack.c.b16 %v1131, %v1130
      %v1227 = vpack.c.b16 %v1133, %v1132
      %v1228 = vpack.c.b16 %v1135, %v1134
      %v1229 = vpack.c.b16 %v1137, %v1136
      %v1230 = vpack.c.b16 %v1139, %v1138
      %v1231 = vpack.c.b16 %v1141, %v1140
      %v1232 = vpack.c.b16 %v1143, %v1142
      %v1233 = vpack.c.b16 %v1145, %v1144
      %v1234 = vpack.c.b16 %v1147, %v1146
      %v1235 = vpack.c.b16 %v1149, %v1148
      %v1236 = vpack.c.b16 %v1151, %v1150
      %v1237 = vpack.c.b16 %v1153, %v1152
      %v1238 = vpack.c.b16 %v1155, %v1154
      %v1239 = vpack.c.b16 %v1157, %v1156
      %v1240 = vpack.c.b16 %v1159, %v1158
      %v1241 = vpack.c.b16 %v1161, %v1160
      %v1242 = vpack.c.b16 %v1163, %v1162
      %v1243 = vpack.c.b16 %v1165, %v1164
      %v1244 = vpack.c.b16 %v1167, %v1166
      %v1245 = vpack.c.b16 %v1169, %v1168
      %v1246 = vpack.c.b16 %v1171, %v1170
      %v1247 = vpack.c.b16 %v1173, %v1172
      %v1248 = vpack.c.b16 %v1175, %v1174
      %v1249 = vpack.c.b16 %v1177, %v1176
      %1322 = vmatpush.bf16.msra.mxu0 %v1185
      %1323 = vmatpush.bf16.msra.mxu0 %v1184
      %1324 = vmatpush.bf16.msra.mxu0 %v1183
      %1325 = vmatpush.bf16.msra.mxu0 %v1182
      %1326 = vmatpush.bf16.msra.mxu0 %v1181
      %1327 = vmatpush.bf16.msra.mxu0 %v1180
      %1328 = vmatpush.bf16.msra.mxu0 %v1179
      %1329 = vmatpush.bf16.msra.mxu0 %v1178
      %1330 = vmatmul.bf16.gmra.mxu0 %v638
      %v1331 = vpop.f32.mrf.mxu0
      %v1332 = vadd.f32 %v888, %v1331
      %v1333 = vpop.f32.mrf.mxu0
      %v1334 = vadd.f32 %v888, %v1333
      %1335 = vmatmul.bf16.gmra.mxu0 %v639
      %v1336 = vpop.f32.mrf.mxu0
      %v1337 = vadd.f32 %v888, %v1336
      %v1338 = vpop.f32.mrf.mxu0
      %v1339 = vadd.f32 %v888, %v1338
      %1340 = vmatmul.bf16.gmra.mxu0 %v640
      %v1341 = vpop.f32.mrf.mxu0
      %v1342 = vadd.f32 %v888, %v1341
      %v1343 = vpop.f32.mrf.mxu0
      %v1344 = vadd.f32 %v888, %v1343
      %1345 = vmatmul.bf16.gmra.mxu0 %v641
      %v1346 = vpop.f32.mrf.mxu0
      %v1347 = vadd.f32 %v888, %v1346
      %v1348 = vpop.f32.mrf.mxu0
      %v1349 = vadd.f32 %v888, %v1348
      %1350 = vmatmul.bf16.gmra.mxu0 %v642
      %v1351 = vpop.f32.mrf.mxu0
      %v1352 = vadd.f32 %v888, %v1351
      %v1353 = vpop.f32.mrf.mxu0
      %v1354 = vadd.f32 %v888, %v1353
      %1355 = vmatmul.bf16.gmra.mxu0 %v643
      %v1356 = vpop.f32.mrf.mxu0
      %v1357 = vadd.f32 %v888, %v1356
      %v1358 = vpop.f32.mrf.mxu0
      %v1359 = vadd.f32 %v888, %v1358
      %1360 = vmatmul.bf16.gmra.mxu0 %v644
      %v1361 = vpop.f32.mrf.mxu0
      %v1362 = vadd.f32 %v888, %v1361
      %v1363 = vpop.f32.mrf.mxu0
      %v1364 = vadd.f32 %v888, %v1363
      %1365 = vmatmul.bf16.gmra.mxu0 %v645
      %v1366 = vpop.f32.mrf.mxu0
      %v1367 = vadd.f32 %v888, %v1366
      %v1368 = vpop.f32.mrf.mxu0
      %v1369 = vadd.f32 %v888, %v1368
      %1370 = vdwg.mxu0
      %1371 = vmatpush.bf16.msra.mxu0 %v1193
      %1372 = vmatpush.bf16.msra.mxu0 %v1192
      %1373 = vmatpush.bf16.msra.mxu0 %v1191
      %1374 = vmatpush.bf16.msra.mxu0 %v1190
      %1375 = vmatpush.bf16.msra.mxu0 %v1189
      %1376 = vmatpush.bf16.msra.mxu0 %v1188
      %1377 = vmatpush.bf16.msra.mxu0 %v1187
      %1378 = vmatpush.bf16.msra.mxu0 %v1186
      %1379 = vmatmul.bf16.gmra.mxu0 %v670
      %v1380 = vpop.f32.mrf.mxu0
      %v1381 = vadd.f32 %v1332, %v1380
      %v1382 = vpop.f32.mrf.mxu0
      %v1383 = vadd.f32 %v1334, %v1382
      %1384 = vmatmul.bf16.gmra.mxu0 %v671
      %v1385 = vpop.f32.mrf.mxu0
      %v1386 = vadd.f32 %v1337, %v1385
      %v1387 = vpop.f32.mrf.mxu0
      %v1388 = vadd.f32 %v1339, %v1387
      %1389 = vmatmul.bf16.gmra.mxu0 %v672
      %v1390 = vpop.f32.mrf.mxu0
      %v1391 = vadd.f32 %v1342, %v1390
      %v1392 = vpop.f32.mrf.mxu0
      %v1393 = vadd.f32 %v1344, %v1392
      %1394 = vmatmul.bf16.gmra.mxu0 %v673
      %v1395 = vpop.f32.mrf.mxu0
      %v1396 = vadd.f32 %v1347, %v1395
      %v1397 = vpop.f32.mrf.mxu0
      %v1398 = vadd.f32 %v1349, %v1397
      %1399 = vmatmul.bf16.gmra.mxu0 %v674
      %v1400 = vpop.f32.mrf.mxu0
      %v1401 = vadd.f32 %v1352, %v1400
      %v1402 = vpop.f32.mrf.mxu0
      %v1403 = vadd.f32 %v1354, %v1402
      %1404 = vmatmul.bf16.gmra.mxu0 %v675
      %v1405 = vpop.f32.mrf.mxu0
      %v1406 = vadd.f32 %v1357, %v1405
      %v1407 = vpop.f32.mrf.mxu0
      %v1408 = vadd.f32 %v1359, %v1407
      %1409 = vmatmul.bf16.gmra.mxu0 %v676
      %v1410 = vpop.f32.mrf.mxu0
      %v1411 = vadd.f32 %v1362, %v1410
      %v1412 = vpop.f32.mrf.mxu0
      %v1413 = vadd.f32 %v1364, %v1412
      %1414 = vmatmul.bf16.gmra.mxu0 %v677
      %v1415 = vpop.f32.mrf.mxu0
      %v1416 = vadd.f32 %v1367, %v1415
      %v1417 = vpop.f32.mrf.mxu0
      %v1418 = vadd.f32 %v1369, %v1417
      %1419 = vdwg.mxu0
      %1420 = vmatpush.bf16.msra.mxu0 %v1201
      %1421 = vmatpush.bf16.msra.mxu0 %v1200
      %1422 = vmatpush.bf16.msra.mxu0 %v1199
      %1423 = vmatpush.bf16.msra.mxu0 %v1198
      %1424 = vmatpush.bf16.msra.mxu0 %v1197
      %1425 = vmatpush.bf16.msra.mxu0 %v1196
      %1426 = vmatpush.bf16.msra.mxu0 %v1195
      %1427 = vmatpush.bf16.msra.mxu0 %v1194
      %1428 = vmatmul.bf16.gmra.mxu0 %v702
      %v1429 = vpop.f32.mrf.mxu0
      %v1430 = vadd.f32 %v1381, %v1429
      %v1431 = vpop.f32.mrf.mxu0
      %v1432 = vadd.f32 %v1383, %v1431
      %1433 = vmatmul.bf16.gmra.mxu0 %v703
      %v1434 = vpop.f32.mrf.mxu0
      %v1435 = vadd.f32 %v1386, %v1434
      %v1436 = vpop.f32.mrf.mxu0
      %v1437 = vadd.f32 %v1388, %v1436
      %1438 = vmatmul.bf16.gmra.mxu0 %v704
      %v1439 = vpop.f32.mrf.mxu0
      %v1440 = vadd.f32 %v1391, %v1439
      %v1441 = vpop.f32.mrf.mxu0
      %v1442 = vadd.f32 %v1393, %v1441
      %1443 = vmatmul.bf16.gmra.mxu0 %v705
      %v1444 = vpop.f32.mrf.mxu0
      %v1445 = vadd.f32 %v1396, %v1444
      %v1446 = vpop.f32.mrf.mxu0
      %v1447 = vadd.f32 %v1398, %v1446
      %1448 = vmatmul.bf16.gmra.mxu0 %v706
      %v1449 = vpop.f32.mrf.mxu0
      %v1450 = vadd.f32 %v1401, %v1449
      %v1451 = vpop.f32.mrf.mxu0
      %v1452 = vadd.f32 %v1403, %v1451
      %1453 = vmatmul.bf16.gmra.mxu0 %v707
      %v1454 = vpop.f32.mrf.mxu0
      %v1455 = vadd.f32 %v1406, %v1454
      %v1456 = vpop.f32.mrf.mxu0
      %v1457 = vadd.f32 %v1408, %v1456
      %1458 = vmatmul.bf16.gmra.mxu0 %v708
      %v1459 = vpop.f32.mrf.mxu0
      %v1460 = vadd.f32 %v1411, %v1459
      %v1461 = vpop.f32.mrf.mxu0
      %v1462 = vadd.f32 %v1413, %v1461
      %1463 = vmatmul.bf16.gmra.mxu0 %v709
      %v1464 = vpop.f32.mrf.mxu0
      %v1465 = vadd.f32 %v1416, %v1464
      %v1466 = vpop.f32.mrf.mxu0
      %v1467 = vadd.f32 %v1418, %v1466
      %1468 = vdwg.mxu0
      %1469 = vmatpush.bf16.msra.mxu0 %v1209
      %1470 = vmatpush.bf16.msra.mxu0 %v1208
      %1471 = vmatpush.bf16.msra.mxu0 %v1207
      %1472 = vmatpush.bf16.msra.mxu0 %v1206
      %1473 = vmatpush.bf16.msra.mxu0 %v1205
      %1474 = vmatpush.bf16.msra.mxu0 %v1204
      %1475 = vmatpush.bf16.msra.mxu0 %v1203
      %1476 = vmatpush.bf16.msra.mxu0 %v1202
      %1477 = vmatmul.bf16.gmra.mxu0 %v639
      %v1478 = vpop.f32.mrf.mxu0
      %v1479 = vadd.f32 %v1430, %v1478
      %v1480 = vpop.f32.mrf.mxu0
      %v1481 = vadd.f32 %v1432, %v1480
      %1482 = vmatmul.bf16.gmra.mxu0 %v640
      %v1483 = vpop.f32.mrf.mxu0
      %v1484 = vadd.f32 %v1435, %v1483
      %v1485 = vpop.f32.mrf.mxu0
      %v1486 = vadd.f32 %v1437, %v1485
      %1487 = vmatmul.bf16.gmra.mxu0 %v641
      %v1488 = vpop.f32.mrf.mxu0
      %v1489 = vadd.f32 %v1440, %v1488
      %v1490 = vpop.f32.mrf.mxu0
      %v1491 = vadd.f32 %v1442, %v1490
      %1492 = vmatmul.bf16.gmra.mxu0 %v642
      %v1493 = vpop.f32.mrf.mxu0
      %v1494 = vadd.f32 %v1445, %v1493
      %v1495 = vpop.f32.mrf.mxu0
      %v1496 = vadd.f32 %v1447, %v1495
      %1497 = vmatmul.bf16.gmra.mxu0 %v643
      %v1498 = vpop.f32.mrf.mxu0
      %v1499 = vadd.f32 %v1450, %v1498
      %v1500 = vpop.f32.mrf.mxu0
      %v1501 = vadd.f32 %v1452, %v1500
      %1502 = vmatmul.bf16.gmra.mxu0 %v644
      %v1503 = vpop.f32.mrf.mxu0
      %v1504 = vadd.f32 %v1455, %v1503
      %v1505 = vpop.f32.mrf.mxu0
      %v1506 = vadd.f32 %v1457, %v1505
      %1507 = vmatmul.bf16.gmra.mxu0 %v645
      %v1508 = vpop.f32.mrf.mxu0
      %v1509 = vadd.f32 %v1460, %v1508
      %v1510 = vpop.f32.mrf.mxu0
      %v1511 = vadd.f32 %v1462, %v1510
      %1512 = vmatmul.bf16.gmra.mxu0 %v720
      %v1513 = vpop.f32.mrf.mxu0
      %v1514 = vadd.f32 %v1465, %v1513
      %v1515 = vpop.f32.mrf.mxu0
      %v1516 = vadd.f32 %v1467, %v1515
      %1517 = vdwg.mxu0
      %1518 = vmatpush.bf16.msra.mxu0 %v1217
      %1519 = vmatpush.bf16.msra.mxu0 %v1216
      %1520 = vmatpush.bf16.msra.mxu0 %v1215
      %1521 = vmatpush.bf16.msra.mxu0 %v1214
      %1522 = vmatpush.bf16.msra.mxu0 %v1213
      %1523 = vmatpush.bf16.msra.mxu0 %v1212
      %1524 = vmatpush.bf16.msra.mxu0 %v1211
      %1525 = vmatpush.bf16.msra.mxu0 %v1210
      %1526 = vmatmul.bf16.gmra.mxu0 %v671
      %v1527 = vpop.f32.mrf.mxu0
      %v1528 = vadd.f32 %v1479, %v1527
      %v1529 = vpop.f32.mrf.mxu0
      %v1530 = vadd.f32 %v1481, %v1529
      %1531 = vmatmul.bf16.gmra.mxu0 %v672
      %v1532 = vpop.f32.mrf.mxu0
      %v1533 = vadd.f32 %v1484, %v1532
      %v1534 = vpop.f32.mrf.mxu0
      %v1535 = vadd.f32 %v1486, %v1534
      %1536 = vmatmul.bf16.gmra.mxu0 %v673
      %v1537 = vpop.f32.mrf.mxu0
      %v1538 = vadd.f32 %v1489, %v1537
      %v1539 = vpop.f32.mrf.mxu0
      %v1540 = vadd.f32 %v1491, %v1539
      %1541 = vmatmul.bf16.gmra.mxu0 %v674
      %v1542 = vpop.f32.mrf.mxu0
      %v1543 = vadd.f32 %v1494, %v1542
      %v1544 = vpop.f32.mrf.mxu0
      %v1545 = vadd.f32 %v1496, %v1544
      %1546 = vmatmul.bf16.gmra.mxu0 %v675
      %v1547 = vpop.f32.mrf.mxu0
      %v1548 = vadd.f32 %v1499, %v1547
      %v1549 = vpop.f32.mrf.mxu0
      %v1550 = vadd.f32 %v1501, %v1549
      %1551 = vmatmul.bf16.gmra.mxu0 %v676
      %v1552 = vpop.f32.mrf.mxu0
      %v1553 = vadd.f32 %v1504, %v1552
      %v1554 = vpop.f32.mrf.mxu0
      %v1555 = vadd.f32 %v1506, %v1554
      %1556 = vmatmul.bf16.gmra.mxu0 %v677
      %v1557 = vpop.f32.mrf.mxu0
      %v1558 = vadd.f32 %v1509, %v1557
      %v1559 = vpop.f32.mrf.mxu0
      %v1560 = vadd.f32 %v1511, %v1559
      %1561 = vmatmul.bf16.gmra.mxu0 %v724
      %v1562 = vpop.f32.mrf.mxu0
      %v1563 = vadd.f32 %v1514, %v1562
      %v1564 = vpop.f32.mrf.mxu0
      %v1565 = vadd.f32 %v1516, %v1564
      %1566 = vdwg.mxu0
      %1567 = vmatpush.bf16.msra.mxu0 %v1225
      %1568 = vmatpush.bf16.msra.mxu0 %v1224
      %1569 = vmatpush.bf16.msra.mxu0 %v1223
      %1570 = vmatpush.bf16.msra.mxu0 %v1222
      %1571 = vmatpush.bf16.msra.mxu0 %v1221
      %1572 = vmatpush.bf16.msra.mxu0 %v1220
      %1573 = vmatpush.bf16.msra.mxu0 %v1219
      %1574 = vmatpush.bf16.msra.mxu0 %v1218
      %1575 = vmatmul.bf16.gmra.mxu0 %v703
      %v1576 = vpop.f32.mrf.mxu0
      %v1577 = vadd.f32 %v1528, %v1576
      %v1578 = vpop.f32.mrf.mxu0
      %v1579 = vadd.f32 %v1530, %v1578
      %1580 = vmatmul.bf16.gmra.mxu0 %v704
      %v1581 = vpop.f32.mrf.mxu0
      %v1582 = vadd.f32 %v1533, %v1581
      %v1583 = vpop.f32.mrf.mxu0
      %v1584 = vadd.f32 %v1535, %v1583
      %1585 = vmatmul.bf16.gmra.mxu0 %v705
      %v1586 = vpop.f32.mrf.mxu0
      %v1587 = vadd.f32 %v1538, %v1586
      %v1588 = vpop.f32.mrf.mxu0
      %v1589 = vadd.f32 %v1540, %v1588
      %1590 = vmatmul.bf16.gmra.mxu0 %v706
      %v1591 = vpop.f32.mrf.mxu0
      %v1592 = vadd.f32 %v1543, %v1591
      %v1593 = vpop.f32.mrf.mxu0
      %v1594 = vadd.f32 %v1545, %v1593
      %1595 = vmatmul.bf16.gmra.mxu0 %v707
      %v1596 = vpop.f32.mrf.mxu0
      %v1597 = vadd.f32 %v1548, %v1596
      %v1598 = vpop.f32.mrf.mxu0
      %v1599 = vadd.f32 %v1550, %v1598
      %1600 = vmatmul.bf16.gmra.mxu0 %v708
      %v1601 = vpop.f32.mrf.mxu0
      %v1602 = vadd.f32 %v1553, %v1601
      %v1603 = vpop.f32.mrf.mxu0
      %v1604 = vadd.f32 %v1555, %v1603
      %1605 = vmatmul.bf16.gmra.mxu0 %v709
      %v1606 = vpop.f32.mrf.mxu0
      %v1607 = vadd.f32 %v1558, %v1606
      %v1608 = vpop.f32.mrf.mxu0
      %v1609 = vadd.f32 %v1560, %v1608
      %1610 = vmatmul.bf16.gmra.mxu0 %v728
      %v1611 = vpop.f32.mrf.mxu0
      %v1612 = vadd.f32 %v1563, %v1611
      %v1613 = vpop.f32.mrf.mxu0
      %v1614 = vadd.f32 %v1565, %v1613
      %1615 = vdwg.mxu0
      %1616 = vmatpush.bf16.msra.mxu0 %v1233
      %1617 = vmatpush.bf16.msra.mxu0 %v1232
      %1618 = vmatpush.bf16.msra.mxu0 %v1231
      %1619 = vmatpush.bf16.msra.mxu0 %v1230
      %1620 = vmatpush.bf16.msra.mxu0 %v1229
      %1621 = vmatpush.bf16.msra.mxu0 %v1228
      %1622 = vmatpush.bf16.msra.mxu0 %v1227
      %1623 = vmatpush.bf16.msra.mxu0 %v1226
      %1624 = vmatmul.bf16.gmra.mxu0 %v640
      %v1625 = vpop.f32.mrf.mxu0
      %v1626 = vadd.f32 %v1577, %v1625
      %v1627 = vpop.f32.mrf.mxu0
      %v1628 = vadd.f32 %v1579, %v1627
      %1629 = vmatmul.bf16.gmra.mxu0 %v641
      %v1630 = vpop.f32.mrf.mxu0
      %v1631 = vadd.f32 %v1582, %v1630
      %v1632 = vpop.f32.mrf.mxu0
      %v1633 = vadd.f32 %v1584, %v1632
      %1634 = vmatmul.bf16.gmra.mxu0 %v642
      %v1635 = vpop.f32.mrf.mxu0
      %v1636 = vadd.f32 %v1587, %v1635
      %v1637 = vpop.f32.mrf.mxu0
      %v1638 = vadd.f32 %v1589, %v1637
      %1639 = vmatmul.bf16.gmra.mxu0 %v643
      %v1640 = vpop.f32.mrf.mxu0
      %v1641 = vadd.f32 %v1592, %v1640
      %v1642 = vpop.f32.mrf.mxu0
      %v1643 = vadd.f32 %v1594, %v1642
      %1644 = vmatmul.bf16.gmra.mxu0 %v644
      %v1645 = vpop.f32.mrf.mxu0
      %v1646 = vadd.f32 %v1597, %v1645
      %v1647 = vpop.f32.mrf.mxu0
      %v1648 = vadd.f32 %v1599, %v1647
      %1649 = vmatmul.bf16.gmra.mxu0 %v645
      %v1650 = vpop.f32.mrf.mxu0
      %v1651 = vadd.f32 %v1602, %v1650
      %v1652 = vpop.f32.mrf.mxu0
      %v1653 = vadd.f32 %v1604, %v1652
      %1654 = vmatmul.bf16.gmra.mxu0 %v720
      %v1655 = vpop.f32.mrf.mxu0
      %v1656 = vadd.f32 %v1607, %v1655
      %v1657 = vpop.f32.mrf.mxu0
      %v1658 = vadd.f32 %v1609, %v1657
      %1659 = vmatmul.bf16.gmra.mxu0 %v732
      %v1660 = vpop.f32.mrf.mxu0
      %v1661 = vadd.f32 %v1612, %v1660
      %v1662 = vpop.f32.mrf.mxu0
      %v1663 = vadd.f32 %v1614, %v1662
      %1664 = vdwg.mxu0
      %1665 = vmatpush.bf16.msra.mxu0 %v1241
      %1666 = vmatpush.bf16.msra.mxu0 %v1240
      %1667 = vmatpush.bf16.msra.mxu0 %v1239
      %1668 = vmatpush.bf16.msra.mxu0 %v1238
      %1669 = vmatpush.bf16.msra.mxu0 %v1237
      %1670 = vmatpush.bf16.msra.mxu0 %v1236
      %1671 = vmatpush.bf16.msra.mxu0 %v1235
      %1672 = vmatpush.bf16.msra.mxu0 %v1234
      %1673 = vmatmul.bf16.gmra.mxu0 %v672
      %v1674 = vpop.f32.mrf.mxu0
      %v1675 = vadd.f32 %v1626, %v1674
      %v1676 = vpop.f32.mrf.mxu0
      %v1677 = vadd.f32 %v1628, %v1676
      %1678 = vmatmul.bf16.gmra.mxu0 %v673
      %v1679 = vpop.f32.mrf.mxu0
      %v1680 = vadd.f32 %v1631, %v1679
      %v1681 = vpop.f32.mrf.mxu0
      %v1682 = vadd.f32 %v1633, %v1681
      %1683 = vmatmul.bf16.gmra.mxu0 %v674
      %v1684 = vpop.f32.mrf.mxu0
      %v1685 = vadd.f32 %v1636, %v1684
      %v1686 = vpop.f32.mrf.mxu0
      %v1687 = vadd.f32 %v1638, %v1686
      %1688 = vmatmul.bf16.gmra.mxu0 %v675
      %v1689 = vpop.f32.mrf.mxu0
      %v1690 = vadd.f32 %v1641, %v1689
      %v1691 = vpop.f32.mrf.mxu0
      %v1692 = vadd.f32 %v1643, %v1691
      %1693 = vmatmul.bf16.gmra.mxu0 %v676
      %v1694 = vpop.f32.mrf.mxu0
      %v1695 = vadd.f32 %v1646, %v1694
      %v1696 = vpop.f32.mrf.mxu0
      %v1697 = vadd.f32 %v1648, %v1696
      %1698 = vmatmul.bf16.gmra.mxu0 %v677
      %v1699 = vpop.f32.mrf.mxu0
      %v1700 = vadd.f32 %v1651, %v1699
      %v1701 = vpop.f32.mrf.mxu0
      %v1702 = vadd.f32 %v1653, %v1701
      %1703 = vmatmul.bf16.gmra.mxu0 %v724
      %v1704 = vpop.f32.mrf.mxu0
      %v1705 = vadd.f32 %v1656, %v1704
      %v1706 = vpop.f32.mrf.mxu0
      %v1707 = vadd.f32 %v1658, %v1706
      %1708 = vmatmul.bf16.gmra.mxu0 %v736
      %v1709 = vpop.f32.mrf.mxu0
      %v1710 = vadd.f32 %v1661, %v1709
      %v1711 = vpop.f32.mrf.mxu0
      %v1712 = vadd.f32 %v1663, %v1711
      %1713 = vdwg.mxu0
      %1714 = vmatpush.bf16.msra.mxu0 %v1249
      %1715 = vmatpush.bf16.msra.mxu0 %v1248
      %1716 = vmatpush.bf16.msra.mxu0 %v1247
      %1717 = vmatpush.bf16.msra.mxu0 %v1246
      %1718 = vmatpush.bf16.msra.mxu0 %v1245
      %1719 = vmatpush.bf16.msra.mxu0 %v1244
      %1720 = vmatpush.bf16.msra.mxu0 %v1243
      %1721 = vmatpush.bf16.msra.mxu0 %v1242
      %1722 = vmatmul.bf16.gmra.mxu0 %v704
      %v1723 = vpop.f32.mrf.mxu0
      %v1724 = vadd.f32 %v1675, %v1723
      %v1725 = vpop.f32.mrf.mxu0
      %v1726 = vadd.f32 %v1677, %v1725
      %1727 = vmatmul.bf16.gmra.mxu0 %v705
      %v1728 = vpop.f32.mrf.mxu0
      %v1729 = vadd.f32 %v1680, %v1728
      %v1730 = vpop.f32.mrf.mxu0
      %v1731 = vadd.f32 %v1682, %v1730
      %1732 = vmatmul.bf16.gmra.mxu0 %v706
      %v1733 = vpop.f32.mrf.mxu0
      %v1734 = vadd.f32 %v1685, %v1733
      %v1735 = vpop.f32.mrf.mxu0
      %v1736 = vadd.f32 %v1687, %v1735
      %1737 = vmatmul.bf16.gmra.mxu0 %v707
      %v1738 = vpop.f32.mrf.mxu0
      %v1739 = vadd.f32 %v1690, %v1738
      %v1740 = vpop.f32.mrf.mxu0
      %v1741 = vadd.f32 %v1692, %v1740
      %1742 = vmatmul.bf16.gmra.mxu0 %v708
      %v1743 = vpop.f32.mrf.mxu0
      %v1744 = vadd.f32 %v1695, %v1743
      %v1745 = vpop.f32.mrf.mxu0
      %v1746 = vadd.f32 %v1697, %v1745
      %1747 = vmatmul.bf16.gmra.mxu0 %v709
      %v1748 = vpop.f32.mrf.mxu0
      %v1749 = vadd.f32 %v1700, %v1748
      %v1750 = vpop.f32.mrf.mxu0
      %v1751 = vadd.f32 %v1702, %v1750
      %1752 = vmatmul.bf16.gmra.mxu0 %v728
      %v1753 = vpop.f32.mrf.mxu0
      %v1754 = vadd.f32 %v1705, %v1753
      %v1755 = vpop.f32.mrf.mxu0
      %v1756 = vadd.f32 %v1707, %v1755
      %1757 = vmatmul.bf16.gmra.mxu0 %v740
      %v1758 = vpop.f32.mrf.mxu0
      %v1759 = vadd.f32 %v1710, %v1758
      %v1760 = vpop.f32.mrf.mxu0
      %v1761 = vadd.f32 %v1712, %v1760
      %1762 = vdwg.mxu0
      %v1763 = vmax.f32 %v1724, 0.0
      %v1764 = vmax.f32 %v1726, 0.0
      %v1765 = vmax.f32 %v1729, 0.0
      %v1766 = vmax.f32 %v1731, 0.0
      %v1767 = vmax.f32 %v1734, 0.0
      %v1768 = vmax.f32 %v1736, 0.0
      %v1769 = vmax.f32 %v1739, 0.0
      %v1770 = vmax.f32 %v1741, 0.0
      %v1771 = vmax.f32 %v1744, 0.0
      %v1772 = vmax.f32 %v1746, 0.0
      %v1773 = vmax.f32 %v1749, 0.0
      %v1774 = vmax.f32 %v1751, 0.0
      %v1775 = vmax.f32 %v1754, 0.0
      %v1776 = vmax.f32 %v1756, 0.0
      %v1777 = vmax.f32 %v1759, 0.0
      %v1778 = vmax.f32 %v1761, 0.0
      %v1779 = vpack.c.bf16 %v1763, %v1763
      %v1780 = vpack.c.bf16 %v1764, %v1764
      %v1781 = vpack.c.bf16 %v1765, %v1765
      %v1782 = vpack.c.bf16 %v1766, %v1766
      %v1783 = vpack.c.bf16 %v1767, %v1767
      %v1784 = vpack.c.bf16 %v1768, %v1768
      %v1785 = vpack.c.bf16 %v1769, %v1769
      %v1786 = vpack.c.bf16 %v1770, %v1770
      %v1787 = vpack.c.bf16 %v1771, %v1771
      %v1788 = vpack.c.bf16 %v1772, %v1772
      %v1789 = vpack.c.bf16 %v1773, %v1773
      %v1790 = vpack.c.bf16 %v1774, %v1774
      %v1791 = vpack.c.bf16 %v1775, %v1775
      %v1792 = vpack.c.bf16 %v1776, %v1776
      %v1793 = vpack.c.bf16 %v1777, %v1777
      %v1794 = vpack.c.bf16 %v1778, %v1778
      %1795 = vst [vmem:[%s232] sm:$0xf] %v1779
      %1796 = vst [vmem:[%s232 + $0x4] sm:$0xf] %v1780
      %1797 = vst [vmem:[%s232 + $0x8] sm:$0xf] %v1781
      %1798 = vst [vmem:[%s232 + $0xc] sm:$0xf] %v1782
      %1799 = vst [vmem:[%s232 + $0x10] sm:$0xf] %v1783
      %1800 = vst [vmem:[%s232 + $0x14] sm:$0xf] %v1784
      %1801 = vst [vmem:[%s232 + $0x18] sm:$0xf] %v1785
      %1802 = vst [vmem:[%s232 + $0x1c] sm:$0xf] %v1786
      %1803 = vst [vmem:[%s232 + $0x20] sm:$0xf] %v1787
      %1804 = vst [vmem:[%s232 + $0x24] sm:$0xf] %v1788
      %1805 = vst [vmem:[%s232 + $0x28] sm:$0xf] %v1789
      %1806 = vst [vmem:[%s232 + $0x2c] sm:$0xf] %v1790
      %1807 = vst [vmem:[%s232 + $0x30] sm:$0xf] %v1791
      %1808 = vst [vmem:[%s232 + $0x34] sm:$0xf] %v1792
      %1809 = vst [vmem:[%s232 + $0x38] sm:$0xf] %v1793
      %1810 = vst [vmem:[%s232 + $0x3c] sm:$0xf] %v1794
      %v1811 = vadd.f32 %v1763, %v1764
      %v1812 = vadd.f32 %v1811, %v1765
      %v1813 = vadd.f32 %v1812, %v1766
      %v1814 = vadd.f32 %v1813, %v1767
      %v1815 = vadd.f32 %v1814, %v1768
      %v1816 = vadd.f32 %v1815, %v1769
      %v1817 = vadd.f32 %v1816, %v1770
      %v1818 = vadd.f32 %v1817, %v1771
      %v1819 = vadd.f32 %v1818, %v1772
      %v1820 = vadd.f32 %v1819, %v1773
      %v1821 = vadd.f32 %v1820, %v1774
      %v1822 = vadd.f32 %v1821, %v1775
      %v1823 = vadd.f32 %v1822, %v1776
      %v1824 = vadd.f32 %v1823, %v1777
      %v1825 = vadd.f32 %v1824, %v1778
      %v1826 = vrot.slane %v1825, 4
      %v1827 = vadd.f32 %v1825, %v1826
      %v1828 = vrot.slane %v1827, 2
      %v1829 = vadd.f32 %v1827, %v1828
      %v1830 = vrot.slane %v1829, 1
      %v1831 = vadd.f32 %v1829, %v1830
      %v1832 = vmul.f32 %v1831, 0.0078125
      %v1833 = vsub.f32 %v1763, %v1832
      %v1834 = vsub.f32 %v1764, %v1832
      %v1835 = vsub.f32 %v1765, %v1832
      %v1836 = vsub.f32 %v1766, %v1832
      %v1837 = vsub.f32 %v1767, %v1832
      %v1838 = vsub.f32 %v1768, %v1832
      %v1839 = vsub.f32 %v1769, %v1832
      %v1840 = vsub.f32 %v1770, %v1832
      %v1841 = vsub.f32 %v1771, %v1832
      %v1842 = vsub.f32 %v1772, %v1832
      %v1843 = vsub.f32 %v1773, %v1832
      %v1844 = vsub.f32 %v1774, %v1832
      %v1845 = vsub.f32 %v1775, %v1832
      %v1846 = vsub.f32 %v1776, %v1832
      %v1847 = vsub.f32 %v1777, %v1832
      %v1848 = vsub.f32 %v1778, %v1832
      %v1849 = vmul.f32 %v1833, %v1833
      %v1850 = vmul.f32 %v1834, %v1834
      %v1851 = vmul.f32 %v1835, %v1835
      %v1852 = vmul.f32 %v1836, %v1836
      %v1853 = vmul.f32 %v1837, %v1837
      %v1854 = vmul.f32 %v1838, %v1838
      %v1855 = vmul.f32 %v1839, %v1839
      %v1856 = vmul.f32 %v1840, %v1840
      %v1857 = vmul.f32 %v1841, %v1841
      %v1858 = vmul.f32 %v1842, %v1842
      %v1859 = vmul.f32 %v1843, %v1843
      %v1860 = vmul.f32 %v1844, %v1844
      %v1861 = vmul.f32 %v1845, %v1845
      %v1862 = vmul.f32 %v1846, %v1846
      %v1863 = vmul.f32 %v1847, %v1847
      %v1864 = vmul.f32 %v1848, %v1848
      %v1865 = vadd.f32 %v1849, %v1850
      %v1866 = vadd.f32 %v1865, %v1851
      %v1867 = vadd.f32 %v1866, %v1852
      %v1868 = vadd.f32 %v1867, %v1853
      %v1869 = vadd.f32 %v1868, %v1854
      %v1870 = vadd.f32 %v1869, %v1855
      %v1871 = vadd.f32 %v1870, %v1856
      %v1872 = vadd.f32 %v1871, %v1857
      %v1873 = vadd.f32 %v1872, %v1858
      %v1874 = vadd.f32 %v1873, %v1859
      %v1875 = vadd.f32 %v1874, %v1860
      %v1876 = vadd.f32 %v1875, %v1861
      %v1877 = vadd.f32 %v1876, %v1862
      %v1878 = vadd.f32 %v1877, %v1863
      %v1879 = vadd.f32 %v1878, %v1864
      %v1880 = vrot.slane %v1879, 4
      %v1881 = vadd.f32 %v1879, %v1880
      %v1882 = vrot.slane %v1881, 2
      %v1883 = vadd.f32 %v1881, %v1882
      %v1884 = vrot.slane %v1883, 1
      %v1885 = vadd.f32 %v1883, %v1884
      %1886 = vst [vmem:[%s241] sm:$0x1] %v1831
      %1887 = vst [vmem:[%s241 + $0x1] sm:$0x1] %v1885
      %s1888 = smul.u32 16, %s21
      %p1889 = scmp.lt.s32.totalorder %s20, 1
      %s1890 = scalar_select %p1889, %s20, 1
      %p1891 = scmp.lt.s32.totalorder %s1888, 31
      %s1892 = scalar_select %p1891, %s1888, 31
      %s1893 = smul.addr %s1890, 32
      %s1894 = sadd.s32 %s1892, %s1893
      %s1895 = smul.addr %s1894, 4
      %s1896 = scalar_lea.vmem %s3, %s1895
      %p1897 = scmp.lt.s32.totalorder %s20, 1
      %s1898 = scalar_select %p1897, %s20, 1
      %p1899 = scmp.lt.s32.totalorder %s21, 1
      %s1900 = scalar_select %p1899, %s21, 1
      %s1901 = smul.addr %s1898, 2
      %s1902 = sadd.s32 %s1900, %s1901
      %s1903 = smul.addr %s1902, 2
      %s1904 = scalar_lea.vmem %s4, %s1903
      // Predicated region
      $region33: #{feature_extractor.4} parent=31 // pred_check
        %p1905 = pneg %p116
      $region34: #{feature_extractor.4} parent=31 // pred_check_branch
        %1907 = sbr.rel (%p1905) target = $region36
      $region35: #{feature_extractor.4} parent=31 // pred_region
        %s1908 = smul.u32 16, %s21
      $region36: #{feature_extractor.4} parent=31 // pred_fallthru
        _
      // Predicated region
      $region37: #{feature_extractor.4} parent=31 // pred_check
        %p1909 = pneg %p144
      $region38: #{feature_extractor.4} parent=31 // pred_check_branch
        %1911 = sbr.rel (%p1909) target = $region40
      $region39: #{feature_extractor.4} parent=31 // pred_region
        _
      $region40: #{feature_extractor.4} parent=31 // pred_fallthru
        _
    $region32: #{feature_extractor.4} parent=5 // pred_fallthru
      _
    %p1912 = scmp.le.s32.totalorder 2, %s11
    // Predicated region
    $region41: #{feature_extractor.4} parent=5 // pred_check
      %p1913 = pneg %p1912
    $region42: #{feature_extractor.4} parent=5 // pred_check_branch
      %1915 = sbr.rel (%p1913) target = $region44
    $region43: #{feature_extractor.4} parent=5 // pred_region
      %s1916 = ssub.s32 %s11, 2
      // Predicated region
      $region45: #{feature_extractor.4} parent=43 // pred_check
        %p1917 = pneg %p122
      $region46: #{feature_extractor.4} parent=43 // pred_check_branch
        %1919 = sbr.rel (%p1917) target = $region48
      $region47: #{feature_extractor.4} parent=43 // pred_region
        %s1920 = smul.u32 16, %s23
        %p1921 = scmp.lt.s32.totalorder %s22, 1
        %s1922 = scalar_select %p1921, %s22, 1
        %p1923 = scmp.lt.s32.totalorder %s1920, 31
        %s1924 = scalar_select %p1923, %s1920, 31
        %s1925 = smul.addr %s1922, 32
        %s1926 = sadd.s32 %s1924, %s1925
        %s1927 = smul.addr %s1926, 4
        %s1928 = scalar_lea.vmem %s3, %s1927
      $region48: #{feature_extractor.4} parent=43 // pred_fallthru
        _
      // Predicated region
      $region49: #{feature_extractor.4} parent=43 // pred_check
        %p1929 = pneg %p150
      $region50: #{feature_extractor.4} parent=43 // pred_check_branch
        %1931 = sbr.rel (%p1929) target = $region52
      $region51: #{feature_extractor.4} parent=43 // pred_region
        %p1932 = scmp.lt.s32.totalorder %s22, 1
        %s1933 = scalar_select %p1932, %s22, 1
        %p1934 = scmp.lt.s32.totalorder %s23, 1
        %s1935 = scalar_select %p1934, %s23, 1
        %s1936 = smul.addr %s1933, 2
        %s1937 = sadd.s32 %s1935, %s1936
        %s1938 = smul.addr %s1937, 2
        %s1939 = scalar_lea.vmem %s4, %s1938
      $region52: #{feature_extractor.4} parent=43 // pred_fallthru
        _
    $region44: #{feature_extractor.4} parent=5 // pred_fallthru
      _
  $region6: #{feature_extractor.4} parent=0 // loop_footer
    %s15 = sadd.s32 1, %s11
  $region7: #{feature_extractor.4} parent=0 // loop_footer_branch
    %10 = sbr.rel target = $region3
  $region8: #{feature_extractor.4} parent=0 // loop_exit
    _

</llo_original>
